<compile_context>
chip_gen: v7x
topology: tpu7x:2x2x1
jax: 0.10.0
libtpu: 0.0.40
codegen_flags: <defaults>
</compile_context>

<pallas_src>
import numpy as np
import jax
import jax.numpy as jnp
from jax.experimental import pallas as pl
from jax.experimental.pallas import tpu as pltpu

POOL_OUT = 16                  # AdaptiveAvgPool2d target is (16, 16)
POOL_F = POOL_OUT * POOL_OUT   # 256
HIDDEN = 1024
OUT_PAD = 128                  # lane-dense padded width of the final Linear


def _adaptive_pool_1d_matrix(in_size, out_size):
    """P[o, i] = weight of input index i in adaptive-avg-pool output o (torch semantics)."""
    P = np.zeros((out_size, in_size), dtype=np.float32)
    for o in range(out_size):
        start = (o * in_size) // out_size
        end = -(-((o + 1) * in_size) // out_size)  # ceil
        P[o, start:end] = 1.0 / float(end - start)
    return P


def build_pool_matrix(H, W):
    """(H*W, 256) matrix P2: x[b,c].reshape(H*W) @ P2 == flatten(adaptive_avg_pool2d(x,(16,16))[b,c])."""
    Ph = _adaptive_pool_1d_matrix(H, POOL_OUT)  # (16, H)
    Pw = _adaptive_pool_1d_matrix(W, POOL_OUT)  # (16, W)
    P2 = np.einsum("oh,pw->hwop", Ph, Pw).reshape(H * W, POOL_F)
    return jnp.asarray(P2, jnp.float32)


def _homography_kernel(x_ref, p2_ref, w1t_ref, b1_ref, w2t_ref, b2_ref, o_ref):
    # x_ref:   (C, tile_B, H*W)  f32
    # p2_ref:  (H*W, 256)        f32   shared adaptive-pool matrix (no C x C block-diag)
    # w1t_ref: (C, 256, 1024)    bf16  per-channel slices of W1^T
    # b1_ref:  (1, 1024)         f32
    # w2t_ref: (1024, 128)       bf16  W2^T padded to lane-dense width
    # b2_ref:  (1, 128)          f32
    # o_ref:   (tile_B, 128)     f32
    C, tb, _ = x_ref.shape
    hidden = w1t_ref.shape[2]
    acc = jnp.zeros((tb, hidden), jnp.float32)
    for c in range(C):  # C == 3, static -> unrolled; pool + fc1 fused per channel
        pooled = jnp.dot(x_ref[c], p2_ref[...], preferred_element_type=jnp.float32)
        acc = acc + jnp.dot(pooled.astype(jnp.bfloat16), w1t_ref[c],
                            preferred_element_type=jnp.float32)
    h = jnp.maximum(acc + b1_ref[...], 0.0)               # Dropout(eval) -> Linear -> ReLU
    o_ref[...] = jnp.dot(h.astype(jnp.bfloat16), w2t_ref[...],
                         preferred_element_type=jnp.float32) + b2_ref[...]


def homography_net_forward(x, params, *, batch_tile=128):
    """Eval-mode forward of HomographyNet (dropout = identity).

    # TODO(synk): layer1-4 (conv/bn/relu/maxpool) are dead code in the original
    # forward (their result is overwritten before use) and are intentionally not
    # computed; only the output-affecting pool->flatten->fc path is run.
    """
    B, C, H, W = x.shape
    HW = H * W
    p2 = params["p2"]              # (H*W, 256)      f32
    w1t = params["w1t"]            # (C, 256, 1024)  bf16
    b1 = params["b1"]              # (1, 1024)       f32
    w2t = params["w2t_pad"]        # (1024, 128)     bf16
    b2 = params["b2_pad"]          # (1, 128)        f32
    out_dim = params["out_dim"]
    hidden = w1t.shape[2]
    n_pad = w2t.shape[1]

    # (C, B, H*W): batch-tiled block gets a lane-dense (tile_B, H*W) layout.
    xk = jnp.transpose(x, (1, 0, 2, 3)).reshape(C, B, HW).astype(jnp.float32)
    tb = min(batch_tile, ((B + 7) // 8) * 8)
    Bp = ((B + tb - 1) // tb) * tb
    if Bp != B:
        xk = jnp.pad(xk, ((0, 0), (0, Bp - B), (0, 0)))

    out_p = pl.pallas_call(
        _homography_kernel,
        out_shape=jax.ShapeDtypeStruct((Bp, n_pad), jnp.float32),
        grid_spec=pltpu.PrefetchScalarGridSpec(
            num_scalar_prefetch=0,
            grid=(Bp // tb,),
            in_specs=[
                pl.BlockSpec((C, tb, HW), lambda i: (0, i, 0)),          # x: tiled over batch
                pl.BlockSpec((HW, POOL_F), lambda i: (0, 0)),            # resident weights
                pl.BlockSpec((C, POOL_F, hidden), lambda i: (0, 0, 0)),  # (same block every step)
                pl.BlockSpec((1, hidden), lambda i: (0, 0)),
                pl.BlockSpec((hidden, n_pad), lambda i: (0, 0)),
                pl.BlockSpec((1, n_pad), lambda i: (0, 0)),
            ],
            out_specs=pl.BlockSpec((tb, n_pad), lambda i: (i, 0)),
        ),
        compiler_params=pltpu.CompilerParams(
            dimension_semantics=("parallel",),          # megacore / v7x dual-TC sharding
            vmem_limit_bytes=16 * 1024 * 1024,
        ),
    )(xk, p2, w1t, b1, w2t, b2)
    return out_p[:B, :out_dim]


def init_params(key, input_channels, output_dim, H, W):
    assert POOL_F * input_channels == 16 * 16 * 3, \
        "nn.Linear(16*16*3, 1024) requires input_channels == 3"
    feat = POOL_F * input_channels
    k1, k2, k3, k4 = jax.random.split(key, 4)
    w1 = jax.random.normal(k1, (HIDDEN, feat), jnp.float32) * 0.02
    b1 = jax.random.normal(k2, (HIDDEN,), jnp.float32) * 0.02
    w2 = jax.random.normal(k3, (output_dim, HIDDEN), jnp.float32) * 0.02
    b2 = jax.random.normal(k4, (output_dim,), jnp.float32) * 0.02

    # kernel-side layouts: per-channel fc1 weight (bf16), lane-dense padded fc2 (bf16).
    w1t = jnp.asarray(w1.T).reshape(input_channels, POOL_F, HIDDEN).astype(jnp.bfloat16)
    w2t_pad = jnp.zeros((HIDDEN, OUT_PAD), jnp.float32).at[:, :output_dim].set(w2.T)
    b2_pad = jnp.zeros((1, OUT_PAD), jnp.float32).at[:, :output_dim].set(b2)
    return {
        "p2": build_pool_matrix(H, W),
        "w1t": w1t, "b1": b1.reshape(1, HIDDEN),
        "w2t_pad": w2t_pad.astype(jnp.bfloat16), "b2_pad": b2_pad,
        "out_dim": output_dim,
        # original (PyTorch-layout, f32) params kept only for the pure-JAX reference
        "w1": w1, "b1_ref": b1, "w2": w2, "b2_ref": b2,
    }


def reference_forward(x, params):
    """Pure-JAX f32 reference mirroring the PyTorch forward (eval mode)."""
    B, C, H, W = x.shape
    Ph = jnp.asarray(_adaptive_pool_1d_matrix(H, POOL_OUT))
    Pw = jnp.asarray(_adaptive_pool_1d_matrix(W, POOL_OUT))
    pooled = jnp.einsum("oh,bchw,pw->bcop", Ph, x, Pw)    # AdaptiveAvgPool2d((16,16))
    flat = pooled.reshape(B, -1)                           # torch.flatten(x, 1)
    h = jnp.maximum(flat @ params["w1"].T + params["b1_ref"], 0.0)
    return h @ params["w2"].T + params["b2_ref"]


if __name__ == "__main__":
    # input_channels must be 3 so flatten(avgpool(x)) matches Linear(16*16*3, 1024)
    B, C, H, W = 2, 3, 32, 32
    output_dim = 8

    key = jax.random.PRNGKey(0)
    kx, kp = jax.random.split(key)
    x = jax.random.normal(kx, (B, C, H, W), jnp.float32)   # NCHW, like PyTorch
    params = init_params(kp, C, output_dim, H, W)

    out = jax.block_until_ready(homography_net_forward(x, params))
    ref = reference_forward(x, params)

    assert out.shape == (B, output_dim)
    # bf16 fc weights in the kernel vs f32 reference -> bf16-appropriate tolerance
    np.testing.assert_allclose(np.asarray(out), np.asarray(ref), rtol=1e-2, atol=1e-2)
    print("KERNEL_OK")
</pallas_src>

<mosaic_0001>
module attributes {stable_mosaic.version = 11 : i64} {
  func.func @_homography_kernel(%arg0: i32, %arg1: memref<3x8x1024xf32, #tpu.memory_space<vmem>>, %arg2: memref<1024x256xf32, #tpu.memory_space<vmem>>, %arg3: memref<3x256x1024xbf16, #tpu.memory_space<vmem>>, %arg4: memref<1x1024xf32, #tpu.memory_space<vmem>>, %arg5: memref<1024x128xbf16, #tpu.memory_space<vmem>>, %arg6: memref<1x128xf32, #tpu.memory_space<vmem>>, %arg7: memref<8x128xf32, #tpu.memory_space<vmem>>) attributes {dimension_semantics = [#tpu.dimension_semantics<parallel>], iteration_bounds = array<i64: 1>, scalar_prefetch = 0 : i64, scratch_operands = 0 : i64, tpu.core_type = #tpu.core_type<tc>, window_params = [{transform_indices = @transform_0, window_bounds = array<i64: 3, 8, 1024>}, {pipeline_mode = #tpu.pipeline_mode<synchronous>, transform_indices = @transform_1, window_bounds = array<i64: 1024, 256>}, {pipeline_mode = #tpu.pipeline_mode<synchronous>, transform_indices = @transform_2, window_bounds = array<i64: 3, 256, 1024>}, {pipeline_mode = #tpu.pipeline_mode<synchronous>, transform_indices = @transform_3, window_bounds = array<i64: 1, 1024>}, {pipeline_mode = #tpu.pipeline_mode<synchronous>, transform_indices = @transform_4, window_bounds = array<i64: 1024, 128>}, {pipeline_mode = #tpu.pipeline_mode<synchronous>, transform_indices = @transform_5, window_bounds = array<i64: 1, 128>}, {transform_indices = @transform_6, window_bounds = array<i64: 8, 128>}]} {
    %cst = arith.constant 0.000000e+00 : f32
    %0 = vector.broadcast %cst : f32 to vector<8x1024xf32>
    %c0 = arith.constant 0 : index
    %c0_0 = arith.constant 0 : index
    %c0_1 = arith.constant 0 : index
    %1 = vector.load %arg1[%c0, %c0_0, %c0_1] : memref<3x8x1024xf32, #tpu.memory_space<vmem>>, vector<1x8x1024xf32>
    %2 = vector.shape_cast %1 : vector<1x8x1024xf32> to vector<8x1024xf32>
    %c0_2 = arith.constant 0 : index
    %c0_3 = arith.constant 0 : index
    %3 = vector.load %arg2[%c0_2, %c0_3] : memref<1024x256xf32, #tpu.memory_space<vmem>>, vector<1024x256xf32>
    %cst_4 = arith.constant dense<0.000000e+00> : vector<8x256xf32>
    %4 = tpu.matmul %2, %3, %cst_4 {dimension_numbers = #tpu.dot_dimension_numbers<[1], [0], [0], [1], [0, 0, 1, 1], [], []>} : vector<8x1024xf32>, vector<1024x256xf32>, vector<8x256xf32> -> vector<8x256xf32>
    %5 = arith.truncf %4 : vector<8x256xf32> to vector<8x256xbf16>
    %c0_5 = arith.constant 0 : index
    %c0_6 = arith.constant 0 : index
    %c0_7 = arith.constant 0 : index
    %6 = vector.load %arg3[%c0_5, %c0_6, %c0_7] : memref<3x256x1024xbf16, #tpu.memory_space<vmem>>, vector<1x256x1024xbf16>
    %7 = vector.shape_cast %6 : vector<1x256x1024xbf16> to vector<256x1024xbf16>
    %cst_8 = arith.constant dense<0.000000e+00> : vector<8x1024xf32>
    %8 = tpu.matmul %5, %7, %cst_8 {dimension_numbers = #tpu.dot_dimension_numbers<[1], [0], [0], [1], [0, 0, 1, 1], [], []>} : vector<8x256xbf16>, vector<256x1024xbf16>, vector<8x1024xf32> -> vector<8x1024xf32>
    %9 = arith.addf %0, %8 : vector<8x1024xf32>
    %c1 = arith.constant 1 : index
    %c0_9 = arith.constant 0 : index
    %c0_10 = arith.constant 0 : index
    %10 = vector.load %arg1[%c1, %c0_9, %c0_10] : memref<3x8x1024xf32, #tpu.memory_space<vmem>>, vector<1x8x1024xf32>
    %11 = vector.shape_cast %10 : vector<1x8x1024xf32> to vector<8x1024xf32>
    %c0_11 = arith.constant 0 : index
    %c0_12 = arith.constant 0 : index
    %12 = vector.load %arg2[%c0_11, %c0_12] : memref<1024x256xf32, #tpu.memory_space<vmem>>, vector<1024x256xf32>
    %cst_13 = arith.constant dense<0.000000e+00> : vector<8x256xf32>
    %13 = tpu.matmul %11, %12, %cst_13 {dimension_numbers = #tpu.dot_dimension_numbers<[1], [0], [0], [1], [0, 0, 1, 1], [], []>} : vector<8x1024xf32>, vector<1024x256xf32>, vector<8x256xf32> -> vector<8x256xf32>
    %14 = arith.truncf %13 : vector<8x256xf32> to vector<8x256xbf16>
    %c1_14 = arith.constant 1 : index
    %c0_15 = arith.constant 0 : index
    %c0_16 = arith.constant 0 : index
    %15 = vector.load %arg3[%c1_14, %c0_15, %c0_16] : memref<3x256x1024xbf16, #tpu.memory_space<vmem>>, vector<1x256x1024xbf16>
    %16 = vector.shape_cast %15 : vector<1x256x1024xbf16> to vector<256x1024xbf16>
    %cst_17 = arith.constant dense<0.000000e+00> : vector<8x1024xf32>
    %17 = tpu.matmul %14, %16, %cst_17 {dimension_numbers = #tpu.dot_dimension_numbers<[1], [0], [0], [1], [0, 0, 1, 1], [], []>} : vector<8x256xbf16>, vector<256x1024xbf16>, vector<8x1024xf32> -> vector<8x1024xf32>
    %18 = arith.addf %9, %17 : vector<8x1024xf32>
    %c2 = arith.constant 2 : index
    %c0_18 = arith.constant 0 : index
    %c0_19 = arith.constant 0 : index
    %19 = vector.load %arg1[%c2, %c0_18, %c0_19] : memref<3x8x1024xf32, #tpu.memory_space<vmem>>, vector<1x8x1024xf32>
    %20 = vector.shape_cast %19 : vector<1x8x1024xf32> to vector<8x1024xf32>
    %c0_20 = arith.constant 0 : index
    %c0_21 = arith.constant 0 : index
    %21 = vector.load %arg2[%c0_20, %c0_21] : memref<1024x256xf32, #tpu.memory_space<vmem>>, vector<1024x256xf32>
    %cst_22 = arith.constant dense<0.000000e+00> : vector<8x256xf32>
    %22 = tpu.matmul %20, %21, %cst_22 {dimension_numbers = #tpu.dot_dimension_numbers<[1], [0], [0], [1], [0, 0, 1, 1], [], []>} : vector<8x1024xf32>, vector<1024x256xf32>, vector<8x256xf32> -> vector<8x256xf32>
    %23 = arith.truncf %22 : vector<8x256xf32> to vector<8x256xbf16>
    %c2_23 = arith.constant 2 : index
    %c0_24 = arith.constant 0 : index
    %c0_25 = arith.constant 0 : index
    %24 = vector.load %arg3[%c2_23, %c0_24, %c0_25] : memref<3x256x1024xbf16, #tpu.memory_space<vmem>>, vector<1x256x1024xbf16>
    %25 = vector.shape_cast %24 : vector<1x256x1024xbf16> to vector<256x1024xbf16>
    %cst_26 = arith.constant dense<0.000000e+00> : vector<8x1024xf32>
    %26 = tpu.matmul %23, %25, %cst_26 {dimension_numbers = #tpu.dot_dimension_numbers<[1], [0], [0], [1], [0, 0, 1, 1], [], []>} : vector<8x256xbf16>, vector<256x1024xbf16>, vector<8x1024xf32> -> vector<8x1024xf32>
    %27 = arith.addf %18, %26 : vector<8x1024xf32>
    %c0_27 = arith.constant 0 : index
    %c0_28 = arith.constant 0 : index
    %28 = vector.load %arg4[%c0_27, %c0_28] : memref<1x1024xf32, #tpu.memory_space<vmem>>, vector<1x1024xf32>
    %29 = vector.broadcast %28 : vector<1x1024xf32> to vector<8x1024xf32>
    %30 = arith.addf %27, %29 : vector<8x1024xf32>
    %cst_29 = arith.constant 0.000000e+00 : f32
    %31 = vector.broadcast %cst_29 : f32 to vector<8x1024xf32>
    %32 = arith.maximumf %30, %31 : vector<8x1024xf32>
    %33 = arith.truncf %32 : vector<8x1024xf32> to vector<8x1024xbf16>
    %c0_30 = arith.constant 0 : index
    %c0_31 = arith.constant 0 : index
    %34 = vector.load %arg5[%c0_30, %c0_31] : memref<1024x128xbf16, #tpu.memory_space<vmem>>, vector<1024x128xbf16>
    %cst_32 = arith.constant dense<0.000000e+00> : vector<8x128xf32>
    %35 = tpu.matmul %33, %34, %cst_32 {dimension_numbers = #tpu.dot_dimension_numbers<[1], [0], [0], [1], [0, 0, 1, 1], [], []>} : vector<8x1024xbf16>, vector<1024x128xbf16>, vector<8x128xf32> -> vector<8x128xf32>
    %c0_33 = arith.constant 0 : index
    %c0_34 = arith.constant 0 : index
    %36 = vector.load %arg6[%c0_33, %c0_34] : memref<1x128xf32, #tpu.memory_space<vmem>>, vector<1x128xf32>
    %37 = vector.broadcast %36 : vector<1x128xf32> to vector<8x128xf32>
    %38 = arith.addf %35, %37 : vector<8x128xf32>
    %c0_35 = arith.constant 0 : index
    %c0_36 = arith.constant 0 : index
    %39 = vector.load %arg7[%c0_35, %c0_36] : memref<8x128xf32, #tpu.memory_space<vmem>>, vector<8x128xf32>
    tpu.vector_store %arg7[%c0_35, %c0_36], %38 {strides = array<i32>} : memref<8x128xf32, #tpu.memory_space<vmem>>, vector<8x128xf32>,
    return
  }
  func.func @transform_0(%arg0: i32) -> (i32, i32, i32) {
    %c0_i32 = arith.constant 0 : i32
    %c0_i32_0 = arith.constant 0 : i32
    %c0_i32_1 = arith.constant 0 : i32
    return %c0_i32, %arg0, %c0_i32_0 : i32, i32, i32
  }
  func.func @transform_1(%arg0: i32) -> (i32, i32) {
    %c0_i32 = arith.constant 0 : i32
    %c0_i32_0 = arith.constant 0 : i32
    %c0_i32_1 = arith.constant 0 : i32
    return %c0_i32, %c0_i32_0 : i32, i32
  }
  func.func @transform_2(%arg0: i32) -> (i32, i32, i32) {
    %c0_i32 = arith.constant 0 : i32
    %c0_i32_0 = arith.constant 0 : i32
    %c0_i32_1 = arith.constant 0 : i32
    %c0_i32_2 = arith.constant 0 : i32
    return %c0_i32, %c0_i32_0, %c0_i32_1 : i32, i32, i32
  }
  func.func @transform_3(%arg0: i32) -> (i32, i32) {
    %c0_i32 = arith.constant 0 : i32
    %c0_i32_0 = arith.constant 0 : i32
    %c0_i32_1 = arith.constant 0 : i32
    return %c0_i32, %c0_i32_0 : i32, i32
  }
  func.func @transform_4(%arg0: i32) -> (i32, i32) {
    %c0_i32 = arith.constant 0 : i32
    %c0_i32_0 = arith.constant 0 : i32
    %c0_i32_1 = arith.constant 0 : i32
    return %c0_i32, %c0_i32_0 : i32, i32
  }
  func.func @transform_5(%arg0: i32) -> (i32, i32) {
    %c0_i32 = arith.constant 0 : i32
    %c0_i32_0 = arith.constant 0 : i32
    %c0_i32_1 = arith.constant 0 : i32
    return %c0_i32, %c0_i32_0 : i32, i32
  }
  func.func @transform_6(%arg0: i32) -> (i32, i32) {
    %c0_i32 = arith.constant 0 : i32
    %c0_i32_0 = arith.constant 0 : i32
    return %arg0, %c0_i32 : i32, i32
  }
}

</mosaic_0001>

<llo_original>
// kernel: tpu_custom_call.1
$region0: #{tpu_custom_call.1}
  #allocation0 [shape = 'u32[]', space=smem, size = 0x4, offset = 0x4, fixed_abs, tag = 'smem constant byte address 0x4 - core index']
  #allocation1 [shape = 'u32[144,128]{1,0:T(1,128)}', space=vmem, size = 0x12000, scoped, tag = 'internal scratch']
  %s0 = inlined_call_operand.hbm [shape: f32[3,8,1024], index: 0, kind: input, shape index: {}]
  %s1 = inlined_call_operand.hbm [shape: f32[1024,256], index: 1, kind: input, shape index: {}]
  %s2 = inlined_call_operand.hbm [shape: bf16[3,256,1024], index: 2, kind: input, shape index: {}]
  %s3 = inlined_call_operand.hbm [shape: f32[1,1024], index: 3, kind: input, shape index: {}]
  %s4 = inlined_call_operand.hbm [shape: bf16[1024,128], index: 4, kind: input, shape index: {}]
  %s5 = inlined_call_operand.hbm [shape: f32[1,128], index: 5, kind: input, shape index: {}]
  %s6 = inlined_call_operand.hbm [shape: f32[8,128], index: 6, kind: output, shape index: {}]
  %s7 = sld [smem:[#allocation0]]
  $region58: #{tpu_custom_call.1} parent=0
    _
  %s9 = ssub.s32 1, %s7
  %s10 = scalar_select 0, %s9, %s7
  $region1: #{tpu_custom_call.1} parent=0
    #allocation2 [shape = 'u8[98304]{0}', space=vmem, size = 0x18000, scoped, tag = 'input window, operand 0, single buffered']
    #allocation3 [shape = 's32[1]{0}', space=sflag, size = 0x4, scoped, tag = 'scoped memory for tpu_custom_call.1']
    #allocation4 [shape = 's32[1]{0}', space=sflag, size = 0x4, scoped, tag = 'scoped memory for tpu_custom_call.1']
    #allocation5 [shape = 'u8[1048576]{0}', space=vmem, size = 0x100000, scoped, tag = 'input window, operand 1, single buffered']
    #allocation6 [shape = 's32[1]{0}', space=sflag, size = 0x4, scoped, tag = 'scoped memory for tpu_custom_call.1']
    #allocation7 [shape = 'u8[1572864]{0}', space=vmem, size = 0x180000, scoped, tag = 'input window, operand 2, single buffered']
    #allocation8 [shape = 'u8[4096]{0}', space=vmem, size = 0x1000, scoped, tag = 'input window, operand 3, single buffered']
    #allocation9 [shape = 's32[1]{0}', space=sflag, size = 0x4, scoped, tag = 'scoped memory for tpu_custom_call.1']
    #allocation10 [shape = 'u8[262144]{0}', space=vmem, size = 0x40000, scoped, tag = 'input window, operand 4, single buffered']
    #allocation11 [shape = 'u8[512]{0}', space=vmem, size = 0x400, scoped, tag = 'input window, operand 5, single buffered']
    #allocation12 [shape = 's32[1]{0}', space=sflag, size = 0x4, scoped, tag = 'scoped memory for tpu_custom_call.1']
    #allocation13 [shape = 'u8[4096]{0}', space=vmem, size = 0x1000, scoped, tag = 'output window, operand 0, single buffered']
    %11 = vsyncpa [#allocation3], 0
    %12 = vsyncpa [#allocation6], 0
    %13 = vsyncpa [#allocation9], 0
    %14 = vsyncpa [#allocation12], 0
    %15 = vsyncpa [#allocation4], 0
    // Predicated region
    $region2: #{tpu_custom_call.1} parent=1 // pred_check
      _
    $region3: #{tpu_custom_call.1} parent=1 // pred_check_branch
      %17 = sbr.rel (0) target = $region5
    $region4: #{tpu_custom_call.1} parent=1 // pred_region
      %s19 = ssub.s32 3072, 3072
      %20 = vsyncadd [#allocation3], %s19
      %s21 = sshll.u32 [#allocation2], 4
      %s22 = int_to_ptr.vmem [resolvable:$true] %s21
      %27 = dma.hbm_to_vmem [thread:$0]  %s0, 3072, %s22, [#allocation3], 1024, 1024, 64
    $region5: #{tpu_custom_call.1} parent=1 // pred_fallthru
      _
    // Predicated region
    $region6: #{tpu_custom_call.1} parent=1 // pred_check
      _
    $region7: #{tpu_custom_call.1} parent=1 // pred_check_branch
      %29 = sbr.rel (0) target = $region9
    $region8: #{tpu_custom_call.1} parent=1 // pred_region
      %s31 = ssub.s32 32768, 32768
      %32 = vsyncadd [#allocation6], %s31
      %s33 = sshll.u32 [#allocation5], 4
      %s34 = int_to_ptr.vmem [resolvable:$true] %s33
      %39 = dma.hbm_to_vmem [thread:$0]  %s1, 32768, %s34, [#allocation6], 256, 256, 16
    $region9: #{tpu_custom_call.1} parent=1 // pred_fallthru
      _
    // Predicated region
    $region10: #{tpu_custom_call.1} parent=1 // pred_check
      _
    $region11: #{tpu_custom_call.1} parent=1 // pred_check_branch
      %41 = sbr.rel (0) target = $region13
    $region12: #{tpu_custom_call.1} parent=1 // pred_region
      %s43 = ssub.s32 49152, 49152
      %44 = vsyncadd [#allocation6], %s43
      %s45 = sshll.u32 [#allocation7], 4
      %s46 = int_to_ptr.vmem [resolvable:$true] %s45
      %51 = dma.hbm_to_vmem [thread:$0]  %s2, 49152, %s46, [#allocation6], 512, 512, 32
    $region13: #{tpu_custom_call.1} parent=1 // pred_fallthru
      _
    // Predicated region
    $region14: #{tpu_custom_call.1} parent=1 // pred_check
      _
    $region15: #{tpu_custom_call.1} parent=1 // pred_check_branch
      %53 = sbr.rel (0) target = $region17
    $region16: #{tpu_custom_call.1} parent=1 // pred_region
      %s55 = ssub.s32 128, 128
      %56 = vsyncadd [#allocation9], %s55
      %s58 = sshll.u32 [#allocation8], 4
      %s59 = int_to_ptr.vmem [resolvable:$true] %s58
      %61 = dma.hbm_to_vmem [thread:$0]  %s3, 128, %s59, [#allocation9]
    $region17: #{tpu_custom_call.1} parent=1 // pred_fallthru
      _
    // Predicated region
    $region18: #{tpu_custom_call.1} parent=1 // pred_check
      _
    $region19: #{tpu_custom_call.1} parent=1 // pred_check_branch
      %63 = sbr.rel (0) target = $region21
    $region20: #{tpu_custom_call.1} parent=1 // pred_region
      %s65 = ssub.s32 8192, 8192
      %66 = vsyncadd [#allocation9], %s65
      %s67 = sshll.u32 [#allocation10], 4
      %s68 = int_to_ptr.vmem [resolvable:$true] %s67
      %73 = dma.hbm_to_vmem [thread:$0]  %s4, 8192, %s68, [#allocation9], 64, 64, 4
    $region21: #{tpu_custom_call.1} parent=1 // pred_fallthru
      _
    // Predicated region
    $region22: #{tpu_custom_call.1} parent=1 // pred_check
      _
    $region23: #{tpu_custom_call.1} parent=1 // pred_check_branch
      %75 = sbr.rel (0) target = $region25
    $region24: #{tpu_custom_call.1} parent=1 // pred_region
      %s77 = ssub.s32 16, 16
      %78 = vsyncadd [#allocation12], %s77
      %s80 = sshll.u32 [#allocation11], 4
      %s81 = int_to_ptr.vmem [resolvable:$true] %s80
      %83 = dma.hbm_to_vmem [thread:$0]  %s5, 16, %s81, [#allocation12]
    $region25: #{tpu_custom_call.1} parent=1 // pred_fallthru
      _
    // Predicated region
    $region26: #{tpu_custom_call.1} parent=1 // pred_check
      _
    $region27: #{tpu_custom_call.1} parent=1 // pred_check_branch
      %85 = sbr.rel (0) target = $region29
    $region28: #{tpu_custom_call.1} parent=1 // pred_region
      %86 = dma.done [#allocation3], 3072
    $region29: #{tpu_custom_call.1} parent=1 // pred_fallthru
      _
    // Predicated region
    $region30: #{tpu_custom_call.1} parent=1 // pred_check
      _
    $region31: #{tpu_custom_call.1} parent=1 // pred_check_branch
      %88 = sbr.rel (0) target = $region33
    $region32: #{tpu_custom_call.1} parent=1 // pred_region
      %89 = dma.done [#allocation6], 32768
    $region33: #{tpu_custom_call.1} parent=1 // pred_fallthru
      _
    // Predicated region
    $region34: #{tpu_custom_call.1} parent=1 // pred_check
      _
    $region35: #{tpu_custom_call.1} parent=1 // pred_check_branch
      %91 = sbr.rel (0) target = $region37
    $region36: #{tpu_custom_call.1} parent=1 // pred_region
      %92 = dma.done [#allocation6], 49152
    $region37: #{tpu_custom_call.1} parent=1 // pred_fallthru
      _
    // Predicated region
    $region38: #{tpu_custom_call.1} parent=1 // pred_check
      _
    $region39: #{tpu_custom_call.1} parent=1 // pred_check_branch
      %94 = sbr.rel (0) target = $region41
    $region40: #{tpu_custom_call.1} parent=1 // pred_region
      %95 = dma.done [#allocation9], 128
    $region41: #{tpu_custom_call.1} parent=1 // pred_fallthru
      _
    // Predicated region
    $region42: #{tpu_custom_call.1} parent=1 // pred_check
      _
    $region43: #{tpu_custom_call.1} parent=1 // pred_check_branch
      %97 = sbr.rel (0) target = $region45
    $region44: #{tpu_custom_call.1} parent=1 // pred_region
      %98 = dma.done [#allocation9], 8192
    $region45: #{tpu_custom_call.1} parent=1 // pred_fallthru
      _
    // Predicated region
    $region46: #{tpu_custom_call.1} parent=1 // pred_check
      _
    $region47: #{tpu_custom_call.1} parent=1 // pred_check_branch
      %100 = sbr.rel (0) target = $region49
    $region48: #{tpu_custom_call.1} parent=1 // pred_region
      %101 = dma.done [#allocation12], 16
    $region49: #{tpu_custom_call.1} parent=1 // pred_fallthru
      _
    %v103 = vld [vmem:[#allocation2] sm:$0xff]
    %v104 = vld [vmem:[#allocation2 + $0x8] sm:$0xff]
    %v105 = vld [vmem:[#allocation2 + $0x10] sm:$0xff]
    %v106 = vld [vmem:[#allocation2 + $0x18] sm:$0xff]
    %v107 = vld [vmem:[#allocation2 + $0x20] sm:$0xff]
    %v108 = vld [vmem:[#allocation2 + $0x28] sm:$0xff]
    %v109 = vld [vmem:[#allocation2 + $0x30] sm:$0xff]
    %v110 = vld [vmem:[#allocation2 + $0x38] sm:$0xff]
    %v111 = vld [vmem:[#allocation5] sm:$0xff]
    %v112 = vld [vmem:[#allocation5 + $0x8] sm:$0xff]
    %v113 = vld [vmem:[#allocation5 + $0x10] sm:$0xff]
    %v114 = vld [vmem:[#allocation5 + $0x18] sm:$0xff]
    %v115 = vld [vmem:[#allocation5 + $0x20] sm:$0xff]
    %v116 = vld [vmem:[#allocation5 + $0x28] sm:$0xff]
    %v117 = vld [vmem:[#allocation5 + $0x30] sm:$0xff]
    %v118 = vld [vmem:[#allocation5 + $0x38] sm:$0xff]
    %v119 = vld [vmem:[#allocation5 + $0x40] sm:$0xff]
    %v120 = vld [vmem:[#allocation5 + $0x48] sm:$0xff]
    %v121 = vld [vmem:[#allocation5 + $0x50] sm:$0xff]
    %v122 = vld [vmem:[#allocation5 + $0x58] sm:$0xff]
    %v123 = vld [vmem:[#allocation5 + $0x60] sm:$0xff]
    %v124 = vld [vmem:[#allocation5 + $0x68] sm:$0xff]
    %v125 = vld [vmem:[#allocation5 + $0x70] sm:$0xff]
    %v126 = vld [vmem:[#allocation5 + $0x78] sm:$0xff]
    %v127 = vld [vmem:[#allocation5 + $0x80] sm:$0xff]
    %v128 = vld [vmem:[#allocation5 + $0x88] sm:$0xff]
    %v129 = vld [vmem:[#allocation5 + $0x90] sm:$0xff]
    %v130 = vld [vmem:[#allocation5 + $0x98] sm:$0xff]
    %v131 = vld [vmem:[#allocation5 + $0xa0] sm:$0xff]
    %v132 = vld [vmem:[#allocation5 + $0xa8] sm:$0xff]
    %v133 = vld [vmem:[#allocation5 + $0xb0] sm:$0xff]
    %v134 = vld [vmem:[#allocation5 + $0xb8] sm:$0xff]
    %v135 = vld [vmem:[#allocation5 + $0xc0] sm:$0xff]
    %v136 = vld [vmem:[#allocation5 + $0xc8] sm:$0xff]
    %v137 = vld [vmem:[#allocation5 + $0xd0] sm:$0xff]
    %v138 = vld [vmem:[#allocation5 + $0xd8] sm:$0xff]
    %v139 = vld [vmem:[#allocation5 + $0xe0] sm:$0xff]
    %v140 = vld [vmem:[#allocation5 + $0xe8] sm:$0xff]
    %v141 = vld [vmem:[#allocation5 + $0xf0] sm:$0xff]
    %v142 = vld [vmem:[#allocation5 + $0xf8] sm:$0xff]
    %v143 = vld [vmem:[#allocation5 + $0x100] sm:$0xff]
    %v144 = vld [vmem:[#allocation5 + $0x108] sm:$0xff]
    %v145 = vld [vmem:[#allocation5 + $0x110] sm:$0xff]
    %v146 = vld [vmem:[#allocation5 + $0x118] sm:$0xff]
    %v147 = vld [vmem:[#allocation5 + $0x120] sm:$0xff]
    %v148 = vld [vmem:[#allocation5 + $0x128] sm:$0xff]
    %v149 = vld [vmem:[#allocation5 + $0x130] sm:$0xff]
    %v150 = vld [vmem:[#allocation5 + $0x138] sm:$0xff]
    %v151 = vld [vmem:[#allocation5 + $0x140] sm:$0xff]
    %v152 = vld [vmem:[#allocation5 + $0x148] sm:$0xff]
    %v153 = vld [vmem:[#allocation5 + $0x150] sm:$0xff]
    %v154 = vld [vmem:[#allocation5 + $0x158] sm:$0xff]
    %v155 = vld [vmem:[#allocation5 + $0x160] sm:$0xff]
    %v156 = vld [vmem:[#allocation5 + $0x168] sm:$0xff]
    %v157 = vld [vmem:[#allocation5 + $0x170] sm:$0xff]
    %v158 = vld [vmem:[#allocation5 + $0x178] sm:$0xff]
    %v159 = vld [vmem:[#allocation5 + $0x180] sm:$0xff]
    %v160 = vld [vmem:[#allocation5 + $0x188] sm:$0xff]
    %v161 = vld [vmem:[#allocation5 + $0x190] sm:$0xff]
    %v162 = vld [vmem:[#allocation5 + $0x198] sm:$0xff]
    %v163 = vld [vmem:[#allocation5 + $0x1a0] sm:$0xff]
    %v164 = vld [vmem:[#allocation5 + $0x1a8] sm:$0xff]
    %v165 = vld [vmem:[#allocation5 + $0x1b0] sm:$0xff]
    %v166 = vld [vmem:[#allocation5 + $0x1b8] sm:$0xff]
    %v167 = vld [vmem:[#allocation5 + $0x1c0] sm:$0xff]
    %v168 = vld [vmem:[#allocation5 + $0x1c8] sm:$0xff]
    %v169 = vld [vmem:[#allocation5 + $0x1d0] sm:$0xff]
    %v170 = vld [vmem:[#allocation5 + $0x1d8] sm:$0xff]
    %v171 = vld [vmem:[#allocation5 + $0x1e0] sm:$0xff]
    %v172 = vld [vmem:[#allocation5 + $0x1e8] sm:$0xff]
    %v173 = vld [vmem:[#allocation5 + $0x1f0] sm:$0xff]
    %v174 = vld [vmem:[#allocation5 + $0x1f8] sm:$0xff]
    %v175 = vld [vmem:[#allocation5 + $0x200] sm:$0xff]
    %v176 = vld [vmem:[#allocation5 + $0x208] sm:$0xff]
    %v177 = vld [vmem:[#allocation5 + $0x210] sm:$0xff]
    %v178 = vld [vmem:[#allocation5 + $0x218] sm:$0xff]
    %v179 = vld [vmem:[#allocation5 + $0x220] sm:$0xff]
    %v180 = vld [vmem:[#allocation5 + $0x228] sm:$0xff]
    %v181 = vld [vmem:[#allocation5 + $0x230] sm:$0xff]
    %v182 = vld [vmem:[#allocation5 + $0x238] sm:$0xff]
    %v183 = vld [vmem:[#allocation5 + $0x240] sm:$0xff]
    %v184 = vld [vmem:[#allocation5 + $0x248] sm:$0xff]
    %v185 = vld [vmem:[#allocation5 + $0x250] sm:$0xff]
    %v186 = vld [vmem:[#allocation5 + $0x258] sm:$0xff]
    %v187 = vld [vmem:[#allocation5 + $0x260] sm:$0xff]
    %v188 = vld [vmem:[#allocation5 + $0x268] sm:$0xff]
    %v189 = vld [vmem:[#allocation5 + $0x270] sm:$0xff]
    %v190 = vld [vmem:[#allocation5 + $0x278] sm:$0xff]
    %v191 = vld [vmem:[#allocation5 + $0x280] sm:$0xff]
    %v192 = vld [vmem:[#allocation5 + $0x288] sm:$0xff]
    %v193 = vld [vmem:[#allocation5 + $0x290] sm:$0xff]
    %v194 = vld [vmem:[#allocation5 + $0x298] sm:$0xff]
    %v195 = vld [vmem:[#allocation5 + $0x2a0] sm:$0xff]
    %v196 = vld [vmem:[#allocation5 + $0x2a8] sm:$0xff]
    %v197 = vld [vmem:[#allocation5 + $0x2b0] sm:$0xff]
    %v198 = vld [vmem:[#allocation5 + $0x2b8] sm:$0xff]
    %v199 = vld [vmem:[#allocation5 + $0x2c0] sm:$0xff]
    %v200 = vld [vmem:[#allocation5 + $0x2c8] sm:$0xff]
    %v201 = vld [vmem:[#allocation5 + $0x2d0] sm:$0xff]
    %v202 = vld [vmem:[#allocation5 + $0x2d8] sm:$0xff]
    %v203 = vld [vmem:[#allocation5 + $0x2e0] sm:$0xff]
    %v204 = vld [vmem:[#allocation5 + $0x2e8] sm:$0xff]
    %v205 = vld [vmem:[#allocation5 + $0x2f0] sm:$0xff]
    %v206 = vld [vmem:[#allocation5 + $0x2f8] sm:$0xff]
    %v207 = vld [vmem:[#allocation5 + $0x300] sm:$0xff]
    %v208 = vld [vmem:[#allocation5 + $0x308] sm:$0xff]
    %v209 = vld [vmem:[#allocation5 + $0x310] sm:$0xff]
    %v210 = vld [vmem:[#allocation5 + $0x318] sm:$0xff]
    %v211 = vld [vmem:[#allocation5 + $0x320] sm:$0xff]
    %v212 = vld [vmem:[#allocation5 + $0x328] sm:$0xff]
    %v213 = vld [vmem:[#allocation5 + $0x330] sm:$0xff]
    %v214 = vld [vmem:[#allocation5 + $0x338] sm:$0xff]
    %v215 = vld [vmem:[#allocation5 + $0x340] sm:$0xff]
    %v216 = vld [vmem:[#allocation5 + $0x348] sm:$0xff]
    %v217 = vld [vmem:[#allocation5 + $0x350] sm:$0xff]
    %v218 = vld [vmem:[#allocation5 + $0x358] sm:$0xff]
    %v219 = vld [vmem:[#allocation5 + $0x360] sm:$0xff]
    %v220 = vld [vmem:[#allocation5 + $0x368] sm:$0xff]
    %v221 = vld [vmem:[#allocation5 + $0x370] sm:$0xff]
    %v222 = vld [vmem:[#allocation5 + $0x378] sm:$0xff]
    %v223 = vld [vmem:[#allocation5 + $0x380] sm:$0xff]
    %v224 = vld [vmem:[#allocation5 + $0x388] sm:$0xff]
    %v225 = vld [vmem:[#allocation5 + $0x390] sm:$0xff]
    %v226 = vld [vmem:[#allocation5 + $0x398] sm:$0xff]
    %v227 = vld [vmem:[#allocation5 + $0x3a0] sm:$0xff]
    %v228 = vld [vmem:[#allocation5 + $0x3a8] sm:$0xff]
    %v229 = vld [vmem:[#allocation5 + $0x3b0] sm:$0xff]
    %v230 = vld [vmem:[#allocation5 + $0x3b8] sm:$0xff]
    %v231 = vld [vmem:[#allocation5 + $0x3c0] sm:$0xff]
    %v232 = vld [vmem:[#allocation5 + $0x3c8] sm:$0xff]
    %v233 = vld [vmem:[#allocation5 + $0x3d0] sm:$0xff]
    %v234 = vld [vmem:[#allocation5 + $0x3d8] sm:$0xff]
    %v235 = vld [vmem:[#allocation5 + $0x3e0] sm:$0xff]
    %v236 = vld [vmem:[#allocation5 + $0x3e8] sm:$0xff]
    %v237 = vld [vmem:[#allocation5 + $0x3f0] sm:$0xff]
    %v238 = vld [vmem:[#allocation5 + $0x3f8] sm:$0xff]
    %v239 = vld [vmem:[#allocation5 + $0x400] sm:$0xff]
    %v240 = vld [vmem:[#allocation5 + $0x408] sm:$0xff]
    %v241 = vld [vmem:[#allocation5 + $0x410] sm:$0xff]
    %v242 = vld [vmem:[#allocation5 + $0x418] sm:$0xff]
    %v243 = vld [vmem:[#allocation5 + $0x420] sm:$0xff]
    %v244 = vld [vmem:[#allocation5 + $0x428] sm:$0xff]
    %v245 = vld [vmem:[#allocation5 + $0x430] sm:$0xff]
    %v246 = vld [vmem:[#allocation5 + $0x438] sm:$0xff]
    %v247 = vld [vmem:[#allocation5 + $0x440] sm:$0xff]
    %v248 = vld [vmem:[#allocation5 + $0x448] sm:$0xff]
    %v249 = vld [vmem:[#allocation5 + $0x450] sm:$0xff]
    %v250 = vld [vmem:[#allocation5 + $0x458] sm:$0xff]
    %v251 = vld [vmem:[#allocation5 + $0x460] sm:$0xff]
    %v252 = vld [vmem:[#allocation5 + $0x468] sm:$0xff]
    %v253 = vld [vmem:[#allocation5 + $0x470] sm:$0xff]
    %v254 = vld [vmem:[#allocation5 + $0x478] sm:$0xff]
    %v255 = vld [vmem:[#allocation5 + $0x480] sm:$0xff]
    %v256 = vld [vmem:[#allocation5 + $0x488] sm:$0xff]
    %v257 = vld [vmem:[#allocation5 + $0x490] sm:$0xff]
    %v258 = vld [vmem:[#allocation5 + $0x498] sm:$0xff]
    %v259 = vld [vmem:[#allocation5 + $0x4a0] sm:$0xff]
    %v260 = vld [vmem:[#allocation5 + $0x4a8] sm:$0xff]
    %v261 = vld [vmem:[#allocation5 + $0x4b0] sm:$0xff]
    %v262 = vld [vmem:[#allocation5 + $0x4b8] sm:$0xff]
    %v263 = vld [vmem:[#allocation5 + $0x4c0] sm:$0xff]
    %v264 = vld [vmem:[#allocation5 + $0x4c8] sm:$0xff]
    %v265 = vld [vmem:[#allocation5 + $0x4d0] sm:$0xff]
    %v266 = vld [vmem:[#allocation5 + $0x4d8] sm:$0xff]
    %v267 = vld [vmem:[#allocation5 + $0x4e0] sm:$0xff]
    %v268 = vld [vmem:[#allocation5 + $0x4e8] sm:$0xff]
    %v269 = vld [vmem:[#allocation5 + $0x4f0] sm:$0xff]
    %v270 = vld [vmem:[#allocation5 + $0x4f8] sm:$0xff]
    %v271 = vld [vmem:[#allocation5 + $0x500] sm:$0xff]
    %v272 = vld [vmem:[#allocation5 + $0x508] sm:$0xff]
    %v273 = vld [vmem:[#allocation5 + $0x510] sm:$0xff]
    %v274 = vld [vmem:[#allocation5 + $0x518] sm:$0xff]
    %v275 = vld [vmem:[#allocation5 + $0x520] sm:$0xff]
    %v276 = vld [vmem:[#allocation5 + $0x528] sm:$0xff]
    %v277 = vld [vmem:[#allocation5 + $0x530] sm:$0xff]
    %v278 = vld [vmem:[#allocation5 + $0x538] sm:$0xff]
    %v279 = vld [vmem:[#allocation5 + $0x540] sm:$0xff]
    %v280 = vld [vmem:[#allocation5 + $0x548] sm:$0xff]
    %v281 = vld [vmem:[#allocation5 + $0x550] sm:$0xff]
    %v282 = vld [vmem:[#allocation5 + $0x558] sm:$0xff]
    %v283 = vld [vmem:[#allocation5 + $0x560] sm:$0xff]
    %v284 = vld [vmem:[#allocation5 + $0x568] sm:$0xff]
    %v285 = vld [vmem:[#allocation5 + $0x570] sm:$0xff]
    %v286 = vld [vmem:[#allocation5 + $0x578] sm:$0xff]
    %v287 = vld [vmem:[#allocation5 + $0x580] sm:$0xff]
    %v288 = vld [vmem:[#allocation5 + $0x588] sm:$0xff]
    %v289 = vld [vmem:[#allocation5 + $0x590] sm:$0xff]
    %v290 = vld [vmem:[#allocation5 + $0x598] sm:$0xff]
    %v291 = vld [vmem:[#allocation5 + $0x5a0] sm:$0xff]
    %v292 = vld [vmem:[#allocation5 + $0x5a8] sm:$0xff]
    %v293 = vld [vmem:[#allocation5 + $0x5b0] sm:$0xff]
    %v294 = vld [vmem:[#allocation5 + $0x5b8] sm:$0xff]
    %v295 = vld [vmem:[#allocation5 + $0x5c0] sm:$0xff]
    %v296 = vld [vmem:[#allocation5 + $0x5c8] sm:$0xff]
    %v297 = vld [vmem:[#allocation5 + $0x5d0] sm:$0xff]
    %v298 = vld [vmem:[#allocation5 + $0x5d8] sm:$0xff]
    %v299 = vld [vmem:[#allocation5 + $0x5e0] sm:$0xff]
    %v300 = vld [vmem:[#allocation5 + $0x5e8] sm:$0xff]
    %v301 = vld [vmem:[#allocation5 + $0x5f0] sm:$0xff]
    %v302 = vld [vmem:[#allocation5 + $0x5f8] sm:$0xff]
    %v303 = vld [vmem:[#allocation5 + $0x600] sm:$0xff]
    %v304 = vld [vmem:[#allocation5 + $0x608] sm:$0xff]
    %v305 = vld [vmem:[#allocation5 + $0x610] sm:$0xff]
    %v306 = vld [vmem:[#allocation5 + $0x618] sm:$0xff]
    %v307 = vld [vmem:[#allocation5 + $0x620] sm:$0xff]
    %v308 = vld [vmem:[#allocation5 + $0x628] sm:$0xff]
    %v309 = vld [vmem:[#allocation5 + $0x630] sm:$0xff]
    %v310 = vld [vmem:[#allocation5 + $0x638] sm:$0xff]
    %v311 = vld [vmem:[#allocation5 + $0x640] sm:$0xff]
    %v312 = vld [vmem:[#allocation5 + $0x648] sm:$0xff]
    %v313 = vld [vmem:[#allocation5 + $0x650] sm:$0xff]
    %v314 = vld [vmem:[#allocation5 + $0x658] sm:$0xff]
    %v315 = vld [vmem:[#allocation5 + $0x660] sm:$0xff]
    %v316 = vld [vmem:[#allocation5 + $0x668] sm:$0xff]
    %v317 = vld [vmem:[#allocation5 + $0x670] sm:$0xff]
    %v318 = vld [vmem:[#allocation5 + $0x678] sm:$0xff]
    %v319 = vld [vmem:[#allocation5 + $0x680] sm:$0xff]
    %v320 = vld [vmem:[#allocation5 + $0x688] sm:$0xff]
    %v321 = vld [vmem:[#allocation5 + $0x690] sm:$0xff]
    %v322 = vld [vmem:[#allocation5 + $0x698] sm:$0xff]
    %v323 = vld [vmem:[#allocation5 + $0x6a0] sm:$0xff]
    %v324 = vld [vmem:[#allocation5 + $0x6a8] sm:$0xff]
    %v325 = vld [vmem:[#allocation5 + $0x6b0] sm:$0xff]
    %v326 = vld [vmem:[#allocation5 + $0x6b8] sm:$0xff]
    %v327 = vld [vmem:[#allocation5 + $0x6c0] sm:$0xff]
    %v328 = vld [vmem:[#allocation5 + $0x6c8] sm:$0xff]
    %v329 = vld [vmem:[#allocation5 + $0x6d0] sm:$0xff]
    %v330 = vld [vmem:[#allocation5 + $0x6d8] sm:$0xff]
    %v331 = vld [vmem:[#allocation5 + $0x6e0] sm:$0xff]
    %v332 = vld [vmem:[#allocation5 + $0x6e8] sm:$0xff]
    %v333 = vld [vmem:[#allocation5 + $0x6f0] sm:$0xff]
    %v334 = vld [vmem:[#allocation5 + $0x6f8] sm:$0xff]
    %v335 = vld [vmem:[#allocation5 + $0x700] sm:$0xff]
    %v336 = vld [vmem:[#allocation5 + $0x708] sm:$0xff]
    %v337 = vld [vmem:[#allocation5 + $0x710] sm:$0xff]
    %v338 = vld [vmem:[#allocation5 + $0x718] sm:$0xff]
    %v339 = vld [vmem:[#allocation5 + $0x720] sm:$0xff]
    %v340 = vld [vmem:[#allocation5 + $0x728] sm:$0xff]
    %v341 = vld [vmem:[#allocation5 + $0x730] sm:$0xff]
    %v342 = vld [vmem:[#allocation5 + $0x738] sm:$0xff]
    %v343 = vld [vmem:[#allocation5 + $0x740] sm:$0xff]
    %v344 = vld [vmem:[#allocation5 + $0x748] sm:$0xff]
    %v345 = vld [vmem:[#allocation5 + $0x750] sm:$0xff]
    %v346 = vld [vmem:[#allocation5 + $0x758] sm:$0xff]
    %v347 = vld [vmem:[#allocation5 + $0x760] sm:$0xff]
    %v348 = vld [vmem:[#allocation5 + $0x768] sm:$0xff]
    %v349 = vld [vmem:[#allocation5 + $0x770] sm:$0xff]
    %v350 = vld [vmem:[#allocation5 + $0x778] sm:$0xff]
    %v351 = vld [vmem:[#allocation5 + $0x780] sm:$0xff]
    %v352 = vld [vmem:[#allocation5 + $0x788] sm:$0xff]
    %v353 = vld [vmem:[#allocation5 + $0x790] sm:$0xff]
    %v354 = vld [vmem:[#allocation5 + $0x798] sm:$0xff]
    %v355 = vld [vmem:[#allocation5 + $0x7a0] sm:$0xff]
    %v356 = vld [vmem:[#allocation5 + $0x7a8] sm:$0xff]
    %v357 = vld [vmem:[#allocation5 + $0x7b0] sm:$0xff]
    %v358 = vld [vmem:[#allocation5 + $0x7b8] sm:$0xff]
    %v359 = vld [vmem:[#allocation5 + $0x7c0] sm:$0xff]
    %v360 = vld [vmem:[#allocation5 + $0x7c8] sm:$0xff]
    %v361 = vld [vmem:[#allocation5 + $0x7d0] sm:$0xff]
    %v362 = vld [vmem:[#allocation5 + $0x7d8] sm:$0xff]
    %v363 = vld [vmem:[#allocation5 + $0x7e0] sm:$0xff]
    %v364 = vld [vmem:[#allocation5 + $0x7e8] sm:$0xff]
    %v365 = vld [vmem:[#allocation5 + $0x7f0] sm:$0xff]
    %v366 = vld [vmem:[#allocation5 + $0x7f8] sm:$0xff]
    %367 = vmatprep.subr.mxu0 %v112
    %368 = vmatpush1.msra.mxu0 %v111
    %369 = vmatprep.subr.mxu0 %v114
    %370 = vmatpush1.msra.mxu0 %v113
    %371 = vmatprep.subr.mxu0 %v116
    %372 = vmatpush1.msra.mxu0 %v115
    %373 = vmatprep.subr.mxu0 %v118
    %374 = vmatpush1.msra.mxu0 %v117
    %375 = vmatprep.subr.mxu0 %v120
    %376 = vmatpush1.msra.mxu0 %v119
    %377 = vmatprep.subr.mxu0 %v122
    %378 = vmatpush1.msra.mxu0 %v121
    %379 = vmatprep.subr.mxu0 %v124
    %380 = vmatpush1.msra.mxu0 %v123
    %381 = vmatprep.subr.mxu0 %v126
    %382 = vmatpush1.msra.mxu0 %v125
    %383 = vmatprep.subr.mxu0 %v128
    %384 = vmatpush1.msra.mxu0 %v127
    %385 = vmatprep.subr.mxu0 %v130
    %386 = vmatpush1.msra.mxu0 %v129
    %387 = vmatprep.subr.mxu0 %v132
    %388 = vmatpush1.msra.mxu0 %v131
    %389 = vmatprep.subr.mxu0 %v134
    %390 = vmatpush1.msra.mxu0 %v133
    %391 = vmatprep.subr.mxu0 %v136
    %392 = vmatpush1.msra.mxu0 %v135
    %393 = vmatprep.subr.mxu0 %v138
    %394 = vmatpush1.msra.mxu0 %v137
    %395 = vmatprep.subr.mxu0 %v140
    %396 = vmatpush1.msra.mxu0 %v139
    %397 = vmatprep.subr.mxu0 %v142
    %398 = vmatpush1.msra.mxu0 %v141
    %399 = vmatprep.subr.mxu0 %v144
    %400 = vmatpush1.msra.mxu0 %v143
    %401 = vmatprep.subr.mxu0 %v146
    %402 = vmatpush1.msra.mxu0 %v145
    %403 = vmatprep.subr.mxu0 %v148
    %404 = vmatpush1.msra.mxu0 %v147
    %405 = vmatprep.subr.mxu0 %v150
    %406 = vmatpush1.msra.mxu0 %v149
    %407 = vmatprep.subr.mxu0 %v152
    %408 = vmatpush1.msra.mxu0 %v151
    %409 = vmatprep.subr.mxu0 %v154
    %410 = vmatpush1.msra.mxu0 %v153
    %411 = vmatprep.subr.mxu0 %v156
    %412 = vmatpush1.msra.mxu0 %v155
    %413 = vmatprep.subr.mxu0 %v158
    %414 = vmatpush1.msra.mxu0 %v157
    %415 = vmatprep.subr.mxu0 %v160
    %416 = vmatpush1.msra.mxu0 %v159
    %417 = vmatprep.subr.mxu0 %v162
    %418 = vmatpush1.msra.mxu0 %v161
    %419 = vmatprep.subr.mxu0 %v164
    %420 = vmatpush1.msra.mxu0 %v163
    %421 = vmatprep.subr.mxu0 %v166
    %422 = vmatpush1.msra.mxu0 %v165
    %423 = vmatprep.subr.mxu0 %v168
    %424 = vmatpush1.msra.mxu0 %v167
    %425 = vmatprep.subr.mxu0 %v170
    %426 = vmatpush1.msra.mxu0 %v169
    %427 = vmatprep.subr.mxu0 %v172
    %428 = vmatpush1.msra.mxu0 %v171
    %429 = vmatprep.subr.mxu0 %v174
    %430 = vmatpush1.msra.mxu0 %v173
    %431 = vmatprep.mubr.f32.mxu0 %v104
    %432 = vmatmul.mubr.f32.gmra.mrb[0].mxu0 %v103
    %v433 = vpop.f32.mrb[0].mxu0
    %v434 = vadd.f32 0.0, %v433
    %v435 = vpop.f32.mrb[0].mxu0
    %v436 = vadd.f32 0.0, %v435
    %437 = vdwg.mxu0
    %438 = vmatprep.subr.mxu0 %v176
    %439 = vmatpush1.msra.mxu0 %v175
    %440 = vmatprep.subr.mxu0 %v178
    %441 = vmatpush1.msra.mxu0 %v177
    %442 = vmatprep.subr.mxu0 %v180
    %443 = vmatpush1.msra.mxu0 %v179
    %444 = vmatprep.subr.mxu0 %v182
    %445 = vmatpush1.msra.mxu0 %v181
    %446 = vmatprep.subr.mxu0 %v184
    %447 = vmatpush1.msra.mxu0 %v183
    %448 = vmatprep.subr.mxu0 %v186
    %449 = vmatpush1.msra.mxu0 %v185
    %450 = vmatprep.subr.mxu0 %v188
    %451 = vmatpush1.msra.mxu0 %v187
    %452 = vmatprep.subr.mxu0 %v190
    %453 = vmatpush1.msra.mxu0 %v189
    %454 = vmatprep.subr.mxu0 %v192
    %455 = vmatpush1.msra.mxu0 %v191
    %456 = vmatprep.subr.mxu0 %v194
    %457 = vmatpush1.msra.mxu0 %v193
    %458 = vmatprep.subr.mxu0 %v196
    %459 = vmatpush1.msra.mxu0 %v195
    %460 = vmatprep.subr.mxu0 %v198
    %461 = vmatpush1.msra.mxu0 %v197
    %462 = vmatprep.subr.mxu0 %v200
    %463 = vmatpush1.msra.mxu0 %v199
    %464 = vmatprep.subr.mxu0 %v202
    %465 = vmatpush1.msra.mxu0 %v201
    %466 = vmatprep.subr.mxu0 %v204
    %467 = vmatpush1.msra.mxu0 %v203
    %468 = vmatprep.subr.mxu0 %v206
    %469 = vmatpush1.msra.mxu0 %v205
    %470 = vmatprep.subr.mxu0 %v208
    %471 = vmatpush1.msra.mxu0 %v207
    %472 = vmatprep.subr.mxu0 %v210
    %473 = vmatpush1.msra.mxu0 %v209
    %474 = vmatprep.subr.mxu0 %v212
    %475 = vmatpush1.msra.mxu0 %v211
    %476 = vmatprep.subr.mxu0 %v214
    %477 = vmatpush1.msra.mxu0 %v213
    %478 = vmatprep.subr.mxu0 %v216
    %479 = vmatpush1.msra.mxu0 %v215
    %480 = vmatprep.subr.mxu0 %v218
    %481 = vmatpush1.msra.mxu0 %v217
    %482 = vmatprep.subr.mxu0 %v220
    %483 = vmatpush1.msra.mxu0 %v219
    %484 = vmatprep.subr.mxu0 %v222
    %485 = vmatpush1.msra.mxu0 %v221
    %486 = vmatprep.subr.mxu0 %v224
    %487 = vmatpush1.msra.mxu0 %v223
    %488 = vmatprep.subr.mxu0 %v226
    %489 = vmatpush1.msra.mxu0 %v225
    %490 = vmatprep.subr.mxu0 %v228
    %491 = vmatpush1.msra.mxu0 %v227
    %492 = vmatprep.subr.mxu0 %v230
    %493 = vmatpush1.msra.mxu0 %v229
    %494 = vmatprep.subr.mxu0 %v232
    %495 = vmatpush1.msra.mxu0 %v231
    %496 = vmatprep.subr.mxu0 %v234
    %497 = vmatpush1.msra.mxu0 %v233
    %498 = vmatprep.subr.mxu0 %v236
    %499 = vmatpush1.msra.mxu0 %v235
    %500 = vmatprep.subr.mxu0 %v238
    %501 = vmatpush1.msra.mxu0 %v237
    %502 = vmatprep.mubr.f32.mxu0 %v106
    %503 = vmatmul.mubr.f32.gmra.mrb[0].mxu0 %v105
    %v504 = vpop.f32.mrb[0].mxu0
    %v505 = vadd.f32 %v434, %v504
    %v506 = vpop.f32.mrb[0].mxu0
    %v507 = vadd.f32 %v436, %v506
    %508 = vdwg.mxu0
    %509 = vmatprep.subr.mxu0 %v240
    %510 = vmatpush1.msra.mxu0 %v239
    %511 = vmatprep.subr.mxu0 %v242
    %512 = vmatpush1.msra.mxu0 %v241
    %513 = vmatprep.subr.mxu0 %v244
    %514 = vmatpush1.msra.mxu0 %v243
    %515 = vmatprep.subr.mxu0 %v246
    %516 = vmatpush1.msra.mxu0 %v245
    %517 = vmatprep.subr.mxu0 %v248
    %518 = vmatpush1.msra.mxu0 %v247
    %519 = vmatprep.subr.mxu0 %v250
    %520 = vmatpush1.msra.mxu0 %v249
    %521 = vmatprep.subr.mxu0 %v252
    %522 = vmatpush1.msra.mxu0 %v251
    %523 = vmatprep.subr.mxu0 %v254
    %524 = vmatpush1.msra.mxu0 %v253
    %525 = vmatprep.subr.mxu0 %v256
    %526 = vmatpush1.msra.mxu0 %v255
    %527 = vmatprep.subr.mxu0 %v258
    %528 = vmatpush1.msra.mxu0 %v257
    %529 = vmatprep.subr.mxu0 %v260
    %530 = vmatpush1.msra.mxu0 %v259
    %531 = vmatprep.subr.mxu0 %v262
    %532 = vmatpush1.msra.mxu0 %v261
    %533 = vmatprep.subr.mxu0 %v264
    %534 = vmatpush1.msra.mxu0 %v263
    %535 = vmatprep.subr.mxu0 %v266
    %536 = vmatpush1.msra.mxu0 %v265
    %537 = vmatprep.subr.mxu0 %v268
    %538 = vmatpush1.msra.mxu0 %v267
    %539 = vmatprep.subr.mxu0 %v270
    %540 = vmatpush1.msra.mxu0 %v269
    %541 = vmatprep.subr.mxu0 %v272
    %542 = vmatpush1.msra.mxu0 %v271
    %543 = vmatprep.subr.mxu0 %v274
    %544 = vmatpush1.msra.mxu0 %v273
    %545 = vmatprep.subr.mxu0 %v276
    %546 = vmatpush1.msra.mxu0 %v275
    %547 = vmatprep.subr.mxu0 %v278
    %548 = vmatpush1.msra.mxu0 %v277
    %549 = vmatprep.subr.mxu0 %v280
    %550 = vmatpush1.msra.mxu0 %v279
    %551 = vmatprep.subr.mxu0 %v282
    %552 = vmatpush1.msra.mxu0 %v281
    %553 = vmatprep.subr.mxu0 %v284
    %554 = vmatpush1.msra.mxu0 %v283
    %555 = vmatprep.subr.mxu0 %v286
    %556 = vmatpush1.msra.mxu0 %v285
    %557 = vmatprep.subr.mxu0 %v288
    %558 = vmatpush1.msra.mxu0 %v287
    %559 = vmatprep.subr.mxu0 %v290
    %560 = vmatpush1.msra.mxu0 %v289
    %561 = vmatprep.subr.mxu0 %v292
    %562 = vmatpush1.msra.mxu0 %v291
    %563 = vmatprep.subr.mxu0 %v294
    %564 = vmatpush1.msra.mxu0 %v293
    %565 = vmatprep.subr.mxu0 %v296
    %566 = vmatpush1.msra.mxu0 %v295
    %567 = vmatprep.subr.mxu0 %v298
    %568 = vmatpush1.msra.mxu0 %v297
    %569 = vmatprep.subr.mxu0 %v300
    %570 = vmatpush1.msra.mxu0 %v299
    %571 = vmatprep.subr.mxu0 %v302
    %572 = vmatpush1.msra.mxu0 %v301
    %573 = vmatprep.mubr.f32.mxu0 %v108
    %574 = vmatmul.mubr.f32.gmra.mrb[0].mxu0 %v107
    %v575 = vpop.f32.mrb[0].mxu0
    %v576 = vadd.f32 %v505, %v575
    %v577 = vpop.f32.mrb[0].mxu0
    %v578 = vadd.f32 %v507, %v577
    %579 = vdwg.mxu0
    %580 = vmatprep.subr.mxu0 %v304
    %581 = vmatpush1.msra.mxu0 %v303
    %582 = vmatprep.subr.mxu0 %v306
    %583 = vmatpush1.msra.mxu0 %v305
    %584 = vmatprep.subr.mxu0 %v308
    %585 = vmatpush1.msra.mxu0 %v307
    %586 = vmatprep.subr.mxu0 %v310
    %587 = vmatpush1.msra.mxu0 %v309
    %588 = vmatprep.subr.mxu0 %v312
    %589 = vmatpush1.msra.mxu0 %v311
    %590 = vmatprep.subr.mxu0 %v314
    %591 = vmatpush1.msra.mxu0 %v313
    %592 = vmatprep.subr.mxu0 %v316
    %593 = vmatpush1.msra.mxu0 %v315
    %594 = vmatprep.subr.mxu0 %v318
    %595 = vmatpush1.msra.mxu0 %v317
    %596 = vmatprep.subr.mxu0 %v320
    %597 = vmatpush1.msra.mxu0 %v319
    %598 = vmatprep.subr.mxu0 %v322
    %599 = vmatpush1.msra.mxu0 %v321
    %600 = vmatprep.subr.mxu0 %v324
    %601 = vmatpush1.msra.mxu0 %v323
    %602 = vmatprep.subr.mxu0 %v326
    %603 = vmatpush1.msra.mxu0 %v325
    %604 = vmatprep.subr.mxu0 %v328
    %605 = vmatpush1.msra.mxu0 %v327
    %606 = vmatprep.subr.mxu0 %v330
    %607 = vmatpush1.msra.mxu0 %v329
    %608 = vmatprep.subr.mxu0 %v332
    %609 = vmatpush1.msra.mxu0 %v331
    %610 = vmatprep.subr.mxu0 %v334
    %611 = vmatpush1.msra.mxu0 %v333
    %612 = vmatprep.subr.mxu0 %v336
    %613 = vmatpush1.msra.mxu0 %v335
    %614 = vmatprep.subr.mxu0 %v338
    %615 = vmatpush1.msra.mxu0 %v337
    %616 = vmatprep.subr.mxu0 %v340
    %617 = vmatpush1.msra.mxu0 %v339
    %618 = vmatprep.subr.mxu0 %v342
    %619 = vmatpush1.msra.mxu0 %v341
    %620 = vmatprep.subr.mxu0 %v344
    %621 = vmatpush1.msra.mxu0 %v343
    %622 = vmatprep.subr.mxu0 %v346
    %623 = vmatpush1.msra.mxu0 %v345
    %624 = vmatprep.subr.mxu0 %v348
    %625 = vmatpush1.msra.mxu0 %v347
    %626 = vmatprep.subr.mxu0 %v350
    %627 = vmatpush1.msra.mxu0 %v349
    %628 = vmatprep.subr.mxu0 %v352
    %629 = vmatpush1.msra.mxu0 %v351
    %630 = vmatprep.subr.mxu0 %v354
    %631 = vmatpush1.msra.mxu0 %v353
    %632 = vmatprep.subr.mxu0 %v356
    %633 = vmatpush1.msra.mxu0 %v355
    %634 = vmatprep.subr.mxu0 %v358
    %635 = vmatpush1.msra.mxu0 %v357
    %636 = vmatprep.subr.mxu0 %v360
    %637 = vmatpush1.msra.mxu0 %v359
    %638 = vmatprep.subr.mxu0 %v362
    %639 = vmatpush1.msra.mxu0 %v361
    %640 = vmatprep.subr.mxu0 %v364
    %641 = vmatpush1.msra.mxu0 %v363
    %642 = vmatprep.subr.mxu0 %v366
    %643 = vmatpush1.msra.mxu0 %v365
    %644 = vmatprep.mubr.f32.mxu0 %v110
    %645 = vmatmul.mubr.f32.gmra.mrb[0].mxu0 %v109
    %v646 = vpop.f32.mrb[0].mxu0
    %v647 = vadd.f32 %v576, %v646
    %v648 = vpop.f32.mrb[0].mxu0
    %v649 = vadd.f32 %v578, %v648
    %650 = vdwg.mxu0
    %v651 = vpack.c.bf16 %v647, %v647
    %v652 = vpack.c.bf16 %v649, %v649
    %v653 = vld [vmem:[#allocation7] sm:$0xff]
    %v654 = vld [vmem:[#allocation7 + $0x8] sm:$0xff]
    %v655 = vld [vmem:[#allocation7 + $0x10] sm:$0xff]
    %v656 = vld [vmem:[#allocation7 + $0x18] sm:$0xff]
    %v657 = vld [vmem:[#allocation7 + $0x20] sm:$0xff]
    %v658 = vld [vmem:[#allocation7 + $0x28] sm:$0xff]
    %v659 = vld [vmem:[#allocation7 + $0x30] sm:$0xff]
    %v660 = vld [vmem:[#allocation7 + $0x38] sm:$0xff]
    %v661 = vld [vmem:[#allocation7 + $0x40] sm:$0xff]
    %v662 = vld [vmem:[#allocation7 + $0x48] sm:$0xff]
    %v663 = vld [vmem:[#allocation7 + $0x50] sm:$0xff]
    %v664 = vld [vmem:[#allocation7 + $0x58] sm:$0xff]
    %v665 = vld [vmem:[#allocation7 + $0x60] sm:$0xff]
    %v666 = vld [vmem:[#allocation7 + $0x68] sm:$0xff]
    %v667 = vld [vmem:[#allocation7 + $0x70] sm:$0xff]
    %v668 = vld [vmem:[#allocation7 + $0x78] sm:$0xff]
    %v669 = vld [vmem:[#allocation7 + $0x80] sm:$0xff]
    %v670 = vld [vmem:[#allocation7 + $0x88] sm:$0xff]
    %v671 = vld [vmem:[#allocation7 + $0x90] sm:$0xff]
    %v672 = vld [vmem:[#allocation7 + $0x98] sm:$0xff]
    %v673 = vld [vmem:[#allocation7 + $0xa0] sm:$0xff]
    %v674 = vld [vmem:[#allocation7 + $0xa8] sm:$0xff]
    %v675 = vld [vmem:[#allocation7 + $0xb0] sm:$0xff]
    %v676 = vld [vmem:[#allocation7 + $0xb8] sm:$0xff]
    %v677 = vld [vmem:[#allocation7 + $0xc0] sm:$0xff]
    %v678 = vld [vmem:[#allocation7 + $0xc8] sm:$0xff]
    %v679 = vld [vmem:[#allocation7 + $0xd0] sm:$0xff]
    %v680 = vld [vmem:[#allocation7 + $0xd8] sm:$0xff]
    %v681 = vld [vmem:[#allocation7 + $0xe0] sm:$0xff]
    %v682 = vld [vmem:[#allocation7 + $0xe8] sm:$0xff]
    %v683 = vld [vmem:[#allocation7 + $0xf0] sm:$0xff]
    %v684 = vld [vmem:[#allocation7 + $0xf8] sm:$0xff]
    %v685 = vld [vmem:[#allocation7 + $0x100] sm:$0xff]
    %v686 = vld [vmem:[#allocation7 + $0x108] sm:$0xff]
    %v687 = vld [vmem:[#allocation7 + $0x110] sm:$0xff]
    %v688 = vld [vmem:[#allocation7 + $0x118] sm:$0xff]
    %v689 = vld [vmem:[#allocation7 + $0x120] sm:$0xff]
    %v690 = vld [vmem:[#allocation7 + $0x128] sm:$0xff]
    %v691 = vld [vmem:[#allocation7 + $0x130] sm:$0xff]
    %v692 = vld [vmem:[#allocation7 + $0x138] sm:$0xff]
    %v693 = vld [vmem:[#allocation7 + $0x140] sm:$0xff]
    %v694 = vld [vmem:[#allocation7 + $0x148] sm:$0xff]
    %v695 = vld [vmem:[#allocation7 + $0x150] sm:$0xff]
    %v696 = vld [vmem:[#allocation7 + $0x158] sm:$0xff]
    %v697 = vld [vmem:[#allocation7 + $0x160] sm:$0xff]
    %v698 = vld [vmem:[#allocation7 + $0x168] sm:$0xff]
    %v699 = vld [vmem:[#allocation7 + $0x170] sm:$0xff]
    %v700 = vld [vmem:[#allocation7 + $0x178] sm:$0xff]
    %v701 = vld [vmem:[#allocation7 + $0x180] sm:$0xff]
    %v702 = vld [vmem:[#allocation7 + $0x188] sm:$0xff]
    %v703 = vld [vmem:[#allocation7 + $0x190] sm:$0xff]
    %v704 = vld [vmem:[#allocation7 + $0x198] sm:$0xff]
    %v705 = vld [vmem:[#allocation7 + $0x1a0] sm:$0xff]
    %v706 = vld [vmem:[#allocation7 + $0x1a8] sm:$0xff]
    %v707 = vld [vmem:[#allocation7 + $0x1b0] sm:$0xff]
    %v708 = vld [vmem:[#allocation7 + $0x1b8] sm:$0xff]
    %v709 = vld [vmem:[#allocation7 + $0x1c0] sm:$0xff]
    %v710 = vld [vmem:[#allocation7 + $0x1c8] sm:$0xff]
    %v711 = vld [vmem:[#allocation7 + $0x1d0] sm:$0xff]
    %v712 = vld [vmem:[#allocation7 + $0x1d8] sm:$0xff]
    %v713 = vld [vmem:[#allocation7 + $0x1e0] sm:$0xff]
    %v714 = vld [vmem:[#allocation7 + $0x1e8] sm:$0xff]
    %v715 = vld [vmem:[#allocation7 + $0x1f0] sm:$0xff]
    %v716 = vld [vmem:[#allocation7 + $0x1f8] sm:$0xff]
    %v717 = vld [vmem:[#allocation7 + $0x200] sm:$0xff]
    %v718 = vld [vmem:[#allocation7 + $0x208] sm:$0xff]
    %v719 = vld [vmem:[#allocation7 + $0x210] sm:$0xff]
    %v720 = vld [vmem:[#allocation7 + $0x218] sm:$0xff]
    %v721 = vld [vmem:[#allocation7 + $0x220] sm:$0xff]
    %v722 = vld [vmem:[#allocation7 + $0x228] sm:$0xff]
    %v723 = vld [vmem:[#allocation7 + $0x230] sm:$0xff]
    %v724 = vld [vmem:[#allocation7 + $0x238] sm:$0xff]
    %v725 = vld [vmem:[#allocation7 + $0x240] sm:$0xff]
    %v726 = vld [vmem:[#allocation7 + $0x248] sm:$0xff]
    %v727 = vld [vmem:[#allocation7 + $0x250] sm:$0xff]
    %v728 = vld [vmem:[#allocation7 + $0x258] sm:$0xff]
    %v729 = vld [vmem:[#allocation7 + $0x260] sm:$0xff]
    %v730 = vld [vmem:[#allocation7 + $0x268] sm:$0xff]
    %v731 = vld [vmem:[#allocation7 + $0x270] sm:$0xff]
    %v732 = vld [vmem:[#allocation7 + $0x278] sm:$0xff]
    %v733 = vld [vmem:[#allocation7 + $0x280] sm:$0xff]
    %v734 = vld [vmem:[#allocation7 + $0x288] sm:$0xff]
    %v735 = vld [vmem:[#allocation7 + $0x290] sm:$0xff]
    %v736 = vld [vmem:[#allocation7 + $0x298] sm:$0xff]
    %v737 = vld [vmem:[#allocation7 + $0x2a0] sm:$0xff]
    %v738 = vld [vmem:[#allocation7 + $0x2a8] sm:$0xff]
    %v739 = vld [vmem:[#allocation7 + $0x2b0] sm:$0xff]
    %v740 = vld [vmem:[#allocation7 + $0x2b8] sm:$0xff]
    %v741 = vld [vmem:[#allocation7 + $0x2c0] sm:$0xff]
    %v742 = vld [vmem:[#allocation7 + $0x2c8] sm:$0xff]
    %v743 = vld [vmem:[#allocation7 + $0x2d0] sm:$0xff]
    %v744 = vld [vmem:[#allocation7 + $0x2d8] sm:$0xff]
    %v745 = vld [vmem:[#allocation7 + $0x2e0] sm:$0xff]
    %v746 = vld [vmem:[#allocation7 + $0x2e8] sm:$0xff]
    %v747 = vld [vmem:[#allocation7 + $0x2f0] sm:$0xff]
    %v748 = vld [vmem:[#allocation7 + $0x2f8] sm:$0xff]
    %v749 = vld [vmem:[#allocation7 + $0x300] sm:$0xff]
    %v750 = vld [vmem:[#allocation7 + $0x308] sm:$0xff]
    %v751 = vld [vmem:[#allocation7 + $0x310] sm:$0xff]
    %v752 = vld [vmem:[#allocation7 + $0x318] sm:$0xff]
    %v753 = vld [vmem:[#allocation7 + $0x320] sm:$0xff]
    %v754 = vld [vmem:[#allocation7 + $0x328] sm:$0xff]
    %v755 = vld [vmem:[#allocation7 + $0x330] sm:$0xff]
    %v756 = vld [vmem:[#allocation7 + $0x338] sm:$0xff]
    %v757 = vld [vmem:[#allocation7 + $0x340] sm:$0xff]
    %v758 = vld [vmem:[#allocation7 + $0x348] sm:$0xff]
    %v759 = vld [vmem:[#allocation7 + $0x350] sm:$0xff]
    %v760 = vld [vmem:[#allocation7 + $0x358] sm:$0xff]
    %v761 = vld [vmem:[#allocation7 + $0x360] sm:$0xff]
    %v762 = vld [vmem:[#allocation7 + $0x368] sm:$0xff]
    %v763 = vld [vmem:[#allocation7 + $0x370] sm:$0xff]
    %v764 = vld [vmem:[#allocation7 + $0x378] sm:$0xff]
    %v765 = vld [vmem:[#allocation7 + $0x380] sm:$0xff]
    %v766 = vld [vmem:[#allocation7 + $0x388] sm:$0xff]
    %v767 = vld [vmem:[#allocation7 + $0x390] sm:$0xff]
    %v768 = vld [vmem:[#allocation7 + $0x398] sm:$0xff]
    %v769 = vld [vmem:[#allocation7 + $0x3a0] sm:$0xff]
    %v770 = vld [vmem:[#allocation7 + $0x3a8] sm:$0xff]
    %v771 = vld [vmem:[#allocation7 + $0x3b0] sm:$0xff]
    %v772 = vld [vmem:[#allocation7 + $0x3b8] sm:$0xff]
    %v773 = vld [vmem:[#allocation7 + $0x3c0] sm:$0xff]
    %v774 = vld [vmem:[#allocation7 + $0x3c8] sm:$0xff]
    %v775 = vld [vmem:[#allocation7 + $0x3d0] sm:$0xff]
    %v776 = vld [vmem:[#allocation7 + $0x3d8] sm:$0xff]
    %v777 = vld [vmem:[#allocation7 + $0x3e0] sm:$0xff]
    %v778 = vld [vmem:[#allocation7 + $0x3e8] sm:$0xff]
    %v779 = vld [vmem:[#allocation7 + $0x3f0] sm:$0xff]
    %v780 = vld [vmem:[#allocation7 + $0x3f8] sm:$0xff]
    %s781 = scalar_lea.vmem [#allocation2], 64
    %v782 = vld [vmem:[%s781] sm:$0xff]
    %v783 = vld [vmem:[%s781 + $0x8] sm:$0xff]
    %v784 = vld [vmem:[%s781 + $0x10] sm:$0xff]
    %v785 = vld [vmem:[%s781 + $0x18] sm:$0xff]
    %v786 = vld [vmem:[%s781 + $0x20] sm:$0xff]
    %v787 = vld [vmem:[%s781 + $0x28] sm:$0xff]
    %v788 = vld [vmem:[%s781 + $0x30] sm:$0xff]
    %v789 = vld [vmem:[%s781 + $0x38] sm:$0xff]
    %790 = vmatprep.subr.mxu0 %v112
    %791 = vmatpush1.msra.mxu0 %v111
    %792 = vmatprep.subr.mxu0 %v114
    %793 = vmatpush1.msra.mxu0 %v113
    %794 = vmatprep.subr.mxu0 %v116
    %795 = vmatpush1.msra.mxu0 %v115
    %796 = vmatprep.subr.mxu0 %v118
    %797 = vmatpush1.msra.mxu0 %v117
    %798 = vmatprep.subr.mxu0 %v120
    %799 = vmatpush1.msra.mxu0 %v119
    %800 = vmatprep.subr.mxu0 %v122
    %801 = vmatpush1.msra.mxu0 %v121
    %802 = vmatprep.subr.mxu0 %v124
    %803 = vmatpush1.msra.mxu0 %v123
    %804 = vmatprep.subr.mxu0 %v126
    %805 = vmatpush1.msra.mxu0 %v125
    %806 = vmatprep.subr.mxu0 %v128
    %807 = vmatpush1.msra.mxu0 %v127
    %808 = vmatprep.subr.mxu0 %v130
    %809 = vmatpush1.msra.mxu0 %v129
    %810 = vmatprep.subr.mxu0 %v132
    %811 = vmatpush1.msra.mxu0 %v131
    %812 = vmatprep.subr.mxu0 %v134
    %813 = vmatpush1.msra.mxu0 %v133
    %814 = vmatprep.subr.mxu0 %v136
    %815 = vmatpush1.msra.mxu0 %v135
    %816 = vmatprep.subr.mxu0 %v138
    %817 = vmatpush1.msra.mxu0 %v137
    %818 = vmatprep.subr.mxu0 %v140
    %819 = vmatpush1.msra.mxu0 %v139
    %820 = vmatprep.subr.mxu0 %v142
    %821 = vmatpush1.msra.mxu0 %v141
    %822 = vmatprep.subr.mxu0 %v144
    %823 = vmatpush1.msra.mxu0 %v143
    %824 = vmatprep.subr.mxu0 %v146
    %825 = vmatpush1.msra.mxu0 %v145
    %826 = vmatprep.subr.mxu0 %v148
    %827 = vmatpush1.msra.mxu0 %v147
    %828 = vmatprep.subr.mxu0 %v150
    %829 = vmatpush1.msra.mxu0 %v149
    %830 = vmatprep.subr.mxu0 %v152
    %831 = vmatpush1.msra.mxu0 %v151
    %832 = vmatprep.subr.mxu0 %v154
    %833 = vmatpush1.msra.mxu0 %v153
    %834 = vmatprep.subr.mxu0 %v156
    %835 = vmatpush1.msra.mxu0 %v155
    %836 = vmatprep.subr.mxu0 %v158
    %837 = vmatpush1.msra.mxu0 %v157
    %838 = vmatprep.subr.mxu0 %v160
    %839 = vmatpush1.msra.mxu0 %v159
    %840 = vmatprep.subr.mxu0 %v162
    %841 = vmatpush1.msra.mxu0 %v161
    %842 = vmatprep.subr.mxu0 %v164
    %843 = vmatpush1.msra.mxu0 %v163
    %844 = vmatprep.subr.mxu0 %v166
    %845 = vmatpush1.msra.mxu0 %v165
    %846 = vmatprep.subr.mxu0 %v168
    %847 = vmatpush1.msra.mxu0 %v167
    %848 = vmatprep.subr.mxu0 %v170
    %849 = vmatpush1.msra.mxu0 %v169
    %850 = vmatprep.subr.mxu0 %v172
    %851 = vmatpush1.msra.mxu0 %v171
    %852 = vmatprep.subr.mxu0 %v174
    %853 = vmatpush1.msra.mxu0 %v173
    %854 = vmatprep.mubr.f32.mxu0 %v783
    %855 = vmatmul.mubr.f32.gmra.mrb[0].mxu0 %v782
    %v856 = vpop.f32.mrb[0].mxu0
    %v857 = vadd.f32 0.0, %v856
    %v858 = vpop.f32.mrb[0].mxu0
    %v859 = vadd.f32 0.0, %v858
    %860 = vdwg.mxu0
    %861 = vmatprep.subr.mxu0 %v176
    %862 = vmatpush1.msra.mxu0 %v175
    %863 = vmatprep.subr.mxu0 %v178
    %864 = vmatpush1.msra.mxu0 %v177
    %865 = vmatprep.subr.mxu0 %v180
    %866 = vmatpush1.msra.mxu0 %v179
    %867 = vmatprep.subr.mxu0 %v182
    %868 = vmatpush1.msra.mxu0 %v181
    %869 = vmatprep.subr.mxu0 %v184
    %870 = vmatpush1.msra.mxu0 %v183
    %871 = vmatprep.subr.mxu0 %v186
    %872 = vmatpush1.msra.mxu0 %v185
    %873 = vmatprep.subr.mxu0 %v188
    %874 = vmatpush1.msra.mxu0 %v187
    %875 = vmatprep.subr.mxu0 %v190
    %876 = vmatpush1.msra.mxu0 %v189
    %877 = vmatprep.subr.mxu0 %v192
    %878 = vmatpush1.msra.mxu0 %v191
    %879 = vmatprep.subr.mxu0 %v194
    %880 = vmatpush1.msra.mxu0 %v193
    %881 = vmatprep.subr.mxu0 %v196
    %882 = vmatpush1.msra.mxu0 %v195
    %883 = vmatprep.subr.mxu0 %v198
    %884 = vmatpush1.msra.mxu0 %v197
    %885 = vmatprep.subr.mxu0 %v200
    %886 = vmatpush1.msra.mxu0 %v199
    %887 = vmatprep.subr.mxu0 %v202
    %888 = vmatpush1.msra.mxu0 %v201
    %889 = vmatprep.subr.mxu0 %v204
    %890 = vmatpush1.msra.mxu0 %v203
    %891 = vmatprep.subr.mxu0 %v206
    %892 = vmatpush1.msra.mxu0 %v205
    %893 = vmatprep.subr.mxu0 %v208
    %894 = vmatpush1.msra.mxu0 %v207
    %895 = vmatprep.subr.mxu0 %v210
    %896 = vmatpush1.msra.mxu0 %v209
    %897 = vmatprep.subr.mxu0 %v212
    %898 = vmatpush1.msra.mxu0 %v211
    %899 = vmatprep.subr.mxu0 %v214
    %900 = vmatpush1.msra.mxu0 %v213
    %901 = vmatprep.subr.mxu0 %v216
    %902 = vmatpush1.msra.mxu0 %v215
    %903 = vmatprep.subr.mxu0 %v218
    %904 = vmatpush1.msra.mxu0 %v217
    %905 = vmatprep.subr.mxu0 %v220
    %906 = vmatpush1.msra.mxu0 %v219
    %907 = vmatprep.subr.mxu0 %v222
    %908 = vmatpush1.msra.mxu0 %v221
    %909 = vmatprep.subr.mxu0 %v224
    %910 = vmatpush1.msra.mxu0 %v223
    %911 = vmatprep.subr.mxu0 %v226
    %912 = vmatpush1.msra.mxu0 %v225
    %913 = vmatprep.subr.mxu0 %v228
    %914 = vmatpush1.msra.mxu0 %v227
    %915 = vmatprep.subr.mxu0 %v230
    %916 = vmatpush1.msra.mxu0 %v229
    %917 = vmatprep.subr.mxu0 %v232
    %918 = vmatpush1.msra.mxu0 %v231
    %919 = vmatprep.subr.mxu0 %v234
    %920 = vmatpush1.msra.mxu0 %v233
    %921 = vmatprep.subr.mxu0 %v236
    %922 = vmatpush1.msra.mxu0 %v235
    %923 = vmatprep.subr.mxu0 %v238
    %924 = vmatpush1.msra.mxu0 %v237
    %925 = vmatprep.mubr.f32.mxu0 %v785
    %926 = vmatmul.mubr.f32.gmra.mrb[0].mxu0 %v784
    %v927 = vpop.f32.mrb[0].mxu0
    %v928 = vadd.f32 %v857, %v927
    %v929 = vpop.f32.mrb[0].mxu0
    %v930 = vadd.f32 %v859, %v929
    %931 = vdwg.mxu0
    %932 = vmatprep.subr.mxu0 %v240
    %933 = vmatpush1.msra.mxu0 %v239
    %934 = vmatprep.subr.mxu0 %v242
    %935 = vmatpush1.msra.mxu0 %v241
    %936 = vmatprep.subr.mxu0 %v244
    %937 = vmatpush1.msra.mxu0 %v243
    %938 = vmatprep.subr.mxu0 %v246
    %939 = vmatpush1.msra.mxu0 %v245
    %940 = vmatprep.subr.mxu0 %v248
    %941 = vmatpush1.msra.mxu0 %v247
    %942 = vmatprep.subr.mxu0 %v250
    %943 = vmatpush1.msra.mxu0 %v249
    %944 = vmatprep.subr.mxu0 %v252
    %945 = vmatpush1.msra.mxu0 %v251
    %946 = vmatprep.subr.mxu0 %v254
    %947 = vmatpush1.msra.mxu0 %v253
    %948 = vmatprep.subr.mxu0 %v256
    %949 = vmatpush1.msra.mxu0 %v255
    %950 = vmatprep.subr.mxu0 %v258
    %951 = vmatpush1.msra.mxu0 %v257
    %952 = vmatprep.subr.mxu0 %v260
    %953 = vmatpush1.msra.mxu0 %v259
    %954 = vmatprep.subr.mxu0 %v262
    %955 = vmatpush1.msra.mxu0 %v261
    %956 = vmatprep.subr.mxu0 %v264
    %957 = vmatpush1.msra.mxu0 %v263
    %958 = vmatprep.subr.mxu0 %v266
    %959 = vmatpush1.msra.mxu0 %v265
    %960 = vmatprep.subr.mxu0 %v268
    %961 = vmatpush1.msra.mxu0 %v267
    %962 = vmatprep.subr.mxu0 %v270
    %963 = vmatpush1.msra.mxu0 %v269
    %964 = vmatprep.subr.mxu0 %v272
    %965 = vmatpush1.msra.mxu0 %v271
    %966 = vmatprep.subr.mxu0 %v274
    %967 = vmatpush1.msra.mxu0 %v273
    %968 = vmatprep.subr.mxu0 %v276
    %969 = vmatpush1.msra.mxu0 %v275
    %970 = vmatprep.subr.mxu0 %v278
    %971 = vmatpush1.msra.mxu0 %v277
    %972 = vmatprep.subr.mxu0 %v280
    %973 = vmatpush1.msra.mxu0 %v279
    %974 = vmatprep.subr.mxu0 %v282
    %975 = vmatpush1.msra.mxu0 %v281
    %976 = vmatprep.subr.mxu0 %v284
    %977 = vmatpush1.msra.mxu0 %v283
    %978 = vmatprep.subr.mxu0 %v286
    %979 = vmatpush1.msra.mxu0 %v285
    %980 = vmatprep.subr.mxu0 %v288
    %981 = vmatpush1.msra.mxu0 %v287
    %982 = vmatprep.subr.mxu0 %v290
    %983 = vmatpush1.msra.mxu0 %v289
    %984 = vmatprep.subr.mxu0 %v292
    %985 = vmatpush1.msra.mxu0 %v291
    %986 = vmatprep.subr.mxu0 %v294
    %987 = vmatpush1.msra.mxu0 %v293
    %988 = vmatprep.subr.mxu0 %v296
    %989 = vmatpush1.msra.mxu0 %v295
    %990 = vmatprep.subr.mxu0 %v298
    %991 = vmatpush1.msra.mxu0 %v297
    %992 = vmatprep.subr.mxu0 %v300
    %993 = vmatpush1.msra.mxu0 %v299
    %994 = vmatprep.subr.mxu0 %v302
    %995 = vmatpush1.msra.mxu0 %v301
    %996 = vmatprep.mubr.f32.mxu0 %v787
    %997 = vmatmul.mubr.f32.gmra.mrb[0].mxu0 %v786
    %v998 = vpop.f32.mrb[0].mxu0
    %v999 = vadd.f32 %v928, %v998
    %v1000 = vpop.f32.mrb[0].mxu0
    %v1001 = vadd.f32 %v930, %v1000
    %1002 = vdwg.mxu0
    %1003 = vmatprep.subr.mxu0 %v304
    %1004 = vmatpush1.msra.mxu0 %v303
    %1005 = vmatprep.subr.mxu0 %v306
    %1006 = vmatpush1.msra.mxu0 %v305
    %1007 = vmatprep.subr.mxu0 %v308
    %1008 = vmatpush1.msra.mxu0 %v307
    %1009 = vmatprep.subr.mxu0 %v310
    %1010 = vmatpush1.msra.mxu0 %v309
    %1011 = vmatprep.subr.mxu0 %v312
    %1012 = vmatpush1.msra.mxu0 %v311
    %1013 = vmatprep.subr.mxu0 %v314
    %1014 = vmatpush1.msra.mxu0 %v313
    %1015 = vmatprep.subr.mxu0 %v316
    %1016 = vmatpush1.msra.mxu0 %v315
    %1017 = vmatprep.subr.mxu0 %v318
    %1018 = vmatpush1.msra.mxu0 %v317
    %1019 = vmatprep.subr.mxu0 %v320
    %1020 = vmatpush1.msra.mxu0 %v319
    %1021 = vmatprep.subr.mxu0 %v322
    %1022 = vmatpush1.msra.mxu0 %v321
    %1023 = vmatprep.subr.mxu0 %v324
    %1024 = vmatpush1.msra.mxu0 %v323
    %1025 = vmatprep.subr.mxu0 %v326
    %1026 = vmatpush1.msra.mxu0 %v325
    %1027 = vmatprep.subr.mxu0 %v328
    %1028 = vmatpush1.msra.mxu0 %v327
    %1029 = vmatprep.subr.mxu0 %v330
    %1030 = vmatpush1.msra.mxu0 %v329
    %1031 = vmatprep.subr.mxu0 %v332
    %1032 = vmatpush1.msra.mxu0 %v331
    %1033 = vmatprep.subr.mxu0 %v334
    %1034 = vmatpush1.msra.mxu0 %v333
    %1035 = vmatprep.subr.mxu0 %v336
    %1036 = vmatpush1.msra.mxu0 %v335
    %1037 = vmatprep.subr.mxu0 %v338
    %1038 = vmatpush1.msra.mxu0 %v337
    %1039 = vmatprep.subr.mxu0 %v340
    %1040 = vmatpush1.msra.mxu0 %v339
    %1041 = vmatprep.subr.mxu0 %v342
    %1042 = vmatpush1.msra.mxu0 %v341
    %1043 = vmatprep.subr.mxu0 %v344
    %1044 = vmatpush1.msra.mxu0 %v343
    %1045 = vmatprep.subr.mxu0 %v346
    %1046 = vmatpush1.msra.mxu0 %v345
    %1047 = vmatprep.subr.mxu0 %v348
    %1048 = vmatpush1.msra.mxu0 %v347
    %1049 = vmatprep.subr.mxu0 %v350
    %1050 = vmatpush1.msra.mxu0 %v349
    %1051 = vmatprep.subr.mxu0 %v352
    %1052 = vmatpush1.msra.mxu0 %v351
    %1053 = vmatprep.subr.mxu0 %v354
    %1054 = vmatpush1.msra.mxu0 %v353
    %1055 = vmatprep.subr.mxu0 %v356
    %1056 = vmatpush1.msra.mxu0 %v355
    %1057 = vmatprep.subr.mxu0 %v358
    %1058 = vmatpush1.msra.mxu0 %v357
    %1059 = vmatprep.subr.mxu0 %v360
    %1060 = vmatpush1.msra.mxu0 %v359
    %1061 = vmatprep.subr.mxu0 %v362
    %1062 = vmatpush1.msra.mxu0 %v361
    %1063 = vmatprep.subr.mxu0 %v364
    %1064 = vmatpush1.msra.mxu0 %v363
    %1065 = vmatprep.subr.mxu0 %v366
    %1066 = vmatpush1.msra.mxu0 %v365
    %1067 = vmatprep.mubr.f32.mxu0 %v789
    %1068 = vmatmul.mubr.f32.gmra.mrb[0].mxu0 %v788
    %v1069 = vpop.f32.mrb[0].mxu0
    %v1070 = vadd.f32 %v999, %v1069
    %v1071 = vpop.f32.mrb[0].mxu0
    %v1072 = vadd.f32 %v1001, %v1071
    %1073 = vdwg.mxu0
    %v1074 = vpack.c.bf16 %v1070, %v1070
    %v1075 = vpack.c.bf16 %v1072, %v1072
    %s1076 = scalar_lea.vmem [#allocation7], 1024
    %v1077 = vld [vmem:[%s1076] sm:$0xff]
    %v1078 = vld [vmem:[%s1076 + $0x8] sm:$0xff]
    %v1079 = vld [vmem:[%s1076 + $0x10] sm:$0xff]
    %v1080 = vld [vmem:[%s1076 + $0x18] sm:$0xff]
    %v1081 = vld [vmem:[%s1076 + $0x20] sm:$0xff]
    %v1082 = vld [vmem:[%s1076 + $0x28] sm:$0xff]
    %v1083 = vld [vmem:[%s1076 + $0x30] sm:$0xff]
    %v1084 = vld [vmem:[%s1076 + $0x38] sm:$0xff]
    %v1085 = vld [vmem:[%s1076 + $0x40] sm:$0xff]
    %v1086 = vld [vmem:[%s1076 + $0x48] sm:$0xff]
    %v1087 = vld [vmem:[%s1076 + $0x50] sm:$0xff]
    %v1088 = vld [vmem:[%s1076 + $0x58] sm:$0xff]
    %v1089 = vld [vmem:[%s1076 + $0x60] sm:$0xff]
    %v1090 = vld [vmem:[%s1076 + $0x68] sm:$0xff]
    %v1091 = vld [vmem:[%s1076 + $0x70] sm:$0xff]
    %v1092 = vld [vmem:[%s1076 + $0x78] sm:$0xff]
    %v1093 = vld [vmem:[%s1076 + $0x80] sm:$0xff]
    %v1094 = vld [vmem:[%s1076 + $0x88] sm:$0xff]
    %v1095 = vld [vmem:[%s1076 + $0x90] sm:$0xff]
    %v1096 = vld [vmem:[%s1076 + $0x98] sm:$0xff]
    %v1097 = vld [vmem:[%s1076 + $0xa0] sm:$0xff]
    %v1098 = vld [vmem:[%s1076 + $0xa8] sm:$0xff]
    %v1099 = vld [vmem:[%s1076 + $0xb0] sm:$0xff]
    %v1100 = vld [vmem:[%s1076 + $0xb8] sm:$0xff]
    %v1101 = vld [vmem:[%s1076 + $0xc0] sm:$0xff]
    %v1102 = vld [vmem:[%s1076 + $0xc8] sm:$0xff]
    %v1103 = vld [vmem:[%s1076 + $0xd0] sm:$0xff]
    %v1104 = vld [vmem:[%s1076 + $0xd8] sm:$0xff]
    %v1105 = vld [vmem:[%s1076 + $0xe0] sm:$0xff]
    %v1106 = vld [vmem:[%s1076 + $0xe8] sm:$0xff]
    %v1107 = vld [vmem:[%s1076 + $0xf0] sm:$0xff]
    %v1108 = vld [vmem:[%s1076 + $0xf8] sm:$0xff]
    %v1109 = vld [vmem:[%s1076 + $0x100] sm:$0xff]
    %v1110 = vld [vmem:[%s1076 + $0x108] sm:$0xff]
    %v1111 = vld [vmem:[%s1076 + $0x110] sm:$0xff]
    %v1112 = vld [vmem:[%s1076 + $0x118] sm:$0xff]
    %v1113 = vld [vmem:[%s1076 + $0x120] sm:$0xff]
    %v1114 = vld [vmem:[%s1076 + $0x128] sm:$0xff]
    %v1115 = vld [vmem:[%s1076 + $0x130] sm:$0xff]
    %v1116 = vld [vmem:[%s1076 + $0x138] sm:$0xff]
    %v1117 = vld [vmem:[%s1076 + $0x140] sm:$0xff]
    %v1118 = vld [vmem:[%s1076 + $0x148] sm:$0xff]
    %v1119 = vld [vmem:[%s1076 + $0x150] sm:$0xff]
    %v1120 = vld [vmem:[%s1076 + $0x158] sm:$0xff]
    %v1121 = vld [vmem:[%s1076 + $0x160] sm:$0xff]
    %v1122 = vld [vmem:[%s1076 + $0x168] sm:$0xff]
    %v1123 = vld [vmem:[%s1076 + $0x170] sm:$0xff]
    %v1124 = vld [vmem:[%s1076 + $0x178] sm:$0xff]
    %v1125 = vld [vmem:[%s1076 + $0x180] sm:$0xff]
    %v1126 = vld [vmem:[%s1076 + $0x188] sm:$0xff]
    %v1127 = vld [vmem:[%s1076 + $0x190] sm:$0xff]
    %v1128 = vld [vmem:[%s1076 + $0x198] sm:$0xff]
    %v1129 = vld [vmem:[%s1076 + $0x1a0] sm:$0xff]
    %v1130 = vld [vmem:[%s1076 + $0x1a8] sm:$0xff]
    %v1131 = vld [vmem:[%s1076 + $0x1b0] sm:$0xff]
    %v1132 = vld [vmem:[%s1076 + $0x1b8] sm:$0xff]
    %v1133 = vld [vmem:[%s1076 + $0x1c0] sm:$0xff]
    %v1134 = vld [vmem:[%s1076 + $0x1c8] sm:$0xff]
    %v1135 = vld [vmem:[%s1076 + $0x1d0] sm:$0xff]
    %v1136 = vld [vmem:[%s1076 + $0x1d8] sm:$0xff]
    %v1137 = vld [vmem:[%s1076 + $0x1e0] sm:$0xff]
    %v1138 = vld [vmem:[%s1076 + $0x1e8] sm:$0xff]
    %v1139 = vld [vmem:[%s1076 + $0x1f0] sm:$0xff]
    %v1140 = vld [vmem:[%s1076 + $0x1f8] sm:$0xff]
    %v1141 = vld [vmem:[%s1076 + $0x200] sm:$0xff]
    %v1142 = vld [vmem:[%s1076 + $0x208] sm:$0xff]
    %v1143 = vld [vmem:[%s1076 + $0x210] sm:$0xff]
    %v1144 = vld [vmem:[%s1076 + $0x218] sm:$0xff]
    %v1145 = vld [vmem:[%s1076 + $0x220] sm:$0xff]
    %v1146 = vld [vmem:[%s1076 + $0x228] sm:$0xff]
    %v1147 = vld [vmem:[%s1076 + $0x230] sm:$0xff]
    %v1148 = vld [vmem:[%s1076 + $0x238] sm:$0xff]
    %v1149 = vld [vmem:[%s1076 + $0x240] sm:$0xff]
    %v1150 = vld [vmem:[%s1076 + $0x248] sm:$0xff]
    %v1151 = vld [vmem:[%s1076 + $0x250] sm:$0xff]
    %v1152 = vld [vmem:[%s1076 + $0x258] sm:$0xff]
    %v1153 = vld [vmem:[%s1076 + $0x260] sm:$0xff]
    %v1154 = vld [vmem:[%s1076 + $0x268] sm:$0xff]
    %v1155 = vld [vmem:[%s1076 + $0x270] sm:$0xff]
    %v1156 = vld [vmem:[%s1076 + $0x278] sm:$0xff]
    %v1157 = vld [vmem:[%s1076 + $0x280] sm:$0xff]
    %v1158 = vld [vmem:[%s1076 + $0x288] sm:$0xff]
    %v1159 = vld [vmem:[%s1076 + $0x290] sm:$0xff]
    %v1160 = vld [vmem:[%s1076 + $0x298] sm:$0xff]
    %v1161 = vld [vmem:[%s1076 + $0x2a0] sm:$0xff]
    %v1162 = vld [vmem:[%s1076 + $0x2a8] sm:$0xff]
    %v1163 = vld [vmem:[%s1076 + $0x2b0] sm:$0xff]
    %v1164 = vld [vmem:[%s1076 + $0x2b8] sm:$0xff]
    %v1165 = vld [vmem:[%s1076 + $0x2c0] sm:$0xff]
    %v1166 = vld [vmem:[%s1076 + $0x2c8] sm:$0xff]
    %v1167 = vld [vmem:[%s1076 + $0x2d0] sm:$0xff]
    %v1168 = vld [vmem:[%s1076 + $0x2d8] sm:$0xff]
    %v1169 = vld [vmem:[%s1076 + $0x2e0] sm:$0xff]
    %v1170 = vld [vmem:[%s1076 + $0x2e8] sm:$0xff]
    %v1171 = vld [vmem:[%s1076 + $0x2f0] sm:$0xff]
    %v1172 = vld [vmem:[%s1076 + $0x2f8] sm:$0xff]
    %v1173 = vld [vmem:[%s1076 + $0x300] sm:$0xff]
    %v1174 = vld [vmem:[%s1076 + $0x308] sm:$0xff]
    %v1175 = vld [vmem:[%s1076 + $0x310] sm:$0xff]
    %v1176 = vld [vmem:[%s1076 + $0x318] sm:$0xff]
    %v1177 = vld [vmem:[%s1076 + $0x320] sm:$0xff]
    %v1178 = vld [vmem:[%s1076 + $0x328] sm:$0xff]
    %v1179 = vld [vmem:[%s1076 + $0x330] sm:$0xff]
    %v1180 = vld [vmem:[%s1076 + $0x338] sm:$0xff]
    %v1181 = vld [vmem:[%s1076 + $0x340] sm:$0xff]
    %v1182 = vld [vmem:[%s1076 + $0x348] sm:$0xff]
    %v1183 = vld [vmem:[%s1076 + $0x350] sm:$0xff]
    %v1184 = vld [vmem:[%s1076 + $0x358] sm:$0xff]
    %v1185 = vld [vmem:[%s1076 + $0x360] sm:$0xff]
    %v1186 = vld [vmem:[%s1076 + $0x368] sm:$0xff]
    %v1187 = vld [vmem:[%s1076 + $0x370] sm:$0xff]
    %v1188 = vld [vmem:[%s1076 + $0x378] sm:$0xff]
    %v1189 = vld [vmem:[%s1076 + $0x380] sm:$0xff]
    %v1190 = vld [vmem:[%s1076 + $0x388] sm:$0xff]
    %v1191 = vld [vmem:[%s1076 + $0x390] sm:$0xff]
    %v1192 = vld [vmem:[%s1076 + $0x398] sm:$0xff]
    %v1193 = vld [vmem:[%s1076 + $0x3a0] sm:$0xff]
    %v1194 = vld [vmem:[%s1076 + $0x3a8] sm:$0xff]
    %v1195 = vld [vmem:[%s1076 + $0x3b0] sm:$0xff]
    %v1196 = vld [vmem:[%s1076 + $0x3b8] sm:$0xff]
    %v1197 = vld [vmem:[%s1076 + $0x3c0] sm:$0xff]
    %v1198 = vld [vmem:[%s1076 + $0x3c8] sm:$0xff]
    %v1199 = vld [vmem:[%s1076 + $0x3d0] sm:$0xff]
    %v1200 = vld [vmem:[%s1076 + $0x3d8] sm:$0xff]
    %v1201 = vld [vmem:[%s1076 + $0x3e0] sm:$0xff]
    %v1202 = vld [vmem:[%s1076 + $0x3e8] sm:$0xff]
    %v1203 = vld [vmem:[%s1076 + $0x3f0] sm:$0xff]
    %v1204 = vld [vmem:[%s1076 + $0x3f8] sm:$0xff]
    %v1333 = vunpack.c.l.b16 %v1077
    %v1334 = vunpack.c.h.b16 %v1077
    %v1335 = vunpack.c.l.b16 %v1078
    %v1336 = vunpack.c.h.b16 %v1078
    %v1337 = vunpack.c.l.b16 %v1079
    %v1338 = vunpack.c.h.b16 %v1079
    %v1339 = vunpack.c.l.b16 %v1080
    %v1340 = vunpack.c.h.b16 %v1080
    %v1341 = vunpack.c.l.b16 %v1081
    %v1342 = vunpack.c.h.b16 %v1081
    %v1343 = vunpack.c.l.b16 %v1082
    %v1344 = vunpack.c.h.b16 %v1082
    %v1345 = vunpack.c.l.b16 %v1083
    %v1346 = vunpack.c.h.b16 %v1083
    %v1347 = vunpack.c.l.b16 %v1084
    %v1348 = vunpack.c.h.b16 %v1084
    %v1349 = vunpack.c.l.b16 %v1085
    %v1350 = vunpack.c.h.b16 %v1085
    %v1351 = vunpack.c.l.b16 %v1086
    %v1352 = vunpack.c.h.b16 %v1086
    %v1353 = vunpack.c.l.b16 %v1087
    %v1354 = vunpack.c.h.b16 %v1087
    %v1355 = vunpack.c.l.b16 %v1088
    %v1356 = vunpack.c.h.b16 %v1088
    %v1357 = vunpack.c.l.b16 %v1089
    %v1358 = vunpack.c.h.b16 %v1089
    %v1359 = vunpack.c.l.b16 %v1090
    %v1360 = vunpack.c.h.b16 %v1090
    %v1361 = vunpack.c.l.b16 %v1091
    %v1362 = vunpack.c.h.b16 %v1091
    %v1363 = vunpack.c.l.b16 %v1092
    %v1364 = vunpack.c.h.b16 %v1092
    %v1365 = vunpack.c.l.b16 %v1093
    %v1366 = vunpack.c.h.b16 %v1093
    %v1367 = vunpack.c.l.b16 %v1094
    %v1368 = vunpack.c.h.b16 %v1094
    %v1369 = vunpack.c.l.b16 %v1095
    %v1370 = vunpack.c.h.b16 %v1095
    %v1371 = vunpack.c.l.b16 %v1096
    %v1372 = vunpack.c.h.b16 %v1096
    %v1373 = vunpack.c.l.b16 %v1097
    %v1374 = vunpack.c.h.b16 %v1097
    %v1375 = vunpack.c.l.b16 %v1098
    %v1376 = vunpack.c.h.b16 %v1098
    %v1377 = vunpack.c.l.b16 %v1099
    %v1378 = vunpack.c.h.b16 %v1099
    %v1379 = vunpack.c.l.b16 %v1100
    %v1380 = vunpack.c.h.b16 %v1100
    %v1381 = vunpack.c.l.b16 %v1101
    %v1382 = vunpack.c.h.b16 %v1101
    %v1383 = vunpack.c.l.b16 %v1102
    %v1384 = vunpack.c.h.b16 %v1102
    %v1385 = vunpack.c.l.b16 %v1103
    %v1386 = vunpack.c.h.b16 %v1103
    %v1387 = vunpack.c.l.b16 %v1104
    %v1388 = vunpack.c.h.b16 %v1104
    %v1389 = vunpack.c.l.b16 %v1105
    %v1390 = vunpack.c.h.b16 %v1105
    %v1391 = vunpack.c.l.b16 %v1106
    %v1392 = vunpack.c.h.b16 %v1106
    %v1393 = vunpack.c.l.b16 %v1107
    %v1394 = vunpack.c.h.b16 %v1107
    %v1395 = vunpack.c.l.b16 %v1108
    %v1396 = vunpack.c.h.b16 %v1108
    %v1397 = vunpack.c.l.b16 %v1109
    %v1398 = vunpack.c.h.b16 %v1109
    %v1399 = vunpack.c.l.b16 %v1110
    %v1400 = vunpack.c.h.b16 %v1110
    %v1401 = vunpack.c.l.b16 %v1111
    %v1402 = vunpack.c.h.b16 %v1111
    %v1403 = vunpack.c.l.b16 %v1112
    %v1404 = vunpack.c.h.b16 %v1112
    %v1405 = vunpack.c.l.b16 %v1113
    %v1406 = vunpack.c.h.b16 %v1113
    %v1407 = vunpack.c.l.b16 %v1114
    %v1408 = vunpack.c.h.b16 %v1114
    %v1409 = vunpack.c.l.b16 %v1115
    %v1410 = vunpack.c.h.b16 %v1115
    %v1411 = vunpack.c.l.b16 %v1116
    %v1412 = vunpack.c.h.b16 %v1116
    %v1413 = vunpack.c.l.b16 %v1117
    %v1414 = vunpack.c.h.b16 %v1117
    %v1415 = vunpack.c.l.b16 %v1118
    %v1416 = vunpack.c.h.b16 %v1118
    %v1417 = vunpack.c.l.b16 %v1119
    %v1418 = vunpack.c.h.b16 %v1119
    %v1419 = vunpack.c.l.b16 %v1120
    %v1420 = vunpack.c.h.b16 %v1120
    %v1421 = vunpack.c.l.b16 %v1121
    %v1422 = vunpack.c.h.b16 %v1121
    %v1423 = vunpack.c.l.b16 %v1122
    %v1424 = vunpack.c.h.b16 %v1122
    %v1425 = vunpack.c.l.b16 %v1123
    %v1426 = vunpack.c.h.b16 %v1123
    %v1427 = vunpack.c.l.b16 %v1124
    %v1428 = vunpack.c.h.b16 %v1124
    %v1429 = vunpack.c.l.b16 %v1125
    %v1430 = vunpack.c.h.b16 %v1125
    %v1431 = vunpack.c.l.b16 %v1126
    %v1432 = vunpack.c.h.b16 %v1126
    %v1433 = vunpack.c.l.b16 %v1127
    %v1434 = vunpack.c.h.b16 %v1127
    %v1435 = vunpack.c.l.b16 %v1128
    %v1436 = vunpack.c.h.b16 %v1128
    %v1437 = vunpack.c.l.b16 %v1129
    %v1438 = vunpack.c.h.b16 %v1129
    %v1439 = vunpack.c.l.b16 %v1130
    %v1440 = vunpack.c.h.b16 %v1130
    %v1441 = vunpack.c.l.b16 %v1131
    %v1442 = vunpack.c.h.b16 %v1131
    %v1443 = vunpack.c.l.b16 %v1132
    %v1444 = vunpack.c.h.b16 %v1132
    %v1445 = vunpack.c.l.b16 %v1133
    %v1446 = vunpack.c.h.b16 %v1133
    %v1447 = vunpack.c.l.b16 %v1134
    %v1448 = vunpack.c.h.b16 %v1134
    %v1449 = vunpack.c.l.b16 %v1135
    %v1450 = vunpack.c.h.b16 %v1135
    %v1451 = vunpack.c.l.b16 %v1136
    %v1452 = vunpack.c.h.b16 %v1136
    %v1453 = vunpack.c.l.b16 %v1137
    %v1454 = vunpack.c.h.b16 %v1137
    %v1455 = vunpack.c.l.b16 %v1138
    %v1456 = vunpack.c.h.b16 %v1138
    %v1457 = vunpack.c.l.b16 %v1139
    %v1458 = vunpack.c.h.b16 %v1139
    %v1459 = vunpack.c.l.b16 %v1140
    %v1460 = vunpack.c.h.b16 %v1140
    %v1461 = vunpack.c.l.b16 %v1141
    %v1462 = vunpack.c.h.b16 %v1141
    %v1463 = vunpack.c.l.b16 %v1142
    %v1464 = vunpack.c.h.b16 %v1142
    %v1465 = vunpack.c.l.b16 %v1143
    %v1466 = vunpack.c.h.b16 %v1143
    %v1467 = vunpack.c.l.b16 %v1144
    %v1468 = vunpack.c.h.b16 %v1144
    %v1469 = vunpack.c.l.b16 %v1145
    %v1470 = vunpack.c.h.b16 %v1145
    %v1471 = vunpack.c.l.b16 %v1146
    %v1472 = vunpack.c.h.b16 %v1146
    %v1473 = vunpack.c.l.b16 %v1147
    %v1474 = vunpack.c.h.b16 %v1147
    %v1475 = vunpack.c.l.b16 %v1148
    %v1476 = vunpack.c.h.b16 %v1148
    %v1477 = vunpack.c.l.b16 %v1149
    %v1478 = vunpack.c.h.b16 %v1149
    %v1479 = vunpack.c.l.b16 %v1150
    %v1480 = vunpack.c.h.b16 %v1150
    %v1481 = vunpack.c.l.b16 %v1151
    %v1482 = vunpack.c.h.b16 %v1151
    %v1483 = vunpack.c.l.b16 %v1152
    %v1484 = vunpack.c.h.b16 %v1152
    %v1485 = vunpack.c.l.b16 %v1153
    %v1486 = vunpack.c.h.b16 %v1153
    %v1487 = vunpack.c.l.b16 %v1154
    %v1488 = vunpack.c.h.b16 %v1154
    %v1489 = vunpack.c.l.b16 %v1155
    %v1490 = vunpack.c.h.b16 %v1155
    %v1491 = vunpack.c.l.b16 %v1156
    %v1492 = vunpack.c.h.b16 %v1156
    %v1493 = vunpack.c.l.b16 %v1157
    %v1494 = vunpack.c.h.b16 %v1157
    %v1495 = vunpack.c.l.b16 %v1158
    %v1496 = vunpack.c.h.b16 %v1158
    %v1497 = vunpack.c.l.b16 %v1159
    %v1498 = vunpack.c.h.b16 %v1159
    %v1499 = vunpack.c.l.b16 %v1160
    %v1500 = vunpack.c.h.b16 %v1160
    %v1501 = vunpack.c.l.b16 %v1161
    %v1502 = vunpack.c.h.b16 %v1161
    %v1503 = vunpack.c.l.b16 %v1162
    %v1504 = vunpack.c.h.b16 %v1162
    %v1505 = vunpack.c.l.b16 %v1163
    %v1506 = vunpack.c.h.b16 %v1163
    %v1507 = vunpack.c.l.b16 %v1164
    %v1508 = vunpack.c.h.b16 %v1164
    %v1509 = vunpack.c.l.b16 %v1165
    %v1510 = vunpack.c.h.b16 %v1165
    %v1511 = vunpack.c.l.b16 %v1166
    %v1512 = vunpack.c.h.b16 %v1166
    %v1513 = vunpack.c.l.b16 %v1167
    %v1514 = vunpack.c.h.b16 %v1167
    %v1515 = vunpack.c.l.b16 %v1168
    %v1516 = vunpack.c.h.b16 %v1168
    %v1517 = vunpack.c.l.b16 %v1169
    %v1518 = vunpack.c.h.b16 %v1169
    %v1519 = vunpack.c.l.b16 %v1170
    %v1520 = vunpack.c.h.b16 %v1170
    %v1521 = vunpack.c.l.b16 %v1171
    %v1522 = vunpack.c.h.b16 %v1171
    %v1523 = vunpack.c.l.b16 %v1172
    %v1524 = vunpack.c.h.b16 %v1172
    %v1525 = vunpack.c.l.b16 %v1173
    %v1526 = vunpack.c.h.b16 %v1173
    %v1527 = vunpack.c.l.b16 %v1174
    %v1528 = vunpack.c.h.b16 %v1174
    %v1529 = vunpack.c.l.b16 %v1175
    %v1530 = vunpack.c.h.b16 %v1175
    %v1531 = vunpack.c.l.b16 %v1176
    %v1532 = vunpack.c.h.b16 %v1176
    %v1533 = vunpack.c.l.b16 %v1177
    %v1534 = vunpack.c.h.b16 %v1177
    %v1535 = vunpack.c.l.b16 %v1178
    %v1536 = vunpack.c.h.b16 %v1178
    %v1537 = vunpack.c.l.b16 %v1179
    %v1538 = vunpack.c.h.b16 %v1179
    %v1539 = vunpack.c.l.b16 %v1180
    %v1540 = vunpack.c.h.b16 %v1180
    %v1541 = vunpack.c.l.b16 %v1181
    %v1542 = vunpack.c.h.b16 %v1181
    %v1543 = vunpack.c.l.b16 %v1182
    %v1544 = vunpack.c.h.b16 %v1182
    %v1545 = vunpack.c.l.b16 %v1183
    %v1546 = vunpack.c.h.b16 %v1183
    %v1547 = vunpack.c.l.b16 %v1184
    %v1548 = vunpack.c.h.b16 %v1184
    %v1549 = vunpack.c.l.b16 %v1185
    %v1550 = vunpack.c.h.b16 %v1185
    %v1551 = vunpack.c.l.b16 %v1186
    %v1552 = vunpack.c.h.b16 %v1186
    %v1553 = vunpack.c.l.b16 %v1187
    %v1554 = vunpack.c.h.b16 %v1187
    %v1555 = vunpack.c.l.b16 %v1188
    %v1556 = vunpack.c.h.b16 %v1188
    %v1557 = vunpack.c.l.b16 %v1189
    %v1558 = vunpack.c.h.b16 %v1189
    %v1559 = vunpack.c.l.b16 %v1190
    %v1560 = vunpack.c.h.b16 %v1190
    %v1561 = vunpack.c.l.b16 %v1191
    %v1562 = vunpack.c.h.b16 %v1191
    %v1563 = vunpack.c.l.b16 %v1192
    %v1564 = vunpack.c.h.b16 %v1192
    %v1565 = vunpack.c.l.b16 %v1193
    %v1566 = vunpack.c.h.b16 %v1193
    %v1567 = vunpack.c.l.b16 %v1194
    %v1568 = vunpack.c.h.b16 %v1194
    %v1569 = vunpack.c.l.b16 %v1195
    %v1570 = vunpack.c.h.b16 %v1195
    %v1571 = vunpack.c.l.b16 %v1196
    %v1572 = vunpack.c.h.b16 %v1196
    %v1573 = vunpack.c.l.b16 %v1197
    %v1574 = vunpack.c.h.b16 %v1197
    %v1575 = vunpack.c.l.b16 %v1198
    %v1576 = vunpack.c.h.b16 %v1198
    %v1577 = vunpack.c.l.b16 %v1199
    %v1578 = vunpack.c.h.b16 %v1199
    %v1579 = vunpack.c.l.b16 %v1200
    %v1580 = vunpack.c.h.b16 %v1200
    %v1581 = vunpack.c.l.b16 %v1201
    %v1582 = vunpack.c.h.b16 %v1201
    %v1583 = vunpack.c.l.b16 %v1202
    %v1584 = vunpack.c.h.b16 %v1202
    %v1585 = vunpack.c.l.b16 %v1203
    %v1586 = vunpack.c.h.b16 %v1203
    %v1587 = vunpack.c.l.b16 %v1204
    %v1588 = vunpack.c.h.b16 %v1204
    %v1589 = vpack.c.b16 %v1341, %v1333
    %v1590 = vpack.c.b16 %v1342, %v1334
    %v1591 = vpack.c.b16 %v1343, %v1335
    %v1592 = vpack.c.b16 %v1344, %v1336
    %v1593 = vpack.c.b16 %v1345, %v1337
    %v1594 = vpack.c.b16 %v1346, %v1338
    %v1595 = vpack.c.b16 %v1347, %v1339
    %v1596 = vpack.c.b16 %v1348, %v1340
    %v1597 = vpack.c.b16 %v1357, %v1349
    %v1598 = vpack.c.b16 %v1358, %v1350
    %v1599 = vpack.c.b16 %v1359, %v1351
    %v1600 = vpack.c.b16 %v1360, %v1352
    %v1601 = vpack.c.b16 %v1361, %v1353
    %v1602 = vpack.c.b16 %v1362, %v1354
    %v1603 = vpack.c.b16 %v1363, %v1355
    %v1604 = vpack.c.b16 %v1364, %v1356
    %v1605 = vpack.c.b16 %v1373, %v1365
    %v1606 = vpack.c.b16 %v1374, %v1366
    %v1607 = vpack.c.b16 %v1375, %v1367
    %v1608 = vpack.c.b16 %v1376, %v1368
    %v1609 = vpack.c.b16 %v1377, %v1369
    %v1610 = vpack.c.b16 %v1378, %v1370
    %v1611 = vpack.c.b16 %v1379, %v1371
    %v1612 = vpack.c.b16 %v1380, %v1372
    %v1613 = vpack.c.b16 %v1389, %v1381
    %v1614 = vpack.c.b16 %v1390, %v1382
    %v1615 = vpack.c.b16 %v1391, %v1383
    %v1616 = vpack.c.b16 %v1392, %v1384
    %v1617 = vpack.c.b16 %v1393, %v1385
    %v1618 = vpack.c.b16 %v1394, %v1386
    %v1619 = vpack.c.b16 %v1395, %v1387
    %v1620 = vpack.c.b16 %v1396, %v1388
    %v1621 = vpack.c.b16 %v1405, %v1397
    %v1622 = vpack.c.b16 %v1406, %v1398
    %v1623 = vpack.c.b16 %v1407, %v1399
    %v1624 = vpack.c.b16 %v1408, %v1400
    %v1625 = vpack.c.b16 %v1409, %v1401
    %v1626 = vpack.c.b16 %v1410, %v1402
    %v1627 = vpack.c.b16 %v1411, %v1403
    %v1628 = vpack.c.b16 %v1412, %v1404
    %v1629 = vpack.c.b16 %v1421, %v1413
    %v1630 = vpack.c.b16 %v1422, %v1414
    %v1631 = vpack.c.b16 %v1423, %v1415
    %v1632 = vpack.c.b16 %v1424, %v1416
    %v1633 = vpack.c.b16 %v1425, %v1417
    %v1634 = vpack.c.b16 %v1426, %v1418
    %v1635 = vpack.c.b16 %v1427, %v1419
    %v1636 = vpack.c.b16 %v1428, %v1420
    %v1637 = vpack.c.b16 %v1437, %v1429
    %v1638 = vpack.c.b16 %v1438, %v1430
    %v1639 = vpack.c.b16 %v1439, %v1431
    %v1640 = vpack.c.b16 %v1440, %v1432
    %v1641 = vpack.c.b16 %v1441, %v1433
    %v1642 = vpack.c.b16 %v1442, %v1434
    %v1643 = vpack.c.b16 %v1443, %v1435
    %v1644 = vpack.c.b16 %v1444, %v1436
    %v1645 = vpack.c.b16 %v1453, %v1445
    %v1646 = vpack.c.b16 %v1454, %v1446
    %v1647 = vpack.c.b16 %v1455, %v1447
    %v1648 = vpack.c.b16 %v1456, %v1448
    %v1649 = vpack.c.b16 %v1457, %v1449
    %v1650 = vpack.c.b16 %v1458, %v1450
    %v1651 = vpack.c.b16 %v1459, %v1451
    %v1652 = vpack.c.b16 %v1460, %v1452
    %v1653 = vpack.c.b16 %v1469, %v1461
    %v1654 = vpack.c.b16 %v1470, %v1462
    %v1655 = vpack.c.b16 %v1471, %v1463
    %v1656 = vpack.c.b16 %v1472, %v1464
    %v1657 = vpack.c.b16 %v1473, %v1465
    %v1658 = vpack.c.b16 %v1474, %v1466
    %v1659 = vpack.c.b16 %v1475, %v1467
    %v1660 = vpack.c.b16 %v1476, %v1468
    %v1661 = vpack.c.b16 %v1485, %v1477
    %v1662 = vpack.c.b16 %v1486, %v1478
    %v1663 = vpack.c.b16 %v1487, %v1479
    %v1664 = vpack.c.b16 %v1488, %v1480
    %v1665 = vpack.c.b16 %v1489, %v1481
    %v1666 = vpack.c.b16 %v1490, %v1482
    %v1667 = vpack.c.b16 %v1491, %v1483
    %v1668 = vpack.c.b16 %v1492, %v1484
    %v1669 = vpack.c.b16 %v1501, %v1493
    %v1670 = vpack.c.b16 %v1502, %v1494
    %v1671 = vpack.c.b16 %v1503, %v1495
    %v1672 = vpack.c.b16 %v1504, %v1496
    %v1673 = vpack.c.b16 %v1505, %v1497
    %v1674 = vpack.c.b16 %v1506, %v1498
    %v1675 = vpack.c.b16 %v1507, %v1499
    %v1676 = vpack.c.b16 %v1508, %v1500
    %v1677 = vpack.c.b16 %v1517, %v1509
    %v1678 = vpack.c.b16 %v1518, %v1510
    %v1679 = vpack.c.b16 %v1519, %v1511
    %v1680 = vpack.c.b16 %v1520, %v1512
    %v1681 = vpack.c.b16 %v1521, %v1513
    %v1682 = vpack.c.b16 %v1522, %v1514
    %v1683 = vpack.c.b16 %v1523, %v1515
    %v1684 = vpack.c.b16 %v1524, %v1516
    %v1685 = vpack.c.b16 %v1533, %v1525
    %v1686 = vpack.c.b16 %v1534, %v1526
    %v1687 = vpack.c.b16 %v1535, %v1527
    %v1688 = vpack.c.b16 %v1536, %v1528
    %v1689 = vpack.c.b16 %v1537, %v1529
    %v1690 = vpack.c.b16 %v1538, %v1530
    %v1691 = vpack.c.b16 %v1539, %v1531
    %v1692 = vpack.c.b16 %v1540, %v1532
    %v1693 = vpack.c.b16 %v1549, %v1541
    %v1694 = vpack.c.b16 %v1550, %v1542
    %v1695 = vpack.c.b16 %v1551, %v1543
    %v1696 = vpack.c.b16 %v1552, %v1544
    %v1697 = vpack.c.b16 %v1553, %v1545
    %v1698 = vpack.c.b16 %v1554, %v1546
    %v1699 = vpack.c.b16 %v1555, %v1547
    %v1700 = vpack.c.b16 %v1556, %v1548
    %v1701 = vpack.c.b16 %v1565, %v1557
    %v1702 = vpack.c.b16 %v1566, %v1558
    %v1703 = vpack.c.b16 %v1567, %v1559
    %v1704 = vpack.c.b16 %v1568, %v1560
    %v1705 = vpack.c.b16 %v1569, %v1561
    %v1706 = vpack.c.b16 %v1570, %v1562
    %v1707 = vpack.c.b16 %v1571, %v1563
    %v1708 = vpack.c.b16 %v1572, %v1564
    %v1709 = vpack.c.b16 %v1581, %v1573
    %v1710 = vpack.c.b16 %v1582, %v1574
    %v1711 = vpack.c.b16 %v1583, %v1575
    %v1712 = vpack.c.b16 %v1584, %v1576
    %v1713 = vpack.c.b16 %v1585, %v1577
    %v1714 = vpack.c.b16 %v1586, %v1578
    %v1715 = vpack.c.b16 %v1587, %v1579
    %v1716 = vpack.c.b16 %v1588, %v1580
    %1845 = vmatprep.subr.bf16.mxu0 %v1590
    %1846 = vmatpush1.bf16.msra.mxu0 %v1589
    %1847 = vmatprep.subr.bf16.mxu0 %v1598
    %1848 = vmatpush1.bf16.msra.mxu0 %v1597
    %1849 = vmatprep.subr.bf16.mxu0 %v1606
    %1850 = vmatpush1.bf16.msra.mxu0 %v1605
    %1851 = vmatprep.subr.bf16.mxu0 %v1614
    %1852 = vmatpush1.bf16.msra.mxu0 %v1613
    %1853 = vmatprep.subr.bf16.mxu0 %v1622
    %1854 = vmatpush1.bf16.msra.mxu0 %v1621
    %1855 = vmatprep.subr.bf16.mxu0 %v1630
    %1856 = vmatpush1.bf16.msra.mxu0 %v1629
    %1857 = vmatprep.subr.bf16.mxu0 %v1638
    %1858 = vmatpush1.bf16.msra.mxu0 %v1637
    %1859 = vmatprep.subr.bf16.mxu0 %v1646
    %1860 = vmatpush1.bf16.msra.mxu0 %v1645
    %1861 = vmatprep.subr.bf16.mxu0 %v1654
    %1862 = vmatpush1.bf16.msra.mxu0 %v1653
    %1863 = vmatprep.subr.bf16.mxu0 %v1662
    %1864 = vmatpush1.bf16.msra.mxu0 %v1661
    %1865 = vmatprep.subr.bf16.mxu0 %v1670
    %1866 = vmatpush1.bf16.msra.mxu0 %v1669
    %1867 = vmatprep.subr.bf16.mxu0 %v1678
    %1868 = vmatpush1.bf16.msra.mxu0 %v1677
    %1869 = vmatprep.subr.bf16.mxu0 %v1686
    %1870 = vmatpush1.bf16.msra.mxu0 %v1685
    %1871 = vmatprep.subr.bf16.mxu0 %v1694
    %1872 = vmatpush1.bf16.msra.mxu0 %v1693
    %1873 = vmatprep.subr.bf16.mxu0 %v1702
    %1874 = vmatpush1.bf16.msra.mxu0 %v1701
    %1875 = vmatprep.subr.bf16.mxu0 %v1710
    %1876 = vmatpush1.bf16.msra.mxu0 %v1709
    %1877 = vmatprep.mubr.bf16.mxu0 %v1075
    %1878 = vmatmul.mubr.bf16.gmra.mrb[0].mxu0 %v1074
    %v1879 = vpop.f32.mrb[0].mxu0
    %v1880 = vadd.f32 0.0, %v1879
    %v1881 = vpop.f32.mrb[0].mxu0
    %v1882 = vadd.f32 0.0, %v1881
    %v1883 = vpop.f32.mrb[0].mxu0
    %v1884 = vpop.f32.mrb[0].mxu0
    %1885 = vdwg.mxu0
    %1886 = vmatprep.subr.bf16.mxu0 %v1592
    %1887 = vmatpush1.bf16.msra.mxu0 %v1591
    %1888 = vmatprep.subr.bf16.mxu0 %v1600
    %1889 = vmatpush1.bf16.msra.mxu0 %v1599
    %1890 = vmatprep.subr.bf16.mxu0 %v1608
    %1891 = vmatpush1.bf16.msra.mxu0 %v1607
    %1892 = vmatprep.subr.bf16.mxu0 %v1616
    %1893 = vmatpush1.bf16.msra.mxu0 %v1615
    %1894 = vmatprep.subr.bf16.mxu0 %v1624
    %1895 = vmatpush1.bf16.msra.mxu0 %v1623
    %1896 = vmatprep.subr.bf16.mxu0 %v1632
    %1897 = vmatpush1.bf16.msra.mxu0 %v1631
    %1898 = vmatprep.subr.bf16.mxu0 %v1640
    %1899 = vmatpush1.bf16.msra.mxu0 %v1639
    %1900 = vmatprep.subr.bf16.mxu0 %v1648
    %1901 = vmatpush1.bf16.msra.mxu0 %v1647
    %1902 = vmatprep.subr.bf16.mxu0 %v1656
    %1903 = vmatpush1.bf16.msra.mxu0 %v1655
    %1904 = vmatprep.subr.bf16.mxu0 %v1664
    %1905 = vmatpush1.bf16.msra.mxu0 %v1663
    %1906 = vmatprep.subr.bf16.mxu0 %v1672
    %1907 = vmatpush1.bf16.msra.mxu0 %v1671
    %1908 = vmatprep.subr.bf16.mxu0 %v1680
    %1909 = vmatpush1.bf16.msra.mxu0 %v1679
    %1910 = vmatprep.subr.bf16.mxu0 %v1688
    %1911 = vmatpush1.bf16.msra.mxu0 %v1687
    %1912 = vmatprep.subr.bf16.mxu0 %v1696
    %1913 = vmatpush1.bf16.msra.mxu0 %v1695
    %1914 = vmatprep.subr.bf16.mxu0 %v1704
    %1915 = vmatpush1.bf16.msra.mxu0 %v1703
    %1916 = vmatprep.subr.bf16.mxu0 %v1712
    %1917 = vmatpush1.bf16.msra.mxu0 %v1711
    %1918 = vmatprep.mubr.bf16.mxu0 %v1075
    %1919 = vmatmul.mubr.bf16.gmra.mrb[0].mxu0 %v1074
    %v1920 = vpop.f32.mrb[0].mxu0
    %v1921 = vadd.f32 0.0, %v1920
    %v1922 = vpop.f32.mrb[0].mxu0
    %v1923 = vadd.f32 0.0, %v1922
    %v1924 = vpop.f32.mrb[0].mxu0
    %v1925 = vpop.f32.mrb[0].mxu0
    %1926 = vdwg.mxu0
    %1927 = vmatprep.subr.bf16.mxu0 %v1594
    %1928 = vmatpush1.bf16.msra.mxu0 %v1593
    %1929 = vmatprep.subr.bf16.mxu0 %v1602
    %1930 = vmatpush1.bf16.msra.mxu0 %v1601
    %1931 = vmatprep.subr.bf16.mxu0 %v1610
    %1932 = vmatpush1.bf16.msra.mxu0 %v1609
    %1933 = vmatprep.subr.bf16.mxu0 %v1618
    %1934 = vmatpush1.bf16.msra.mxu0 %v1617
    %1935 = vmatprep.subr.bf16.mxu0 %v1626
    %1936 = vmatpush1.bf16.msra.mxu0 %v1625
    %1937 = vmatprep.subr.bf16.mxu0 %v1634
    %1938 = vmatpush1.bf16.msra.mxu0 %v1633
    %1939 = vmatprep.subr.bf16.mxu0 %v1642
    %1940 = vmatpush1.bf16.msra.mxu0 %v1641
    %1941 = vmatprep.subr.bf16.mxu0 %v1650
    %1942 = vmatpush1.bf16.msra.mxu0 %v1649
    %1943 = vmatprep.subr.bf16.mxu0 %v1658
    %1944 = vmatpush1.bf16.msra.mxu0 %v1657
    %1945 = vmatprep.subr.bf16.mxu0 %v1666
    %1946 = vmatpush1.bf16.msra.mxu0 %v1665
    %1947 = vmatprep.subr.bf16.mxu0 %v1674
    %1948 = vmatpush1.bf16.msra.mxu0 %v1673
    %1949 = vmatprep.subr.bf16.mxu0 %v1682
    %1950 = vmatpush1.bf16.msra.mxu0 %v1681
    %1951 = vmatprep.subr.bf16.mxu0 %v1690
    %1952 = vmatpush1.bf16.msra.mxu0 %v1689
    %1953 = vmatprep.subr.bf16.mxu0 %v1698
    %1954 = vmatpush1.bf16.msra.mxu0 %v1697
    %1955 = vmatprep.subr.bf16.mxu0 %v1706
    %1956 = vmatpush1.bf16.msra.mxu0 %v1705
    %1957 = vmatprep.subr.bf16.mxu0 %v1714
    %1958 = vmatpush1.bf16.msra.mxu0 %v1713
    %1959 = vmatprep.mubr.bf16.mxu0 %v1075
    %1960 = vmatmul.mubr.bf16.gmra.mrb[0].mxu0 %v1074
    %v1961 = vpop.f32.mrb[0].mxu0
    %v1962 = vadd.f32 0.0, %v1961
    %v1963 = vpop.f32.mrb[0].mxu0
    %v1964 = vadd.f32 0.0, %v1963
    %v1965 = vpop.f32.mrb[0].mxu0
    %v1966 = vpop.f32.mrb[0].mxu0
    %1967 = vdwg.mxu0
    %1968 = vmatprep.subr.bf16.mxu0 %v1596
    %1969 = vmatpush1.bf16.msra.mxu0 %v1595
    %1970 = vmatprep.subr.bf16.mxu0 %v1604
    %1971 = vmatpush1.bf16.msra.mxu0 %v1603
    %1972 = vmatprep.subr.bf16.mxu0 %v1612
    %1973 = vmatpush1.bf16.msra.mxu0 %v1611
    %1974 = vmatprep.subr.bf16.mxu0 %v1620
    %1975 = vmatpush1.bf16.msra.mxu0 %v1619
    %1976 = vmatprep.subr.bf16.mxu0 %v1628
    %1977 = vmatpush1.bf16.msra.mxu0 %v1627
    %1978 = vmatprep.subr.bf16.mxu0 %v1636
    %1979 = vmatpush1.bf16.msra.mxu0 %v1635
    %1980 = vmatprep.subr.bf16.mxu0 %v1644
    %1981 = vmatpush1.bf16.msra.mxu0 %v1643
    %1982 = vmatprep.subr.bf16.mxu0 %v1652
    %1983 = vmatpush1.bf16.msra.mxu0 %v1651
    %1984 = vmatprep.subr.bf16.mxu0 %v1660
    %1985 = vmatpush1.bf16.msra.mxu0 %v1659
    %1986 = vmatprep.subr.bf16.mxu0 %v1668
    %1987 = vmatpush1.bf16.msra.mxu0 %v1667
    %1988 = vmatprep.subr.bf16.mxu0 %v1676
    %1989 = vmatpush1.bf16.msra.mxu0 %v1675
    %1990 = vmatprep.subr.bf16.mxu0 %v1684
    %1991 = vmatpush1.bf16.msra.mxu0 %v1683
    %1992 = vmatprep.subr.bf16.mxu0 %v1692
    %1993 = vmatpush1.bf16.msra.mxu0 %v1691
    %1994 = vmatprep.subr.bf16.mxu0 %v1700
    %1995 = vmatpush1.bf16.msra.mxu0 %v1699
    %1996 = vmatprep.subr.bf16.mxu0 %v1708
    %1997 = vmatpush1.bf16.msra.mxu0 %v1707
    %1998 = vmatprep.subr.bf16.mxu0 %v1716
    %1999 = vmatpush1.bf16.msra.mxu0 %v1715
    %2000 = vmatprep.mubr.bf16.mxu0 %v1075
    %2001 = vmatmul.mubr.bf16.gmra.mrb[0].mxu0 %v1074
    %v2002 = vpop.f32.mrb[0].mxu0
    %v2003 = vadd.f32 0.0, %v2002
    %v2004 = vpop.f32.mrb[0].mxu0
    %v2005 = vadd.f32 0.0, %v2004
    %v2006 = vpop.f32.mrb[0].mxu0
    %v2007 = vpop.f32.mrb[0].mxu0
    %2008 = vdwg.mxu0
    %v2137 = vunpack.c.l.b16 %v653
    %v2138 = vunpack.c.h.b16 %v653
    %v2139 = vunpack.c.l.b16 %v654
    %v2140 = vunpack.c.h.b16 %v654
    %v2141 = vunpack.c.l.b16 %v655
    %v2142 = vunpack.c.h.b16 %v655
    %v2143 = vunpack.c.l.b16 %v656
    %v2144 = vunpack.c.h.b16 %v656
    %v2145 = vunpack.c.l.b16 %v657
    %v2146 = vunpack.c.h.b16 %v657
    %v2147 = vunpack.c.l.b16 %v658
    %v2148 = vunpack.c.h.b16 %v658
    %v2149 = vunpack.c.l.b16 %v659
    %v2150 = vunpack.c.h.b16 %v659
    %v2151 = vunpack.c.l.b16 %v660
    %v2152 = vunpack.c.h.b16 %v660
    %v2153 = vunpack.c.l.b16 %v661
    %v2154 = vunpack.c.h.b16 %v661
    %v2155 = vunpack.c.l.b16 %v662
    %v2156 = vunpack.c.h.b16 %v662
    %v2157 = vunpack.c.l.b16 %v663
    %v2158 = vunpack.c.h.b16 %v663
    %v2159 = vunpack.c.l.b16 %v664
    %v2160 = vunpack.c.h.b16 %v664
    %v2161 = vunpack.c.l.b16 %v665
    %v2162 = vunpack.c.h.b16 %v665
    %v2163 = vunpack.c.l.b16 %v666
    %v2164 = vunpack.c.h.b16 %v666
    %v2165 = vunpack.c.l.b16 %v667
    %v2166 = vunpack.c.h.b16 %v667
    %v2167 = vunpack.c.l.b16 %v668
    %v2168 = vunpack.c.h.b16 %v668
    %v2169 = vunpack.c.l.b16 %v669
    %v2170 = vunpack.c.h.b16 %v669
    %v2171 = vunpack.c.l.b16 %v670
    %v2172 = vunpack.c.h.b16 %v670
    %v2173 = vunpack.c.l.b16 %v671
    %v2174 = vunpack.c.h.b16 %v671
    %v2175 = vunpack.c.l.b16 %v672
    %v2176 = vunpack.c.h.b16 %v672
    %v2177 = vunpack.c.l.b16 %v673
    %v2178 = vunpack.c.h.b16 %v673
    %v2179 = vunpack.c.l.b16 %v674
    %v2180 = vunpack.c.h.b16 %v674
    %v2181 = vunpack.c.l.b16 %v675
    %v2182 = vunpack.c.h.b16 %v675
    %v2183 = vunpack.c.l.b16 %v676
    %v2184 = vunpack.c.h.b16 %v676
    %v2185 = vunpack.c.l.b16 %v677
    %v2186 = vunpack.c.h.b16 %v677
    %v2187 = vunpack.c.l.b16 %v678
    %v2188 = vunpack.c.h.b16 %v678
    %v2189 = vunpack.c.l.b16 %v679
    %v2190 = vunpack.c.h.b16 %v679
    %v2191 = vunpack.c.l.b16 %v680
    %v2192 = vunpack.c.h.b16 %v680
    %v2193 = vunpack.c.l.b16 %v681
    %v2194 = vunpack.c.h.b16 %v681
    %v2195 = vunpack.c.l.b16 %v682
    %v2196 = vunpack.c.h.b16 %v682
    %v2197 = vunpack.c.l.b16 %v683
    %v2198 = vunpack.c.h.b16 %v683
    %v2199 = vunpack.c.l.b16 %v684
    %v2200 = vunpack.c.h.b16 %v684
    %v2201 = vunpack.c.l.b16 %v685
    %v2202 = vunpack.c.h.b16 %v685
    %v2203 = vunpack.c.l.b16 %v686
    %v2204 = vunpack.c.h.b16 %v686
    %v2205 = vunpack.c.l.b16 %v687
    %v2206 = vunpack.c.h.b16 %v687
    %v2207 = vunpack.c.l.b16 %v688
    %v2208 = vunpack.c.h.b16 %v688
    %v2209 = vunpack.c.l.b16 %v689
    %v2210 = vunpack.c.h.b16 %v689
    %v2211 = vunpack.c.l.b16 %v690
    %v2212 = vunpack.c.h.b16 %v690
    %v2213 = vunpack.c.l.b16 %v691
    %v2214 = vunpack.c.h.b16 %v691
    %v2215 = vunpack.c.l.b16 %v692
    %v2216 = vunpack.c.h.b16 %v692
    %v2217 = vunpack.c.l.b16 %v693
    %v2218 = vunpack.c.h.b16 %v693
    %v2219 = vunpack.c.l.b16 %v694
    %v2220 = vunpack.c.h.b16 %v694
    %v2221 = vunpack.c.l.b16 %v695
    %v2222 = vunpack.c.h.b16 %v695
    %v2223 = vunpack.c.l.b16 %v696
    %v2224 = vunpack.c.h.b16 %v696
    %v2225 = vunpack.c.l.b16 %v697
    %v2226 = vunpack.c.h.b16 %v697
    %v2227 = vunpack.c.l.b16 %v698
    %v2228 = vunpack.c.h.b16 %v698
    %v2229 = vunpack.c.l.b16 %v699
    %v2230 = vunpack.c.h.b16 %v699
    %v2231 = vunpack.c.l.b16 %v700
    %v2232 = vunpack.c.h.b16 %v700
    %v2233 = vunpack.c.l.b16 %v701
    %v2234 = vunpack.c.h.b16 %v701
    %v2235 = vunpack.c.l.b16 %v702
    %v2236 = vunpack.c.h.b16 %v702
    %v2237 = vunpack.c.l.b16 %v703
    %v2238 = vunpack.c.h.b16 %v703
    %v2239 = vunpack.c.l.b16 %v704
    %v2240 = vunpack.c.h.b16 %v704
    %v2241 = vunpack.c.l.b16 %v705
    %v2242 = vunpack.c.h.b16 %v705
    %v2243 = vunpack.c.l.b16 %v706
    %v2244 = vunpack.c.h.b16 %v706
    %v2245 = vunpack.c.l.b16 %v707
    %v2246 = vunpack.c.h.b16 %v707
    %v2247 = vunpack.c.l.b16 %v708
    %v2248 = vunpack.c.h.b16 %v708
    %v2249 = vunpack.c.l.b16 %v709
    %v2250 = vunpack.c.h.b16 %v709
    %v2251 = vunpack.c.l.b16 %v710
    %v2252 = vunpack.c.h.b16 %v710
    %v2253 = vunpack.c.l.b16 %v711
    %v2254 = vunpack.c.h.b16 %v711
    %v2255 = vunpack.c.l.b16 %v712
    %v2256 = vunpack.c.h.b16 %v712
    %v2257 = vunpack.c.l.b16 %v713
    %v2258 = vunpack.c.h.b16 %v713
    %v2259 = vunpack.c.l.b16 %v714
    %v2260 = vunpack.c.h.b16 %v714
    %v2261 = vunpack.c.l.b16 %v715
    %v2262 = vunpack.c.h.b16 %v715
    %v2263 = vunpack.c.l.b16 %v716
    %v2264 = vunpack.c.h.b16 %v716
    %v2265 = vunpack.c.l.b16 %v717
    %v2266 = vunpack.c.h.b16 %v717
    %v2267 = vunpack.c.l.b16 %v718
    %v2268 = vunpack.c.h.b16 %v718
    %v2269 = vunpack.c.l.b16 %v719
    %v2270 = vunpack.c.h.b16 %v719
    %v2271 = vunpack.c.l.b16 %v720
    %v2272 = vunpack.c.h.b16 %v720
    %v2273 = vunpack.c.l.b16 %v721
    %v2274 = vunpack.c.h.b16 %v721
    %v2275 = vunpack.c.l.b16 %v722
    %v2276 = vunpack.c.h.b16 %v722
    %v2277 = vunpack.c.l.b16 %v723
    %v2278 = vunpack.c.h.b16 %v723
    %v2279 = vunpack.c.l.b16 %v724
    %v2280 = vunpack.c.h.b16 %v724
    %v2281 = vunpack.c.l.b16 %v725
    %v2282 = vunpack.c.h.b16 %v725
    %v2283 = vunpack.c.l.b16 %v726
    %v2284 = vunpack.c.h.b16 %v726
    %v2285 = vunpack.c.l.b16 %v727
    %v2286 = vunpack.c.h.b16 %v727
    %v2287 = vunpack.c.l.b16 %v728
    %v2288 = vunpack.c.h.b16 %v728
    %v2289 = vunpack.c.l.b16 %v729
    %v2290 = vunpack.c.h.b16 %v729
    %v2291 = vunpack.c.l.b16 %v730
    %v2292 = vunpack.c.h.b16 %v730
    %v2293 = vunpack.c.l.b16 %v731
    %v2294 = vunpack.c.h.b16 %v731
    %v2295 = vunpack.c.l.b16 %v732
    %v2296 = vunpack.c.h.b16 %v732
    %v2297 = vunpack.c.l.b16 %v733
    %v2298 = vunpack.c.h.b16 %v733
    %v2299 = vunpack.c.l.b16 %v734
    %v2300 = vunpack.c.h.b16 %v734
    %v2301 = vunpack.c.l.b16 %v735
    %v2302 = vunpack.c.h.b16 %v735
    %v2303 = vunpack.c.l.b16 %v736
    %v2304 = vunpack.c.h.b16 %v736
    %v2305 = vunpack.c.l.b16 %v737
    %v2306 = vunpack.c.h.b16 %v737
    %v2307 = vunpack.c.l.b16 %v738
    %v2308 = vunpack.c.h.b16 %v738
    %v2309 = vunpack.c.l.b16 %v739
    %v2310 = vunpack.c.h.b16 %v739
    %v2311 = vunpack.c.l.b16 %v740
    %v2312 = vunpack.c.h.b16 %v740
    %v2313 = vunpack.c.l.b16 %v741
    %v2314 = vunpack.c.h.b16 %v741
    %v2315 = vunpack.c.l.b16 %v742
    %v2316 = vunpack.c.h.b16 %v742
    %v2317 = vunpack.c.l.b16 %v743
    %v2318 = vunpack.c.h.b16 %v743
    %v2319 = vunpack.c.l.b16 %v744
    %v2320 = vunpack.c.h.b16 %v744
    %v2321 = vunpack.c.l.b16 %v745
    %v2322 = vunpack.c.h.b16 %v745
    %v2323 = vunpack.c.l.b16 %v746
    %v2324 = vunpack.c.h.b16 %v746
    %v2325 = vunpack.c.l.b16 %v747
    %v2326 = vunpack.c.h.b16 %v747
    %v2327 = vunpack.c.l.b16 %v748
    %v2328 = vunpack.c.h.b16 %v748
    %v2329 = vunpack.c.l.b16 %v749
    %v2330 = vunpack.c.h.b16 %v749
    %v2331 = vunpack.c.l.b16 %v750
    %v2332 = vunpack.c.h.b16 %v750
    %v2333 = vunpack.c.l.b16 %v751
    %v2334 = vunpack.c.h.b16 %v751
    %v2335 = vunpack.c.l.b16 %v752
    %v2336 = vunpack.c.h.b16 %v752
    %v2337 = vunpack.c.l.b16 %v753
    %v2338 = vunpack.c.h.b16 %v753
    %v2339 = vunpack.c.l.b16 %v754
    %v2340 = vunpack.c.h.b16 %v754
    %v2341 = vunpack.c.l.b16 %v755
    %v2342 = vunpack.c.h.b16 %v755
    %v2343 = vunpack.c.l.b16 %v756
    %v2344 = vunpack.c.h.b16 %v756
    %v2345 = vunpack.c.l.b16 %v757
    %v2346 = vunpack.c.h.b16 %v757
    %v2347 = vunpack.c.l.b16 %v758
    %v2348 = vunpack.c.h.b16 %v758
    %v2349 = vunpack.c.l.b16 %v759
    %v2350 = vunpack.c.h.b16 %v759
    %v2351 = vunpack.c.l.b16 %v760
    %v2352 = vunpack.c.h.b16 %v760
    %v2353 = vunpack.c.l.b16 %v761
    %v2354 = vunpack.c.h.b16 %v761
    %v2355 = vunpack.c.l.b16 %v762
    %v2356 = vunpack.c.h.b16 %v762
    %v2357 = vunpack.c.l.b16 %v763
    %v2358 = vunpack.c.h.b16 %v763
    %v2359 = vunpack.c.l.b16 %v764
    %v2360 = vunpack.c.h.b16 %v764
    %v2361 = vunpack.c.l.b16 %v765
    %v2362 = vunpack.c.h.b16 %v765
    %v2363 = vunpack.c.l.b16 %v766
    %v2364 = vunpack.c.h.b16 %v766
    %v2365 = vunpack.c.l.b16 %v767
    %v2366 = vunpack.c.h.b16 %v767
    %v2367 = vunpack.c.l.b16 %v768
    %v2368 = vunpack.c.h.b16 %v768
    %v2369 = vunpack.c.l.b16 %v769
    %v2370 = vunpack.c.h.b16 %v769
    %v2371 = vunpack.c.l.b16 %v770
    %v2372 = vunpack.c.h.b16 %v770
    %v2373 = vunpack.c.l.b16 %v771
    %v2374 = vunpack.c.h.b16 %v771
    %v2375 = vunpack.c.l.b16 %v772
    %v2376 = vunpack.c.h.b16 %v772
    %v2377 = vunpack.c.l.b16 %v773
    %v2378 = vunpack.c.h.b16 %v773
    %v2379 = vunpack.c.l.b16 %v774
    %v2380 = vunpack.c.h.b16 %v774
    %v2381 = vunpack.c.l.b16 %v775
    %v2382 = vunpack.c.h.b16 %v775
    %v2383 = vunpack.c.l.b16 %v776
    %v2384 = vunpack.c.h.b16 %v776
    %v2385 = vunpack.c.l.b16 %v777
    %v2386 = vunpack.c.h.b16 %v777
    %v2387 = vunpack.c.l.b16 %v778
    %v2388 = vunpack.c.h.b16 %v778
    %v2389 = vunpack.c.l.b16 %v779
    %v2390 = vunpack.c.h.b16 %v779
    %v2391 = vunpack.c.l.b16 %v780
    %v2392 = vunpack.c.h.b16 %v780
    %v2393 = vpack.c.b16 %v2145, %v2137
    %v2394 = vpack.c.b16 %v2146, %v2138
    %v2395 = vpack.c.b16 %v2147, %v2139
    %v2396 = vpack.c.b16 %v2148, %v2140
    %v2397 = vpack.c.b16 %v2149, %v2141
    %v2398 = vpack.c.b16 %v2150, %v2142
    %v2399 = vpack.c.b16 %v2151, %v2143
    %v2400 = vpack.c.b16 %v2152, %v2144
    %v2401 = vpack.c.b16 %v2161, %v2153
    %v2402 = vpack.c.b16 %v2162, %v2154
    %v2403 = vpack.c.b16 %v2163, %v2155
    %v2404 = vpack.c.b16 %v2164, %v2156
    %v2405 = vpack.c.b16 %v2165, %v2157
    %v2406 = vpack.c.b16 %v2166, %v2158
    %v2407 = vpack.c.b16 %v2167, %v2159
    %v2408 = vpack.c.b16 %v2168, %v2160
    %v2409 = vpack.c.b16 %v2177, %v2169
    %v2410 = vpack.c.b16 %v2178, %v2170
    %v2411 = vpack.c.b16 %v2179, %v2171
    %v2412 = vpack.c.b16 %v2180, %v2172
    %v2413 = vpack.c.b16 %v2181, %v2173
    %v2414 = vpack.c.b16 %v2182, %v2174
    %v2415 = vpack.c.b16 %v2183, %v2175
    %v2416 = vpack.c.b16 %v2184, %v2176
    %v2417 = vpack.c.b16 %v2193, %v2185
    %v2418 = vpack.c.b16 %v2194, %v2186
    %v2419 = vpack.c.b16 %v2195, %v2187
    %v2420 = vpack.c.b16 %v2196, %v2188
    %v2421 = vpack.c.b16 %v2197, %v2189
    %v2422 = vpack.c.b16 %v2198, %v2190
    %v2423 = vpack.c.b16 %v2199, %v2191
    %v2424 = vpack.c.b16 %v2200, %v2192
    %v2425 = vpack.c.b16 %v2209, %v2201
    %v2426 = vpack.c.b16 %v2210, %v2202
    %v2427 = vpack.c.b16 %v2211, %v2203
    %v2428 = vpack.c.b16 %v2212, %v2204
    %v2429 = vpack.c.b16 %v2213, %v2205
    %v2430 = vpack.c.b16 %v2214, %v2206
    %v2431 = vpack.c.b16 %v2215, %v2207
    %v2432 = vpack.c.b16 %v2216, %v2208
    %v2433 = vpack.c.b16 %v2225, %v2217
    %v2434 = vpack.c.b16 %v2226, %v2218
    %v2435 = vpack.c.b16 %v2227, %v2219
    %v2436 = vpack.c.b16 %v2228, %v2220
    %v2437 = vpack.c.b16 %v2229, %v2221
    %v2438 = vpack.c.b16 %v2230, %v2222
    %v2439 = vpack.c.b16 %v2231, %v2223
    %v2440 = vpack.c.b16 %v2232, %v2224
    %v2441 = vpack.c.b16 %v2241, %v2233
    %v2442 = vpack.c.b16 %v2242, %v2234
    %v2443 = vpack.c.b16 %v2243, %v2235
    %v2444 = vpack.c.b16 %v2244, %v2236
    %v2445 = vpack.c.b16 %v2245, %v2237
    %v2446 = vpack.c.b16 %v2246, %v2238
    %v2447 = vpack.c.b16 %v2247, %v2239
    %v2448 = vpack.c.b16 %v2248, %v2240
    %v2449 = vpack.c.b16 %v2257, %v2249
    %v2450 = vpack.c.b16 %v2258, %v2250
    %v2451 = vpack.c.b16 %v2259, %v2251
    %v2452 = vpack.c.b16 %v2260, %v2252
    %v2453 = vpack.c.b16 %v2261, %v2253
    %v2454 = vpack.c.b16 %v2262, %v2254
    %v2455 = vpack.c.b16 %v2263, %v2255
    %v2456 = vpack.c.b16 %v2264, %v2256
    %v2457 = vpack.c.b16 %v2273, %v2265
    %v2458 = vpack.c.b16 %v2274, %v2266
    %v2459 = vpack.c.b16 %v2275, %v2267
    %v2460 = vpack.c.b16 %v2276, %v2268
    %v2461 = vpack.c.b16 %v2277, %v2269
    %v2462 = vpack.c.b16 %v2278, %v2270
    %v2463 = vpack.c.b16 %v2279, %v2271
    %v2464 = vpack.c.b16 %v2280, %v2272
    %v2465 = vpack.c.b16 %v2289, %v2281
    %v2466 = vpack.c.b16 %v2290, %v2282
    %v2467 = vpack.c.b16 %v2291, %v2283
    %v2468 = vpack.c.b16 %v2292, %v2284
    %v2469 = vpack.c.b16 %v2293, %v2285
    %v2470 = vpack.c.b16 %v2294, %v2286
    %v2471 = vpack.c.b16 %v2295, %v2287
    %v2472 = vpack.c.b16 %v2296, %v2288
    %v2473 = vpack.c.b16 %v2305, %v2297
    %v2474 = vpack.c.b16 %v2306, %v2298
    %v2475 = vpack.c.b16 %v2307, %v2299
    %v2476 = vpack.c.b16 %v2308, %v2300
    %v2477 = vpack.c.b16 %v2309, %v2301
    %v2478 = vpack.c.b16 %v2310, %v2302
    %v2479 = vpack.c.b16 %v2311, %v2303
    %v2480 = vpack.c.b16 %v2312, %v2304
    %v2481 = vpack.c.b16 %v2321, %v2313
    %v2482 = vpack.c.b16 %v2322, %v2314
    %v2483 = vpack.c.b16 %v2323, %v2315
    %v2484 = vpack.c.b16 %v2324, %v2316
    %v2485 = vpack.c.b16 %v2325, %v2317
    %v2486 = vpack.c.b16 %v2326, %v2318
    %v2487 = vpack.c.b16 %v2327, %v2319
    %v2488 = vpack.c.b16 %v2328, %v2320
    %v2489 = vpack.c.b16 %v2337, %v2329
    %v2490 = vpack.c.b16 %v2338, %v2330
    %v2491 = vpack.c.b16 %v2339, %v2331
    %v2492 = vpack.c.b16 %v2340, %v2332
    %v2493 = vpack.c.b16 %v2341, %v2333
    %v2494 = vpack.c.b16 %v2342, %v2334
    %v2495 = vpack.c.b16 %v2343, %v2335
    %v2496 = vpack.c.b16 %v2344, %v2336
    %v2497 = vpack.c.b16 %v2353, %v2345
    %v2498 = vpack.c.b16 %v2354, %v2346
    %v2499 = vpack.c.b16 %v2355, %v2347
    %v2500 = vpack.c.b16 %v2356, %v2348
    %v2501 = vpack.c.b16 %v2357, %v2349
    %v2502 = vpack.c.b16 %v2358, %v2350
    %v2503 = vpack.c.b16 %v2359, %v2351
    %v2504 = vpack.c.b16 %v2360, %v2352
    %v2505 = vpack.c.b16 %v2369, %v2361
    %v2506 = vpack.c.b16 %v2370, %v2362
    %v2507 = vpack.c.b16 %v2371, %v2363
    %v2508 = vpack.c.b16 %v2372, %v2364
    %v2509 = vpack.c.b16 %v2373, %v2365
    %v2510 = vpack.c.b16 %v2374, %v2366
    %v2511 = vpack.c.b16 %v2375, %v2367
    %v2512 = vpack.c.b16 %v2376, %v2368
    %v2513 = vpack.c.b16 %v2385, %v2377
    %v2514 = vpack.c.b16 %v2386, %v2378
    %v2515 = vpack.c.b16 %v2387, %v2379
    %v2516 = vpack.c.b16 %v2388, %v2380
    %v2517 = vpack.c.b16 %v2389, %v2381
    %v2518 = vpack.c.b16 %v2390, %v2382
    %v2519 = vpack.c.b16 %v2391, %v2383
    %v2520 = vpack.c.b16 %v2392, %v2384
    %2649 = vmatprep.subr.bf16.mxu0 %v2394
    %2650 = vmatpush1.bf16.msra.mxu0 %v2393
    %2651 = vmatprep.subr.bf16.mxu0 %v2402
    %2652 = vmatpush1.bf16.msra.mxu0 %v2401
    %2653 = vmatprep.subr.bf16.mxu0 %v2410
    %2654 = vmatpush1.bf16.msra.mxu0 %v2409
    %2655 = vmatprep.subr.bf16.mxu0 %v2418
    %2656 = vmatpush1.bf16.msra.mxu0 %v2417
    %2657 = vmatprep.subr.bf16.mxu0 %v2426
    %2658 = vmatpush1.bf16.msra.mxu0 %v2425
    %2659 = vmatprep.subr.bf16.mxu0 %v2434
    %2660 = vmatpush1.bf16.msra.mxu0 %v2433
    %2661 = vmatprep.subr.bf16.mxu0 %v2442
    %2662 = vmatpush1.bf16.msra.mxu0 %v2441
    %2663 = vmatprep.subr.bf16.mxu0 %v2450
    %2664 = vmatpush1.bf16.msra.mxu0 %v2449
    %2665 = vmatprep.subr.bf16.mxu0 %v2458
    %2666 = vmatpush1.bf16.msra.mxu0 %v2457
    %2667 = vmatprep.subr.bf16.mxu0 %v2466
    %2668 = vmatpush1.bf16.msra.mxu0 %v2465
    %2669 = vmatprep.subr.bf16.mxu0 %v2474
    %2670 = vmatpush1.bf16.msra.mxu0 %v2473
    %2671 = vmatprep.subr.bf16.mxu0 %v2482
    %2672 = vmatpush1.bf16.msra.mxu0 %v2481
    %2673 = vmatprep.subr.bf16.mxu0 %v2490
    %2674 = vmatpush1.bf16.msra.mxu0 %v2489
    %2675 = vmatprep.subr.bf16.mxu0 %v2498
    %2676 = vmatpush1.bf16.msra.mxu0 %v2497
    %2677 = vmatprep.subr.bf16.mxu0 %v2506
    %2678 = vmatpush1.bf16.msra.mxu0 %v2505
    %2679 = vmatprep.subr.bf16.mxu0 %v2514
    %2680 = vmatpush1.bf16.msra.mxu0 %v2513
    %2681 = vmatprep.mubr.bf16.mxu0 %v652
    %2682 = vmatmul.mubr.bf16.gmra.mrb[0].mxu0 %v651
    %v2683 = vpop.f32.mrb[0].mxu0
    %v2684 = vadd.f32 %v1880, %v2683
    %v2685 = vpop.f32.mrb[0].mxu0
    %v2686 = vadd.f32 %v1882, %v2685
    %v2687 = vpop.f32.mrb[0].mxu0
    %v2688 = vpop.f32.mrb[0].mxu0
    %2689 = vdwg.mxu0
    %2690 = vmatprep.subr.bf16.mxu0 %v2396
    %2691 = vmatpush1.bf16.msra.mxu0 %v2395
    %2692 = vmatprep.subr.bf16.mxu0 %v2404
    %2693 = vmatpush1.bf16.msra.mxu0 %v2403
    %2694 = vmatprep.subr.bf16.mxu0 %v2412
    %2695 = vmatpush1.bf16.msra.mxu0 %v2411
    %2696 = vmatprep.subr.bf16.mxu0 %v2420
    %2697 = vmatpush1.bf16.msra.mxu0 %v2419
    %2698 = vmatprep.subr.bf16.mxu0 %v2428
    %2699 = vmatpush1.bf16.msra.mxu0 %v2427
    %2700 = vmatprep.subr.bf16.mxu0 %v2436
    %2701 = vmatpush1.bf16.msra.mxu0 %v2435
    %2702 = vmatprep.subr.bf16.mxu0 %v2444
    %2703 = vmatpush1.bf16.msra.mxu0 %v2443
    %2704 = vmatprep.subr.bf16.mxu0 %v2452
    %2705 = vmatpush1.bf16.msra.mxu0 %v2451
    %2706 = vmatprep.subr.bf16.mxu0 %v2460
    %2707 = vmatpush1.bf16.msra.mxu0 %v2459
    %2708 = vmatprep.subr.bf16.mxu0 %v2468
    %2709 = vmatpush1.bf16.msra.mxu0 %v2467
    %2710 = vmatprep.subr.bf16.mxu0 %v2476
    %2711 = vmatpush1.bf16.msra.mxu0 %v2475
    %2712 = vmatprep.subr.bf16.mxu0 %v2484
    %2713 = vmatpush1.bf16.msra.mxu0 %v2483
    %2714 = vmatprep.subr.bf16.mxu0 %v2492
    %2715 = vmatpush1.bf16.msra.mxu0 %v2491
    %2716 = vmatprep.subr.bf16.mxu0 %v2500
    %2717 = vmatpush1.bf16.msra.mxu0 %v2499
    %2718 = vmatprep.subr.bf16.mxu0 %v2508
    %2719 = vmatpush1.bf16.msra.mxu0 %v2507
    %2720 = vmatprep.subr.bf16.mxu0 %v2516
    %2721 = vmatpush1.bf16.msra.mxu0 %v2515
    %2722 = vmatprep.mubr.bf16.mxu0 %v652
    %2723 = vmatmul.mubr.bf16.gmra.mrb[0].mxu0 %v651
    %v2724 = vpop.f32.mrb[0].mxu0
    %v2725 = vadd.f32 %v1921, %v2724
    %v2726 = vpop.f32.mrb[0].mxu0
    %v2727 = vadd.f32 %v1923, %v2726
    %v2728 = vpop.f32.mrb[0].mxu0
    %v2729 = vpop.f32.mrb[0].mxu0
    %2730 = vdwg.mxu0
    %2731 = vmatprep.subr.bf16.mxu0 %v2398
    %2732 = vmatpush1.bf16.msra.mxu0 %v2397
    %2733 = vmatprep.subr.bf16.mxu0 %v2406
    %2734 = vmatpush1.bf16.msra.mxu0 %v2405
    %2735 = vmatprep.subr.bf16.mxu0 %v2414
    %2736 = vmatpush1.bf16.msra.mxu0 %v2413
    %2737 = vmatprep.subr.bf16.mxu0 %v2422
    %2738 = vmatpush1.bf16.msra.mxu0 %v2421
    %2739 = vmatprep.subr.bf16.mxu0 %v2430
    %2740 = vmatpush1.bf16.msra.mxu0 %v2429
    %2741 = vmatprep.subr.bf16.mxu0 %v2438
    %2742 = vmatpush1.bf16.msra.mxu0 %v2437
    %2743 = vmatprep.subr.bf16.mxu0 %v2446
    %2744 = vmatpush1.bf16.msra.mxu0 %v2445
    %2745 = vmatprep.subr.bf16.mxu0 %v2454
    %2746 = vmatpush1.bf16.msra.mxu0 %v2453
    %2747 = vmatprep.subr.bf16.mxu0 %v2462
    %2748 = vmatpush1.bf16.msra.mxu0 %v2461
    %2749 = vmatprep.subr.bf16.mxu0 %v2470
    %2750 = vmatpush1.bf16.msra.mxu0 %v2469
    %2751 = vmatprep.subr.bf16.mxu0 %v2478
    %2752 = vmatpush1.bf16.msra.mxu0 %v2477
    %2753 = vmatprep.subr.bf16.mxu0 %v2486
    %2754 = vmatpush1.bf16.msra.mxu0 %v2485
    %2755 = vmatprep.subr.bf16.mxu0 %v2494
    %2756 = vmatpush1.bf16.msra.mxu0 %v2493
    %2757 = vmatprep.subr.bf16.mxu0 %v2502
    %2758 = vmatpush1.bf16.msra.mxu0 %v2501
    %2759 = vmatprep.subr.bf16.mxu0 %v2510
    %2760 = vmatpush1.bf16.msra.mxu0 %v2509
    %2761 = vmatprep.subr.bf16.mxu0 %v2518
    %2762 = vmatpush1.bf16.msra.mxu0 %v2517
    %2763 = vmatprep.mubr.bf16.mxu0 %v652
    %2764 = vmatmul.mubr.bf16.gmra.mrb[0].mxu0 %v651
    %v2765 = vpop.f32.mrb[0].mxu0
    %v2766 = vadd.f32 %v1962, %v2765
    %v2767 = vpop.f32.mrb[0].mxu0
    %v2768 = vadd.f32 %v1964, %v2767
    %v2769 = vpop.f32.mrb[0].mxu0
    %v2770 = vpop.f32.mrb[0].mxu0
    %2771 = vdwg.mxu0
    %2772 = vmatprep.subr.bf16.mxu0 %v2400
    %2773 = vmatpush1.bf16.msra.mxu0 %v2399
    %2774 = vmatprep.subr.bf16.mxu0 %v2408
    %2775 = vmatpush1.bf16.msra.mxu0 %v2407
    %2776 = vmatprep.subr.bf16.mxu0 %v2416
    %2777 = vmatpush1.bf16.msra.mxu0 %v2415
    %2778 = vmatprep.subr.bf16.mxu0 %v2424
    %2779 = vmatpush1.bf16.msra.mxu0 %v2423
    %2780 = vmatprep.subr.bf16.mxu0 %v2432
    %2781 = vmatpush1.bf16.msra.mxu0 %v2431
    %2782 = vmatprep.subr.bf16.mxu0 %v2440
    %2783 = vmatpush1.bf16.msra.mxu0 %v2439
    %2784 = vmatprep.subr.bf16.mxu0 %v2448
    %2785 = vmatpush1.bf16.msra.mxu0 %v2447
    %2786 = vmatprep.subr.bf16.mxu0 %v2456
    %2787 = vmatpush1.bf16.msra.mxu0 %v2455
    %2788 = vmatprep.subr.bf16.mxu0 %v2464
    %2789 = vmatpush1.bf16.msra.mxu0 %v2463
    %2790 = vmatprep.subr.bf16.mxu0 %v2472
    %2791 = vmatpush1.bf16.msra.mxu0 %v2471
    %2792 = vmatprep.subr.bf16.mxu0 %v2480
    %2793 = vmatpush1.bf16.msra.mxu0 %v2479
    %2794 = vmatprep.subr.bf16.mxu0 %v2488
    %2795 = vmatpush1.bf16.msra.mxu0 %v2487
    %2796 = vmatprep.subr.bf16.mxu0 %v2496
    %2797 = vmatpush1.bf16.msra.mxu0 %v2495
    %2798 = vmatprep.subr.bf16.mxu0 %v2504
    %2799 = vmatpush1.bf16.msra.mxu0 %v2503
    %2800 = vmatprep.subr.bf16.mxu0 %v2512
    %2801 = vmatpush1.bf16.msra.mxu0 %v2511
    %2802 = vmatprep.subr.bf16.mxu0 %v2520
    %2803 = vmatpush1.bf16.msra.mxu0 %v2519
    %2804 = vmatprep.mubr.bf16.mxu0 %v652
    %2805 = vmatmul.mubr.bf16.gmra.mrb[0].mxu0 %v651
    %v2806 = vpop.f32.mrb[0].mxu0
    %v2807 = vadd.f32 %v2003, %v2806
    %v2808 = vpop.f32.mrb[0].mxu0
    %v2809 = vadd.f32 %v2005, %v2808
    %v2810 = vpop.f32.mrb[0].mxu0
    %v2811 = vpop.f32.mrb[0].mxu0
    %2812 = vdwg.mxu0
    %s2813 = scalar_lea.vmem [#allocation2], 128
    %v2814 = vld [vmem:[%s2813] sm:$0xff]
    %v2815 = vld [vmem:[%s2813 + $0x8] sm:$0xff]
    %v2816 = vld [vmem:[%s2813 + $0x10] sm:$0xff]
    %v2817 = vld [vmem:[%s2813 + $0x18] sm:$0xff]
    %v2818 = vld [vmem:[%s2813 + $0x20] sm:$0xff]
    %v2819 = vld [vmem:[%s2813 + $0x28] sm:$0xff]
    %v2820 = vld [vmem:[%s2813 + $0x30] sm:$0xff]
    %v2821 = vld [vmem:[%s2813 + $0x38] sm:$0xff]
    %2822 = vmatprep.subr.mxu0 %v112
    %2823 = vmatpush1.msra.mxu0 %v111
    %2824 = vmatprep.subr.mxu0 %v114
    %2825 = vmatpush1.msra.mxu0 %v113
    %2826 = vmatprep.subr.mxu0 %v116
    %2827 = vmatpush1.msra.mxu0 %v115
    %2828 = vmatprep.subr.mxu0 %v118
    %2829 = vmatpush1.msra.mxu0 %v117
    %2830 = vmatprep.subr.mxu0 %v120
    %2831 = vmatpush1.msra.mxu0 %v119
    %2832 = vmatprep.subr.mxu0 %v122
    %2833 = vmatpush1.msra.mxu0 %v121
    %2834 = vmatprep.subr.mxu0 %v124
    %2835 = vmatpush1.msra.mxu0 %v123
    %2836 = vmatprep.subr.mxu0 %v126
    %2837 = vmatpush1.msra.mxu0 %v125
    %2838 = vmatprep.subr.mxu0 %v128
    %2839 = vmatpush1.msra.mxu0 %v127
    %2840 = vmatprep.subr.mxu0 %v130
    %2841 = vmatpush1.msra.mxu0 %v129
    %2842 = vmatprep.subr.mxu0 %v132
    %2843 = vmatpush1.msra.mxu0 %v131
    %2844 = vmatprep.subr.mxu0 %v134
    %2845 = vmatpush1.msra.mxu0 %v133
    %2846 = vmatprep.subr.mxu0 %v136
    %2847 = vmatpush1.msra.mxu0 %v135
    %2848 = vmatprep.subr.mxu0 %v138
    %2849 = vmatpush1.msra.mxu0 %v137
    %2850 = vmatprep.subr.mxu0 %v140
    %2851 = vmatpush1.msra.mxu0 %v139
    %2852 = vmatprep.subr.mxu0 %v142
    %2853 = vmatpush1.msra.mxu0 %v141
    %2854 = vmatprep.subr.mxu0 %v144
    %2855 = vmatpush1.msra.mxu0 %v143
    %2856 = vmatprep.subr.mxu0 %v146
    %2857 = vmatpush1.msra.mxu0 %v145
    %2858 = vmatprep.subr.mxu0 %v148
    %2859 = vmatpush1.msra.mxu0 %v147
    %2860 = vmatprep.subr.mxu0 %v150
    %2861 = vmatpush1.msra.mxu0 %v149
    %2862 = vmatprep.subr.mxu0 %v152
    %2863 = vmatpush1.msra.mxu0 %v151
    %2864 = vmatprep.subr.mxu0 %v154
    %2865 = vmatpush1.msra.mxu0 %v153
    %2866 = vmatprep.subr.mxu0 %v156
    %2867 = vmatpush1.msra.mxu0 %v155
    %2868 = vmatprep.subr.mxu0 %v158
    %2869 = vmatpush1.msra.mxu0 %v157
    %2870 = vmatprep.subr.mxu0 %v160
    %2871 = vmatpush1.msra.mxu0 %v159
    %2872 = vmatprep.subr.mxu0 %v162
    %2873 = vmatpush1.msra.mxu0 %v161
    %2874 = vmatprep.subr.mxu0 %v164
    %2875 = vmatpush1.msra.mxu0 %v163
    %2876 = vmatprep.subr.mxu0 %v166
    %2877 = vmatpush1.msra.mxu0 %v165
    %2878 = vmatprep.subr.mxu0 %v168
    %2879 = vmatpush1.msra.mxu0 %v167
    %2880 = vmatprep.subr.mxu0 %v170
    %2881 = vmatpush1.msra.mxu0 %v169
    %2882 = vmatprep.subr.mxu0 %v172
    %2883 = vmatpush1.msra.mxu0 %v171
    %2884 = vmatprep.subr.mxu0 %v174
    %2885 = vmatpush1.msra.mxu0 %v173
    %2886 = vmatprep.mubr.f32.mxu0 %v2815
    %2887 = vmatmul.mubr.f32.gmra.mrb[0].mxu0 %v2814
    %v2888 = vpop.f32.mrb[0].mxu0
    %v2889 = vadd.f32 0.0, %v2888
    %v2890 = vpop.f32.mrb[0].mxu0
    %v2891 = vadd.f32 0.0, %v2890
    %2892 = vdwg.mxu0
    %2893 = vmatprep.subr.mxu0 %v176
    %2894 = vmatpush1.msra.mxu0 %v175
    %2895 = vmatprep.subr.mxu0 %v178
    %2896 = vmatpush1.msra.mxu0 %v177
    %2897 = vmatprep.subr.mxu0 %v180
    %2898 = vmatpush1.msra.mxu0 %v179
    %2899 = vmatprep.subr.mxu0 %v182
    %2900 = vmatpush1.msra.mxu0 %v181
    %2901 = vmatprep.subr.mxu0 %v184
    %2902 = vmatpush1.msra.mxu0 %v183
    %2903 = vmatprep.subr.mxu0 %v186
    %2904 = vmatpush1.msra.mxu0 %v185
    %2905 = vmatprep.subr.mxu0 %v188
    %2906 = vmatpush1.msra.mxu0 %v187
    %2907 = vmatprep.subr.mxu0 %v190
    %2908 = vmatpush1.msra.mxu0 %v189
    %2909 = vmatprep.subr.mxu0 %v192
    %2910 = vmatpush1.msra.mxu0 %v191
    %2911 = vmatprep.subr.mxu0 %v194
    %2912 = vmatpush1.msra.mxu0 %v193
    %2913 = vmatprep.subr.mxu0 %v196
    %2914 = vmatpush1.msra.mxu0 %v195
    %2915 = vmatprep.subr.mxu0 %v198
    %2916 = vmatpush1.msra.mxu0 %v197
    %2917 = vmatprep.subr.mxu0 %v200
    %2918 = vmatpush1.msra.mxu0 %v199
    %2919 = vmatprep.subr.mxu0 %v202
    %2920 = vmatpush1.msra.mxu0 %v201
    %2921 = vmatprep.subr.mxu0 %v204
    %2922 = vmatpush1.msra.mxu0 %v203
    %2923 = vmatprep.subr.mxu0 %v206
    %2924 = vmatpush1.msra.mxu0 %v205
    %2925 = vmatprep.subr.mxu0 %v208
    %2926 = vmatpush1.msra.mxu0 %v207
    %2927 = vmatprep.subr.mxu0 %v210
    %2928 = vmatpush1.msra.mxu0 %v209
    %2929 = vmatprep.subr.mxu0 %v212
    %2930 = vmatpush1.msra.mxu0 %v211
    %2931 = vmatprep.subr.mxu0 %v214
    %2932 = vmatpush1.msra.mxu0 %v213
    %2933 = vmatprep.subr.mxu0 %v216
    %2934 = vmatpush1.msra.mxu0 %v215
    %2935 = vmatprep.subr.mxu0 %v218
    %2936 = vmatpush1.msra.mxu0 %v217
    %2937 = vmatprep.subr.mxu0 %v220
    %2938 = vmatpush1.msra.mxu0 %v219
    %2939 = vmatprep.subr.mxu0 %v222
    %2940 = vmatpush1.msra.mxu0 %v221
    %2941 = vmatprep.subr.mxu0 %v224
    %2942 = vmatpush1.msra.mxu0 %v223
    %2943 = vmatprep.subr.mxu0 %v226
    %2944 = vmatpush1.msra.mxu0 %v225
    %2945 = vmatprep.subr.mxu0 %v228
    %2946 = vmatpush1.msra.mxu0 %v227
    %2947 = vmatprep.subr.mxu0 %v230
    %2948 = vmatpush1.msra.mxu0 %v229
    %2949 = vmatprep.subr.mxu0 %v232
    %2950 = vmatpush1.msra.mxu0 %v231
    %2951 = vmatprep.subr.mxu0 %v234
    %2952 = vmatpush1.msra.mxu0 %v233
    %2953 = vmatprep.subr.mxu0 %v236
    %2954 = vmatpush1.msra.mxu0 %v235
    %2955 = vmatprep.subr.mxu0 %v238
    %2956 = vmatpush1.msra.mxu0 %v237
    %2957 = vmatprep.mubr.f32.mxu0 %v2817
    %2958 = vmatmul.mubr.f32.gmra.mrb[0].mxu0 %v2816
    %v2959 = vpop.f32.mrb[0].mxu0
    %v2960 = vadd.f32 %v2889, %v2959
    %v2961 = vpop.f32.mrb[0].mxu0
    %v2962 = vadd.f32 %v2891, %v2961
    %2963 = vdwg.mxu0
    %2964 = vmatprep.subr.mxu0 %v240
    %2965 = vmatpush1.msra.mxu0 %v239
    %2966 = vmatprep.subr.mxu0 %v242
    %2967 = vmatpush1.msra.mxu0 %v241
    %2968 = vmatprep.subr.mxu0 %v244
    %2969 = vmatpush1.msra.mxu0 %v243
    %2970 = vmatprep.subr.mxu0 %v246
    %2971 = vmatpush1.msra.mxu0 %v245
    %2972 = vmatprep.subr.mxu0 %v248
    %2973 = vmatpush1.msra.mxu0 %v247
    %2974 = vmatprep.subr.mxu0 %v250
    %2975 = vmatpush1.msra.mxu0 %v249
    %2976 = vmatprep.subr.mxu0 %v252
    %2977 = vmatpush1.msra.mxu0 %v251
    %2978 = vmatprep.subr.mxu0 %v254
    %2979 = vmatpush1.msra.mxu0 %v253
    %2980 = vmatprep.subr.mxu0 %v256
    %2981 = vmatpush1.msra.mxu0 %v255
    %2982 = vmatprep.subr.mxu0 %v258
    %2983 = vmatpush1.msra.mxu0 %v257
    %2984 = vmatprep.subr.mxu0 %v260
    %2985 = vmatpush1.msra.mxu0 %v259
    %2986 = vmatprep.subr.mxu0 %v262
    %2987 = vmatpush1.msra.mxu0 %v261
    %2988 = vmatprep.subr.mxu0 %v264
    %2989 = vmatpush1.msra.mxu0 %v263
    %2990 = vmatprep.subr.mxu0 %v266
    %2991 = vmatpush1.msra.mxu0 %v265
    %2992 = vmatprep.subr.mxu0 %v268
    %2993 = vmatpush1.msra.mxu0 %v267
    %2994 = vmatprep.subr.mxu0 %v270
    %2995 = vmatpush1.msra.mxu0 %v269
    %2996 = vmatprep.subr.mxu0 %v272
    %2997 = vmatpush1.msra.mxu0 %v271
    %2998 = vmatprep.subr.mxu0 %v274
    %2999 = vmatpush1.msra.mxu0 %v273
    %3000 = vmatprep.subr.mxu0 %v276
    %3001 = vmatpush1.msra.mxu0 %v275
    %3002 = vmatprep.subr.mxu0 %v278
    %3003 = vmatpush1.msra.mxu0 %v277
    %3004 = vmatprep.subr.mxu0 %v280
    %3005 = vmatpush1.msra.mxu0 %v279
    %3006 = vmatprep.subr.mxu0 %v282
    %3007 = vmatpush1.msra.mxu0 %v281
    %3008 = vmatprep.subr.mxu0 %v284
    %3009 = vmatpush1.msra.mxu0 %v283
    %3010 = vmatprep.subr.mxu0 %v286
    %3011 = vmatpush1.msra.mxu0 %v285
    %3012 = vmatprep.subr.mxu0 %v288
    %3013 = vmatpush1.msra.mxu0 %v287
    %3014 = vmatprep.subr.mxu0 %v290
    %3015 = vmatpush1.msra.mxu0 %v289
    %3016 = vmatprep.subr.mxu0 %v292
    %3017 = vmatpush1.msra.mxu0 %v291
    %3018 = vmatprep.subr.mxu0 %v294
    %3019 = vmatpush1.msra.mxu0 %v293
    %3020 = vmatprep.subr.mxu0 %v296
    %3021 = vmatpush1.msra.mxu0 %v295
    %3022 = vmatprep.subr.mxu0 %v298
    %3023 = vmatpush1.msra.mxu0 %v297
    %3024 = vmatprep.subr.mxu0 %v300
    %3025 = vmatpush1.msra.mxu0 %v299
    %3026 = vmatprep.subr.mxu0 %v302
    %3027 = vmatpush1.msra.mxu0 %v301
    %3028 = vmatprep.mubr.f32.mxu0 %v2819
    %3029 = vmatmul.mubr.f32.gmra.mrb[0].mxu0 %v2818
    %v3030 = vpop.f32.mrb[0].mxu0
    %v3031 = vadd.f32 %v2960, %v3030
    %v3032 = vpop.f32.mrb[0].mxu0
    %v3033 = vadd.f32 %v2962, %v3032
    %3034 = vdwg.mxu0
    %3035 = vmatprep.subr.mxu0 %v304
    %3036 = vmatpush1.msra.mxu0 %v303
    %3037 = vmatprep.subr.mxu0 %v306
    %3038 = vmatpush1.msra.mxu0 %v305
    %3039 = vmatprep.subr.mxu0 %v308
    %3040 = vmatpush1.msra.mxu0 %v307
    %3041 = vmatprep.subr.mxu0 %v310
    %3042 = vmatpush1.msra.mxu0 %v309
    %3043 = vmatprep.subr.mxu0 %v312
    %3044 = vmatpush1.msra.mxu0 %v311
    %3045 = vmatprep.subr.mxu0 %v314
    %3046 = vmatpush1.msra.mxu0 %v313
    %3047 = vmatprep.subr.mxu0 %v316
    %3048 = vmatpush1.msra.mxu0 %v315
    %3049 = vmatprep.subr.mxu0 %v318
    %3050 = vmatpush1.msra.mxu0 %v317
    %3051 = vmatprep.subr.mxu0 %v320
    %3052 = vmatpush1.msra.mxu0 %v319
    %3053 = vmatprep.subr.mxu0 %v322
    %3054 = vmatpush1.msra.mxu0 %v321
    %3055 = vmatprep.subr.mxu0 %v324
    %3056 = vmatpush1.msra.mxu0 %v323
    %3057 = vmatprep.subr.mxu0 %v326
    %3058 = vmatpush1.msra.mxu0 %v325
    %3059 = vmatprep.subr.mxu0 %v328
    %3060 = vmatpush1.msra.mxu0 %v327
    %3061 = vmatprep.subr.mxu0 %v330
    %3062 = vmatpush1.msra.mxu0 %v329
    %3063 = vmatprep.subr.mxu0 %v332
    %3064 = vmatpush1.msra.mxu0 %v331
    %3065 = vmatprep.subr.mxu0 %v334
    %3066 = vmatpush1.msra.mxu0 %v333
    %3067 = vmatprep.subr.mxu0 %v336
    %3068 = vmatpush1.msra.mxu0 %v335
    %3069 = vmatprep.subr.mxu0 %v338
    %3070 = vmatpush1.msra.mxu0 %v337
    %3071 = vmatprep.subr.mxu0 %v340
    %3072 = vmatpush1.msra.mxu0 %v339
    %3073 = vmatprep.subr.mxu0 %v342
    %3074 = vmatpush1.msra.mxu0 %v341
    %3075 = vmatprep.subr.mxu0 %v344
    %3076 = vmatpush1.msra.mxu0 %v343
    %3077 = vmatprep.subr.mxu0 %v346
    %3078 = vmatpush1.msra.mxu0 %v345
    %3079 = vmatprep.subr.mxu0 %v348
    %3080 = vmatpush1.msra.mxu0 %v347
    %3081 = vmatprep.subr.mxu0 %v350
    %3082 = vmatpush1.msra.mxu0 %v349
    %3083 = vmatprep.subr.mxu0 %v352
    %3084 = vmatpush1.msra.mxu0 %v351
    %3085 = vmatprep.subr.mxu0 %v354
    %3086 = vmatpush1.msra.mxu0 %v353
    %3087 = vmatprep.subr.mxu0 %v356
    %3088 = vmatpush1.msra.mxu0 %v355
    %3089 = vmatprep.subr.mxu0 %v358
    %3090 = vmatpush1.msra.mxu0 %v357
    %3091 = vmatprep.subr.mxu0 %v360
    %3092 = vmatpush1.msra.mxu0 %v359
    %3093 = vmatprep.subr.mxu0 %v362
    %3094 = vmatpush1.msra.mxu0 %v361
    %3095 = vmatprep.subr.mxu0 %v364
    %3096 = vmatpush1.msra.mxu0 %v363
    %3097 = vmatprep.subr.mxu0 %v366
    %3098 = vmatpush1.msra.mxu0 %v365
    %3099 = vmatprep.mubr.f32.mxu0 %v2821
    %3100 = vmatmul.mubr.f32.gmra.mrb[0].mxu0 %v2820
    %v3101 = vpop.f32.mrb[0].mxu0
    %v3102 = vadd.f32 %v3031, %v3101
    %v3103 = vpop.f32.mrb[0].mxu0
    %v3104 = vadd.f32 %v3033, %v3103
    %3105 = vdwg.mxu0
    %v3106 = vpack.c.bf16 %v3102, %v3102
    %v3107 = vpack.c.bf16 %v3104, %v3104
    %s3108 = scalar_lea.vmem [#allocation7], 2048
    %v3109 = vld [vmem:[%s3108] sm:$0xff]
    %v3110 = vld [vmem:[%s3108 + $0x8] sm:$0xff]
    %v3111 = vld [vmem:[%s3108 + $0x10] sm:$0xff]
    %v3112 = vld [vmem:[%s3108 + $0x18] sm:$0xff]
    %v3113 = vld [vmem:[%s3108 + $0x20] sm:$0xff]
    %v3114 = vld [vmem:[%s3108 + $0x28] sm:$0xff]
    %v3115 = vld [vmem:[%s3108 + $0x30] sm:$0xff]
    %v3116 = vld [vmem:[%s3108 + $0x38] sm:$0xff]
    %v3117 = vld [vmem:[%s3108 + $0x40] sm:$0xff]
    %v3118 = vld [vmem:[%s3108 + $0x48] sm:$0xff]
    %v3119 = vld [vmem:[%s3108 + $0x50] sm:$0xff]
    %v3120 = vld [vmem:[%s3108 + $0x58] sm:$0xff]
    %v3121 = vld [vmem:[%s3108 + $0x60] sm:$0xff]
    %v3122 = vld [vmem:[%s3108 + $0x68] sm:$0xff]
    %v3123 = vld [vmem:[%s3108 + $0x70] sm:$0xff]
    %v3124 = vld [vmem:[%s3108 + $0x78] sm:$0xff]
    %v3125 = vld [vmem:[%s3108 + $0x80] sm:$0xff]
    %v3126 = vld [vmem:[%s3108 + $0x88] sm:$0xff]
    %v3127 = vld [vmem:[%s3108 + $0x90] sm:$0xff]
    %v3128 = vld [vmem:[%s3108 + $0x98] sm:$0xff]
    %v3129 = vld [vmem:[%s3108 + $0xa0] sm:$0xff]
    %v3130 = vld [vmem:[%s3108 + $0xa8] sm:$0xff]
    %v3131 = vld [vmem:[%s3108 + $0xb0] sm:$0xff]
    %v3132 = vld [vmem:[%s3108 + $0xb8] sm:$0xff]
    %v3133 = vld [vmem:[%s3108 + $0xc0] sm:$0xff]
    %v3134 = vld [vmem:[%s3108 + $0xc8] sm:$0xff]
    %v3135 = vld [vmem:[%s3108 + $0xd0] sm:$0xff]
    %v3136 = vld [vmem:[%s3108 + $0xd8] sm:$0xff]
    %v3137 = vld [vmem:[%s3108 + $0xe0] sm:$0xff]
    %v3138 = vld [vmem:[%s3108 + $0xe8] sm:$0xff]
    %v3139 = vld [vmem:[%s3108 + $0xf0] sm:$0xff]
    %v3140 = vld [vmem:[%s3108 + $0xf8] sm:$0xff]
    %v3141 = vld [vmem:[%s3108 + $0x100] sm:$0xff]
    %v3142 = vld [vmem:[%s3108 + $0x108] sm:$0xff]
    %v3143 = vld [vmem:[%s3108 + $0x110] sm:$0xff]
    %v3144 = vld [vmem:[%s3108 + $0x118] sm:$0xff]
    %v3145 = vld [vmem:[%s3108 + $0x120] sm:$0xff]
    %v3146 = vld [vmem:[%s3108 + $0x128] sm:$0xff]
    %v3147 = vld [vmem:[%s3108 + $0x130] sm:$0xff]
    %v3148 = vld [vmem:[%s3108 + $0x138] sm:$0xff]
    %v3149 = vld [vmem:[%s3108 + $0x140] sm:$0xff]
    %v3150 = vld [vmem:[%s3108 + $0x148] sm:$0xff]
    %v3151 = vld [vmem:[%s3108 + $0x150] sm:$0xff]
    %v3152 = vld [vmem:[%s3108 + $0x158] sm:$0xff]
    %v3153 = vld [vmem:[%s3108 + $0x160] sm:$0xff]
    %v3154 = vld [vmem:[%s3108 + $0x168] sm:$0xff]
    %v3155 = vld [vmem:[%s3108 + $0x170] sm:$0xff]
    %v3156 = vld [vmem:[%s3108 + $0x178] sm:$0xff]
    %v3157 = vld [vmem:[%s3108 + $0x180] sm:$0xff]
    %v3158 = vld [vmem:[%s3108 + $0x188] sm:$0xff]
    %v3159 = vld [vmem:[%s3108 + $0x190] sm:$0xff]
    %v3160 = vld [vmem:[%s3108 + $0x198] sm:$0xff]
    %v3161 = vld [vmem:[%s3108 + $0x1a0] sm:$0xff]
    %v3162 = vld [vmem:[%s3108 + $0x1a8] sm:$0xff]
    %v3163 = vld [vmem:[%s3108 + $0x1b0] sm:$0xff]
    %v3164 = vld [vmem:[%s3108 + $0x1b8] sm:$0xff]
    %v3165 = vld [vmem:[%s3108 + $0x1c0] sm:$0xff]
    %v3166 = vld [vmem:[%s3108 + $0x1c8] sm:$0xff]
    %v3167 = vld [vmem:[%s3108 + $0x1d0] sm:$0xff]
    %v3168 = vld [vmem:[%s3108 + $0x1d8] sm:$0xff]
    %v3169 = vld [vmem:[%s3108 + $0x1e0] sm:$0xff]
    %v3170 = vld [vmem:[%s3108 + $0x1e8] sm:$0xff]
    %v3171 = vld [vmem:[%s3108 + $0x1f0] sm:$0xff]
    %v3172 = vld [vmem:[%s3108 + $0x1f8] sm:$0xff]
    %v3173 = vld [vmem:[%s3108 + $0x200] sm:$0xff]
    %v3174 = vld [vmem:[%s3108 + $0x208] sm:$0xff]
    %v3175 = vld [vmem:[%s3108 + $0x210] sm:$0xff]
    %v3176 = vld [vmem:[%s3108 + $0x218] sm:$0xff]
    %v3177 = vld [vmem:[%s3108 + $0x220] sm:$0xff]
    %v3178 = vld [vmem:[%s3108 + $0x228] sm:$0xff]
    %v3179 = vld [vmem:[%s3108 + $0x230] sm:$0xff]
    %v3180 = vld [vmem:[%s3108 + $0x238] sm:$0xff]
    %v3181 = vld [vmem:[%s3108 + $0x240] sm:$0xff]
    %v3182 = vld [vmem:[%s3108 + $0x248] sm:$0xff]
    %v3183 = vld [vmem:[%s3108 + $0x250] sm:$0xff]
    %v3184 = vld [vmem:[%s3108 + $0x258] sm:$0xff]
    %v3185 = vld [vmem:[%s3108 + $0x260] sm:$0xff]
    %v3186 = vld [vmem:[%s3108 + $0x268] sm:$0xff]
    %v3187 = vld [vmem:[%s3108 + $0x270] sm:$0xff]
    %v3188 = vld [vmem:[%s3108 + $0x278] sm:$0xff]
    %v3189 = vld [vmem:[%s3108 + $0x280] sm:$0xff]
    %v3190 = vld [vmem:[%s3108 + $0x288] sm:$0xff]
    %v3191 = vld [vmem:[%s3108 + $0x290] sm:$0xff]
    %v3192 = vld [vmem:[%s3108 + $0x298] sm:$0xff]
    %v3193 = vld [vmem:[%s3108 + $0x2a0] sm:$0xff]
    %v3194 = vld [vmem:[%s3108 + $0x2a8] sm:$0xff]
    %v3195 = vld [vmem:[%s3108 + $0x2b0] sm:$0xff]
    %v3196 = vld [vmem:[%s3108 + $0x2b8] sm:$0xff]
    %v3197 = vld [vmem:[%s3108 + $0x2c0] sm:$0xff]
    %v3198 = vld [vmem:[%s3108 + $0x2c8] sm:$0xff]
    %v3199 = vld [vmem:[%s3108 + $0x2d0] sm:$0xff]
    %v3200 = vld [vmem:[%s3108 + $0x2d8] sm:$0xff]
    %v3201 = vld [vmem:[%s3108 + $0x2e0] sm:$0xff]
    %v3202 = vld [vmem:[%s3108 + $0x2e8] sm:$0xff]
    %v3203 = vld [vmem:[%s3108 + $0x2f0] sm:$0xff]
    %v3204 = vld [vmem:[%s3108 + $0x2f8] sm:$0xff]
    %v3205 = vld [vmem:[%s3108 + $0x300] sm:$0xff]
    %v3206 = vld [vmem:[%s3108 + $0x308] sm:$0xff]
    %v3207 = vld [vmem:[%s3108 + $0x310] sm:$0xff]
    %v3208 = vld [vmem:[%s3108 + $0x318] sm:$0xff]
    %v3209 = vld [vmem:[%s3108 + $0x320] sm:$0xff]
    %v3210 = vld [vmem:[%s3108 + $0x328] sm:$0xff]
    %v3211 = vld [vmem:[%s3108 + $0x330] sm:$0xff]
    %v3212 = vld [vmem:[%s3108 + $0x338] sm:$0xff]
    %v3213 = vld [vmem:[%s3108 + $0x340] sm:$0xff]
    %v3214 = vld [vmem:[%s3108 + $0x348] sm:$0xff]
    %v3215 = vld [vmem:[%s3108 + $0x350] sm:$0xff]
    %v3216 = vld [vmem:[%s3108 + $0x358] sm:$0xff]
    %v3217 = vld [vmem:[%s3108 + $0x360] sm:$0xff]
    %v3218 = vld [vmem:[%s3108 + $0x368] sm:$0xff]
    %v3219 = vld [vmem:[%s3108 + $0x370] sm:$0xff]
    %v3220 = vld [vmem:[%s3108 + $0x378] sm:$0xff]
    %v3221 = vld [vmem:[%s3108 + $0x380] sm:$0xff]
    %v3222 = vld [vmem:[%s3108 + $0x388] sm:$0xff]
    %v3223 = vld [vmem:[%s3108 + $0x390] sm:$0xff]
    %v3224 = vld [vmem:[%s3108 + $0x398] sm:$0xff]
    %v3225 = vld [vmem:[%s3108 + $0x3a0] sm:$0xff]
    %v3226 = vld [vmem:[%s3108 + $0x3a8] sm:$0xff]
    %v3227 = vld [vmem:[%s3108 + $0x3b0] sm:$0xff]
    %v3228 = vld [vmem:[%s3108 + $0x3b8] sm:$0xff]
    %v3229 = vld [vmem:[%s3108 + $0x3c0] sm:$0xff]
    %v3230 = vld [vmem:[%s3108 + $0x3c8] sm:$0xff]
    %v3231 = vld [vmem:[%s3108 + $0x3d0] sm:$0xff]
    %v3232 = vld [vmem:[%s3108 + $0x3d8] sm:$0xff]
    %v3233 = vld [vmem:[%s3108 + $0x3e0] sm:$0xff]
    %v3234 = vld [vmem:[%s3108 + $0x3e8] sm:$0xff]
    %v3235 = vld [vmem:[%s3108 + $0x3f0] sm:$0xff]
    %v3236 = vld [vmem:[%s3108 + $0x3f8] sm:$0xff]
    %v3365 = vunpack.c.l.b16 %v3109
    %v3366 = vunpack.c.h.b16 %v3109
    %v3367 = vunpack.c.l.b16 %v3110
    %v3368 = vunpack.c.h.b16 %v3110
    %v3369 = vunpack.c.l.b16 %v3111
    %v3370 = vunpack.c.h.b16 %v3111
    %v3371 = vunpack.c.l.b16 %v3112
    %v3372 = vunpack.c.h.b16 %v3112
    %v3373 = vunpack.c.l.b16 %v3113
    %v3374 = vunpack.c.h.b16 %v3113
    %v3375 = vunpack.c.l.b16 %v3114
    %v3376 = vunpack.c.h.b16 %v3114
    %v3377 = vunpack.c.l.b16 %v3115
    %v3378 = vunpack.c.h.b16 %v3115
    %v3379 = vunpack.c.l.b16 %v3116
    %v3380 = vunpack.c.h.b16 %v3116
    %v3381 = vunpack.c.l.b16 %v3117
    %v3382 = vunpack.c.h.b16 %v3117
    %v3383 = vunpack.c.l.b16 %v3118
    %v3384 = vunpack.c.h.b16 %v3118
    %v3385 = vunpack.c.l.b16 %v3119
    %v3386 = vunpack.c.h.b16 %v3119
    %v3387 = vunpack.c.l.b16 %v3120
    %v3388 = vunpack.c.h.b16 %v3120
    %v3389 = vunpack.c.l.b16 %v3121
    %v3390 = vunpack.c.h.b16 %v3121
    %v3391 = vunpack.c.l.b16 %v3122
    %v3392 = vunpack.c.h.b16 %v3122
    %v3393 = vunpack.c.l.b16 %v3123
    %v3394 = vunpack.c.h.b16 %v3123
    %v3395 = vunpack.c.l.b16 %v3124
    %v3396 = vunpack.c.h.b16 %v3124
    %v3397 = vunpack.c.l.b16 %v3125
    %v3398 = vunpack.c.h.b16 %v3125
    %v3399 = vunpack.c.l.b16 %v3126
    %v3400 = vunpack.c.h.b16 %v3126
    %v3401 = vunpack.c.l.b16 %v3127
    %v3402 = vunpack.c.h.b16 %v3127
    %v3403 = vunpack.c.l.b16 %v3128
    %v3404 = vunpack.c.h.b16 %v3128
    %v3405 = vunpack.c.l.b16 %v3129
    %v3406 = vunpack.c.h.b16 %v3129
    %v3407 = vunpack.c.l.b16 %v3130
    %v3408 = vunpack.c.h.b16 %v3130
    %v3409 = vunpack.c.l.b16 %v3131
    %v3410 = vunpack.c.h.b16 %v3131
    %v3411 = vunpack.c.l.b16 %v3132
    %v3412 = vunpack.c.h.b16 %v3132
    %v3413 = vunpack.c.l.b16 %v3133
    %v3414 = vunpack.c.h.b16 %v3133
    %v3415 = vunpack.c.l.b16 %v3134
    %v3416 = vunpack.c.h.b16 %v3134
    %v3417 = vunpack.c.l.b16 %v3135
    %v3418 = vunpack.c.h.b16 %v3135
    %v3419 = vunpack.c.l.b16 %v3136
    %v3420 = vunpack.c.h.b16 %v3136
    %v3421 = vunpack.c.l.b16 %v3137
    %v3422 = vunpack.c.h.b16 %v3137
    %v3423 = vunpack.c.l.b16 %v3138
    %v3424 = vunpack.c.h.b16 %v3138
    %v3425 = vunpack.c.l.b16 %v3139
    %v3426 = vunpack.c.h.b16 %v3139
    %v3427 = vunpack.c.l.b16 %v3140
    %v3428 = vunpack.c.h.b16 %v3140
    %v3429 = vunpack.c.l.b16 %v3141
    %v3430 = vunpack.c.h.b16 %v3141
    %v3431 = vunpack.c.l.b16 %v3142
    %v3432 = vunpack.c.h.b16 %v3142
    %v3433 = vunpack.c.l.b16 %v3143
    %v3434 = vunpack.c.h.b16 %v3143
    %v3435 = vunpack.c.l.b16 %v3144
    %v3436 = vunpack.c.h.b16 %v3144
    %v3437 = vunpack.c.l.b16 %v3145
    %v3438 = vunpack.c.h.b16 %v3145
    %v3439 = vunpack.c.l.b16 %v3146
    %v3440 = vunpack.c.h.b16 %v3146
    %v3441 = vunpack.c.l.b16 %v3147
    %v3442 = vunpack.c.h.b16 %v3147
    %v3443 = vunpack.c.l.b16 %v3148
    %v3444 = vunpack.c.h.b16 %v3148
    %v3445 = vunpack.c.l.b16 %v3149
    %v3446 = vunpack.c.h.b16 %v3149
    %v3447 = vunpack.c.l.b16 %v3150
    %v3448 = vunpack.c.h.b16 %v3150
    %v3449 = vunpack.c.l.b16 %v3151
    %v3450 = vunpack.c.h.b16 %v3151
    %v3451 = vunpack.c.l.b16 %v3152
    %v3452 = vunpack.c.h.b16 %v3152
    %v3453 = vunpack.c.l.b16 %v3153
    %v3454 = vunpack.c.h.b16 %v3153
    %v3455 = vunpack.c.l.b16 %v3154
    %v3456 = vunpack.c.h.b16 %v3154
    %v3457 = vunpack.c.l.b16 %v3155
    %v3458 = vunpack.c.h.b16 %v3155
    %v3459 = vunpack.c.l.b16 %v3156
    %v3460 = vunpack.c.h.b16 %v3156
    %v3461 = vunpack.c.l.b16 %v3157
    %v3462 = vunpack.c.h.b16 %v3157
    %v3463 = vunpack.c.l.b16 %v3158
    %v3464 = vunpack.c.h.b16 %v3158
    %v3465 = vunpack.c.l.b16 %v3159
    %v3466 = vunpack.c.h.b16 %v3159
    %v3467 = vunpack.c.l.b16 %v3160
    %v3468 = vunpack.c.h.b16 %v3160
    %v3469 = vunpack.c.l.b16 %v3161
    %v3470 = vunpack.c.h.b16 %v3161
    %v3471 = vunpack.c.l.b16 %v3162
    %v3472 = vunpack.c.h.b16 %v3162
    %v3473 = vunpack.c.l.b16 %v3163
    %v3474 = vunpack.c.h.b16 %v3163
    %v3475 = vunpack.c.l.b16 %v3164
    %v3476 = vunpack.c.h.b16 %v3164
    %v3477 = vunpack.c.l.b16 %v3165
    %v3478 = vunpack.c.h.b16 %v3165
    %v3479 = vunpack.c.l.b16 %v3166
    %v3480 = vunpack.c.h.b16 %v3166
    %v3481 = vunpack.c.l.b16 %v3167
    %v3482 = vunpack.c.h.b16 %v3167
    %v3483 = vunpack.c.l.b16 %v3168
    %v3484 = vunpack.c.h.b16 %v3168
    %v3485 = vunpack.c.l.b16 %v3169
    %v3486 = vunpack.c.h.b16 %v3169
    %v3487 = vunpack.c.l.b16 %v3170
    %v3488 = vunpack.c.h.b16 %v3170
    %v3489 = vunpack.c.l.b16 %v3171
    %v3490 = vunpack.c.h.b16 %v3171
    %v3491 = vunpack.c.l.b16 %v3172
    %v3492 = vunpack.c.h.b16 %v3172
    %v3493 = vunpack.c.l.b16 %v3173
    %v3494 = vunpack.c.h.b16 %v3173
    %v3495 = vunpack.c.l.b16 %v3174
    %v3496 = vunpack.c.h.b16 %v3174
    %v3497 = vunpack.c.l.b16 %v3175
    %v3498 = vunpack.c.h.b16 %v3175
    %v3499 = vunpack.c.l.b16 %v3176
    %v3500 = vunpack.c.h.b16 %v3176
    %v3501 = vunpack.c.l.b16 %v3177
    %v3502 = vunpack.c.h.b16 %v3177
    %v3503 = vunpack.c.l.b16 %v3178
    %v3504 = vunpack.c.h.b16 %v3178
    %v3505 = vunpack.c.l.b16 %v3179
    %v3506 = vunpack.c.h.b16 %v3179
    %v3507 = vunpack.c.l.b16 %v3180
    %v3508 = vunpack.c.h.b16 %v3180
    %v3509 = vunpack.c.l.b16 %v3181
    %v3510 = vunpack.c.h.b16 %v3181
    %v3511 = vunpack.c.l.b16 %v3182
    %v3512 = vunpack.c.h.b16 %v3182
    %v3513 = vunpack.c.l.b16 %v3183
    %v3514 = vunpack.c.h.b16 %v3183
    %v3515 = vunpack.c.l.b16 %v3184
    %v3516 = vunpack.c.h.b16 %v3184
    %v3517 = vunpack.c.l.b16 %v3185
    %v3518 = vunpack.c.h.b16 %v3185
    %v3519 = vunpack.c.l.b16 %v3186
    %v3520 = vunpack.c.h.b16 %v3186
    %v3521 = vunpack.c.l.b16 %v3187
    %v3522 = vunpack.c.h.b16 %v3187
    %v3523 = vunpack.c.l.b16 %v3188
    %v3524 = vunpack.c.h.b16 %v3188
    %v3525 = vunpack.c.l.b16 %v3189
    %v3526 = vunpack.c.h.b16 %v3189
    %v3527 = vunpack.c.l.b16 %v3190
    %v3528 = vunpack.c.h.b16 %v3190
    %v3529 = vunpack.c.l.b16 %v3191
    %v3530 = vunpack.c.h.b16 %v3191
    %v3531 = vunpack.c.l.b16 %v3192
    %v3532 = vunpack.c.h.b16 %v3192
    %v3533 = vunpack.c.l.b16 %v3193
    %v3534 = vunpack.c.h.b16 %v3193
    %v3535 = vunpack.c.l.b16 %v3194
    %v3536 = vunpack.c.h.b16 %v3194
    %v3537 = vunpack.c.l.b16 %v3195
    %v3538 = vunpack.c.h.b16 %v3195
    %v3539 = vunpack.c.l.b16 %v3196
    %v3540 = vunpack.c.h.b16 %v3196
    %v3541 = vunpack.c.l.b16 %v3197
    %v3542 = vunpack.c.h.b16 %v3197
    %v3543 = vunpack.c.l.b16 %v3198
    %v3544 = vunpack.c.h.b16 %v3198
    %v3545 = vunpack.c.l.b16 %v3199
    %v3546 = vunpack.c.h.b16 %v3199
    %v3547 = vunpack.c.l.b16 %v3200
    %v3548 = vunpack.c.h.b16 %v3200
    %v3549 = vunpack.c.l.b16 %v3201
    %v3550 = vunpack.c.h.b16 %v3201
    %v3551 = vunpack.c.l.b16 %v3202
    %v3552 = vunpack.c.h.b16 %v3202
    %v3553 = vunpack.c.l.b16 %v3203
    %v3554 = vunpack.c.h.b16 %v3203
    %v3555 = vunpack.c.l.b16 %v3204
    %v3556 = vunpack.c.h.b16 %v3204
    %v3557 = vunpack.c.l.b16 %v3205
    %v3558 = vunpack.c.h.b16 %v3205
    %v3559 = vunpack.c.l.b16 %v3206
    %v3560 = vunpack.c.h.b16 %v3206
    %v3561 = vunpack.c.l.b16 %v3207
    %v3562 = vunpack.c.h.b16 %v3207
    %v3563 = vunpack.c.l.b16 %v3208
    %v3564 = vunpack.c.h.b16 %v3208
    %v3565 = vunpack.c.l.b16 %v3209
    %v3566 = vunpack.c.h.b16 %v3209
    %v3567 = vunpack.c.l.b16 %v3210
    %v3568 = vunpack.c.h.b16 %v3210
    %v3569 = vunpack.c.l.b16 %v3211
    %v3570 = vunpack.c.h.b16 %v3211
    %v3571 = vunpack.c.l.b16 %v3212
    %v3572 = vunpack.c.h.b16 %v3212
    %v3573 = vunpack.c.l.b16 %v3213
    %v3574 = vunpack.c.h.b16 %v3213
    %v3575 = vunpack.c.l.b16 %v3214
    %v3576 = vunpack.c.h.b16 %v3214
    %v3577 = vunpack.c.l.b16 %v3215
    %v3578 = vunpack.c.h.b16 %v3215
    %v3579 = vunpack.c.l.b16 %v3216
    %v3580 = vunpack.c.h.b16 %v3216
    %v3581 = vunpack.c.l.b16 %v3217
    %v3582 = vunpack.c.h.b16 %v3217
    %v3583 = vunpack.c.l.b16 %v3218
    %v3584 = vunpack.c.h.b16 %v3218
    %v3585 = vunpack.c.l.b16 %v3219
    %v3586 = vunpack.c.h.b16 %v3219
    %v3587 = vunpack.c.l.b16 %v3220
    %v3588 = vunpack.c.h.b16 %v3220
    %v3589 = vunpack.c.l.b16 %v3221
    %v3590 = vunpack.c.h.b16 %v3221
    %v3591 = vunpack.c.l.b16 %v3222
    %v3592 = vunpack.c.h.b16 %v3222
    %v3593 = vunpack.c.l.b16 %v3223
    %v3594 = vunpack.c.h.b16 %v3223
    %v3595 = vunpack.c.l.b16 %v3224
    %v3596 = vunpack.c.h.b16 %v3224
    %v3597 = vunpack.c.l.b16 %v3225
    %v3598 = vunpack.c.h.b16 %v3225
    %v3599 = vunpack.c.l.b16 %v3226
    %v3600 = vunpack.c.h.b16 %v3226
    %v3601 = vunpack.c.l.b16 %v3227
    %v3602 = vunpack.c.h.b16 %v3227
    %v3603 = vunpack.c.l.b16 %v3228
    %v3604 = vunpack.c.h.b16 %v3228
    %v3605 = vunpack.c.l.b16 %v3229
    %v3606 = vunpack.c.h.b16 %v3229
    %v3607 = vunpack.c.l.b16 %v3230
    %v3608 = vunpack.c.h.b16 %v3230
    %v3609 = vunpack.c.l.b16 %v3231
    %v3610 = vunpack.c.h.b16 %v3231
    %v3611 = vunpack.c.l.b16 %v3232
    %v3612 = vunpack.c.h.b16 %v3232
    %v3613 = vunpack.c.l.b16 %v3233
    %v3614 = vunpack.c.h.b16 %v3233
    %v3615 = vunpack.c.l.b16 %v3234
    %v3616 = vunpack.c.h.b16 %v3234
    %v3617 = vunpack.c.l.b16 %v3235
    %v3618 = vunpack.c.h.b16 %v3235
    %v3619 = vunpack.c.l.b16 %v3236
    %v3620 = vunpack.c.h.b16 %v3236
    %v3621 = vpack.c.b16 %v3373, %v3365
    %v3622 = vpack.c.b16 %v3374, %v3366
    %v3623 = vpack.c.b16 %v3375, %v3367
    %v3624 = vpack.c.b16 %v3376, %v3368
    %v3625 = vpack.c.b16 %v3377, %v3369
    %v3626 = vpack.c.b16 %v3378, %v3370
    %v3627 = vpack.c.b16 %v3379, %v3371
    %v3628 = vpack.c.b16 %v3380, %v3372
    %v3629 = vpack.c.b16 %v3389, %v3381
    %v3630 = vpack.c.b16 %v3390, %v3382
    %v3631 = vpack.c.b16 %v3391, %v3383
    %v3632 = vpack.c.b16 %v3392, %v3384
    %v3633 = vpack.c.b16 %v3393, %v3385
    %v3634 = vpack.c.b16 %v3394, %v3386
    %v3635 = vpack.c.b16 %v3395, %v3387
    %v3636 = vpack.c.b16 %v3396, %v3388
    %v3637 = vpack.c.b16 %v3405, %v3397
    %v3638 = vpack.c.b16 %v3406, %v3398
    %v3639 = vpack.c.b16 %v3407, %v3399
    %v3640 = vpack.c.b16 %v3408, %v3400
    %v3641 = vpack.c.b16 %v3409, %v3401
    %v3642 = vpack.c.b16 %v3410, %v3402
    %v3643 = vpack.c.b16 %v3411, %v3403
    %v3644 = vpack.c.b16 %v3412, %v3404
    %v3645 = vpack.c.b16 %v3421, %v3413
    %v3646 = vpack.c.b16 %v3422, %v3414
    %v3647 = vpack.c.b16 %v3423, %v3415
    %v3648 = vpack.c.b16 %v3424, %v3416
    %v3649 = vpack.c.b16 %v3425, %v3417
    %v3650 = vpack.c.b16 %v3426, %v3418
    %v3651 = vpack.c.b16 %v3427, %v3419
    %v3652 = vpack.c.b16 %v3428, %v3420
    %v3653 = vpack.c.b16 %v3437, %v3429
    %v3654 = vpack.c.b16 %v3438, %v3430
    %v3655 = vpack.c.b16 %v3439, %v3431
    %v3656 = vpack.c.b16 %v3440, %v3432
    %v3657 = vpack.c.b16 %v3441, %v3433
    %v3658 = vpack.c.b16 %v3442, %v3434
    %v3659 = vpack.c.b16 %v3443, %v3435
    %v3660 = vpack.c.b16 %v3444, %v3436
    %v3661 = vpack.c.b16 %v3453, %v3445
    %v3662 = vpack.c.b16 %v3454, %v3446
    %v3663 = vpack.c.b16 %v3455, %v3447
    %v3664 = vpack.c.b16 %v3456, %v3448
    %v3665 = vpack.c.b16 %v3457, %v3449
    %v3666 = vpack.c.b16 %v3458, %v3450
    %v3667 = vpack.c.b16 %v3459, %v3451
    %v3668 = vpack.c.b16 %v3460, %v3452
    %v3669 = vpack.c.b16 %v3469, %v3461
    %v3670 = vpack.c.b16 %v3470, %v3462
    %v3671 = vpack.c.b16 %v3471, %v3463
    %v3672 = vpack.c.b16 %v3472, %v3464
    %v3673 = vpack.c.b16 %v3473, %v3465
    %v3674 = vpack.c.b16 %v3474, %v3466
    %v3675 = vpack.c.b16 %v3475, %v3467
    %v3676 = vpack.c.b16 %v3476, %v3468
    %v3677 = vpack.c.b16 %v3485, %v3477
    %v3678 = vpack.c.b16 %v3486, %v3478
    %v3679 = vpack.c.b16 %v3487, %v3479
    %v3680 = vpack.c.b16 %v3488, %v3480
    %v3681 = vpack.c.b16 %v3489, %v3481
    %v3682 = vpack.c.b16 %v3490, %v3482
    %v3683 = vpack.c.b16 %v3491, %v3483
    %v3684 = vpack.c.b16 %v3492, %v3484
    %v3685 = vpack.c.b16 %v3501, %v3493
    %v3686 = vpack.c.b16 %v3502, %v3494
    %v3687 = vpack.c.b16 %v3503, %v3495
    %v3688 = vpack.c.b16 %v3504, %v3496
    %v3689 = vpack.c.b16 %v3505, %v3497
    %v3690 = vpack.c.b16 %v3506, %v3498
    %v3691 = vpack.c.b16 %v3507, %v3499
    %v3692 = vpack.c.b16 %v3508, %v3500
    %v3693 = vpack.c.b16 %v3517, %v3509
    %v3694 = vpack.c.b16 %v3518, %v3510
    %v3695 = vpack.c.b16 %v3519, %v3511
    %v3696 = vpack.c.b16 %v3520, %v3512
    %v3697 = vpack.c.b16 %v3521, %v3513
    %v3698 = vpack.c.b16 %v3522, %v3514
    %v3699 = vpack.c.b16 %v3523, %v3515
    %v3700 = vpack.c.b16 %v3524, %v3516
    %v3701 = vpack.c.b16 %v3533, %v3525
    %v3702 = vpack.c.b16 %v3534, %v3526
    %v3703 = vpack.c.b16 %v3535, %v3527
    %v3704 = vpack.c.b16 %v3536, %v3528
    %v3705 = vpack.c.b16 %v3537, %v3529
    %v3706 = vpack.c.b16 %v3538, %v3530
    %v3707 = vpack.c.b16 %v3539, %v3531
    %v3708 = vpack.c.b16 %v3540, %v3532
    %v3709 = vpack.c.b16 %v3549, %v3541
    %v3710 = vpack.c.b16 %v3550, %v3542
    %v3711 = vpack.c.b16 %v3551, %v3543
    %v3712 = vpack.c.b16 %v3552, %v3544
    %v3713 = vpack.c.b16 %v3553, %v3545
    %v3714 = vpack.c.b16 %v3554, %v3546
    %v3715 = vpack.c.b16 %v3555, %v3547
    %v3716 = vpack.c.b16 %v3556, %v3548
    %v3717 = vpack.c.b16 %v3565, %v3557
    %v3718 = vpack.c.b16 %v3566, %v3558
    %v3719 = vpack.c.b16 %v3567, %v3559
    %v3720 = vpack.c.b16 %v3568, %v3560
    %v3721 = vpack.c.b16 %v3569, %v3561
    %v3722 = vpack.c.b16 %v3570, %v3562
    %v3723 = vpack.c.b16 %v3571, %v3563
    %v3724 = vpack.c.b16 %v3572, %v3564
    %v3725 = vpack.c.b16 %v3581, %v3573
    %v3726 = vpack.c.b16 %v3582, %v3574
    %v3727 = vpack.c.b16 %v3583, %v3575
    %v3728 = vpack.c.b16 %v3584, %v3576
    %v3729 = vpack.c.b16 %v3585, %v3577
    %v3730 = vpack.c.b16 %v3586, %v3578
    %v3731 = vpack.c.b16 %v3587, %v3579
    %v3732 = vpack.c.b16 %v3588, %v3580
    %v3733 = vpack.c.b16 %v3597, %v3589
    %v3734 = vpack.c.b16 %v3598, %v3590
    %v3735 = vpack.c.b16 %v3599, %v3591
    %v3736 = vpack.c.b16 %v3600, %v3592
    %v3737 = vpack.c.b16 %v3601, %v3593
    %v3738 = vpack.c.b16 %v3602, %v3594
    %v3739 = vpack.c.b16 %v3603, %v3595
    %v3740 = vpack.c.b16 %v3604, %v3596
    %v3741 = vpack.c.b16 %v3613, %v3605
    %v3742 = vpack.c.b16 %v3614, %v3606
    %v3743 = vpack.c.b16 %v3615, %v3607
    %v3744 = vpack.c.b16 %v3616, %v3608
    %v3745 = vpack.c.b16 %v3617, %v3609
    %v3746 = vpack.c.b16 %v3618, %v3610
    %v3747 = vpack.c.b16 %v3619, %v3611
    %v3748 = vpack.c.b16 %v3620, %v3612
    %3877 = vmatprep.subr.bf16.mxu0 %v3622
    %3878 = vmatpush1.bf16.msra.mxu0 %v3621
    %3879 = vmatprep.subr.bf16.mxu0 %v3630
    %3880 = vmatpush1.bf16.msra.mxu0 %v3629
    %3881 = vmatprep.subr.bf16.mxu0 %v3638
    %3882 = vmatpush1.bf16.msra.mxu0 %v3637
    %3883 = vmatprep.subr.bf16.mxu0 %v3646
    %3884 = vmatpush1.bf16.msra.mxu0 %v3645
    %3885 = vmatprep.subr.bf16.mxu0 %v3654
    %3886 = vmatpush1.bf16.msra.mxu0 %v3653
    %3887 = vmatprep.subr.bf16.mxu0 %v3662
    %3888 = vmatpush1.bf16.msra.mxu0 %v3661
    %3889 = vmatprep.subr.bf16.mxu0 %v3670
    %3890 = vmatpush1.bf16.msra.mxu0 %v3669
    %3891 = vmatprep.subr.bf16.mxu0 %v3678
    %3892 = vmatpush1.bf16.msra.mxu0 %v3677
    %3893 = vmatprep.subr.bf16.mxu0 %v3686
    %3894 = vmatpush1.bf16.msra.mxu0 %v3685
    %3895 = vmatprep.subr.bf16.mxu0 %v3694
    %3896 = vmatpush1.bf16.msra.mxu0 %v3693
    %3897 = vmatprep.subr.bf16.mxu0 %v3702
    %3898 = vmatpush1.bf16.msra.mxu0 %v3701
    %3899 = vmatprep.subr.bf16.mxu0 %v3710
    %3900 = vmatpush1.bf16.msra.mxu0 %v3709
    %3901 = vmatprep.subr.bf16.mxu0 %v3718
    %3902 = vmatpush1.bf16.msra.mxu0 %v3717
    %3903 = vmatprep.subr.bf16.mxu0 %v3726
    %3904 = vmatpush1.bf16.msra.mxu0 %v3725
    %3905 = vmatprep.subr.bf16.mxu0 %v3734
    %3906 = vmatpush1.bf16.msra.mxu0 %v3733
    %3907 = vmatprep.subr.bf16.mxu0 %v3742
    %3908 = vmatpush1.bf16.msra.mxu0 %v3741
    %3909 = vmatprep.mubr.bf16.mxu0 %v3107
    %3910 = vmatmul.mubr.bf16.gmra.mrb[0].mxu0 %v3106
    %v3911 = vpop.f32.mrb[0].mxu0
    %v3912 = vadd.f32 0.0, %v3911
    %v3913 = vpop.f32.mrb[0].mxu0
    %v3914 = vadd.f32 0.0, %v3913
    %v3915 = vpop.f32.mrb[0].mxu0
    %v3916 = vpop.f32.mrb[0].mxu0
    %3917 = vdwg.mxu0
    %3918 = vmatprep.subr.bf16.mxu0 %v3624
    %3919 = vmatpush1.bf16.msra.mxu0 %v3623
    %3920 = vmatprep.subr.bf16.mxu0 %v3632
    %3921 = vmatpush1.bf16.msra.mxu0 %v3631
    %3922 = vmatprep.subr.bf16.mxu0 %v3640
    %3923 = vmatpush1.bf16.msra.mxu0 %v3639
    %3924 = vmatprep.subr.bf16.mxu0 %v3648
    %3925 = vmatpush1.bf16.msra.mxu0 %v3647
    %3926 = vmatprep.subr.bf16.mxu0 %v3656
    %3927 = vmatpush1.bf16.msra.mxu0 %v3655
    %3928 = vmatprep.subr.bf16.mxu0 %v3664
    %3929 = vmatpush1.bf16.msra.mxu0 %v3663
    %3930 = vmatprep.subr.bf16.mxu0 %v3672
    %3931 = vmatpush1.bf16.msra.mxu0 %v3671
    %3932 = vmatprep.subr.bf16.mxu0 %v3680
    %3933 = vmatpush1.bf16.msra.mxu0 %v3679
    %3934 = vmatprep.subr.bf16.mxu0 %v3688
    %3935 = vmatpush1.bf16.msra.mxu0 %v3687
    %3936 = vmatprep.subr.bf16.mxu0 %v3696
    %3937 = vmatpush1.bf16.msra.mxu0 %v3695
    %3938 = vmatprep.subr.bf16.mxu0 %v3704
    %3939 = vmatpush1.bf16.msra.mxu0 %v3703
    %3940 = vmatprep.subr.bf16.mxu0 %v3712
    %3941 = vmatpush1.bf16.msra.mxu0 %v3711
    %3942 = vmatprep.subr.bf16.mxu0 %v3720
    %3943 = vmatpush1.bf16.msra.mxu0 %v3719
    %3944 = vmatprep.subr.bf16.mxu0 %v3728
    %3945 = vmatpush1.bf16.msra.mxu0 %v3727
    %3946 = vmatprep.subr.bf16.mxu0 %v3736
    %3947 = vmatpush1.bf16.msra.mxu0 %v3735
    %3948 = vmatprep.subr.bf16.mxu0 %v3744
    %3949 = vmatpush1.bf16.msra.mxu0 %v3743
    %3950 = vmatprep.mubr.bf16.mxu0 %v3107
    %3951 = vmatmul.mubr.bf16.gmra.mrb[0].mxu0 %v3106
    %v3952 = vpop.f32.mrb[0].mxu0
    %v3953 = vadd.f32 0.0, %v3952
    %v3954 = vpop.f32.mrb[0].mxu0
    %v3955 = vadd.f32 0.0, %v3954
    %v3956 = vpop.f32.mrb[0].mxu0
    %v3957 = vpop.f32.mrb[0].mxu0
    %3958 = vdwg.mxu0
    %3959 = vmatprep.subr.bf16.mxu0 %v3626
    %3960 = vmatpush1.bf16.msra.mxu0 %v3625
    %3961 = vmatprep.subr.bf16.mxu0 %v3634
    %3962 = vmatpush1.bf16.msra.mxu0 %v3633
    %3963 = vmatprep.subr.bf16.mxu0 %v3642
    %3964 = vmatpush1.bf16.msra.mxu0 %v3641
    %3965 = vmatprep.subr.bf16.mxu0 %v3650
    %3966 = vmatpush1.bf16.msra.mxu0 %v3649
    %3967 = vmatprep.subr.bf16.mxu0 %v3658
    %3968 = vmatpush1.bf16.msra.mxu0 %v3657
    %3969 = vmatprep.subr.bf16.mxu0 %v3666
    %3970 = vmatpush1.bf16.msra.mxu0 %v3665
    %3971 = vmatprep.subr.bf16.mxu0 %v3674
    %3972 = vmatpush1.bf16.msra.mxu0 %v3673
    %3973 = vmatprep.subr.bf16.mxu0 %v3682
    %3974 = vmatpush1.bf16.msra.mxu0 %v3681
    %3975 = vmatprep.subr.bf16.mxu0 %v3690
    %3976 = vmatpush1.bf16.msra.mxu0 %v3689
    %3977 = vmatprep.subr.bf16.mxu0 %v3698
    %3978 = vmatpush1.bf16.msra.mxu0 %v3697
    %3979 = vmatprep.subr.bf16.mxu0 %v3706
    %3980 = vmatpush1.bf16.msra.mxu0 %v3705
    %3981 = vmatprep.subr.bf16.mxu0 %v3714
    %3982 = vmatpush1.bf16.msra.mxu0 %v3713
    %3983 = vmatprep.subr.bf16.mxu0 %v3722
    %3984 = vmatpush1.bf16.msra.mxu0 %v3721
    %3985 = vmatprep.subr.bf16.mxu0 %v3730
    %3986 = vmatpush1.bf16.msra.mxu0 %v3729
    %3987 = vmatprep.subr.bf16.mxu0 %v3738
    %3988 = vmatpush1.bf16.msra.mxu0 %v3737
    %3989 = vmatprep.subr.bf16.mxu0 %v3746
    %3990 = vmatpush1.bf16.msra.mxu0 %v3745
    %3991 = vmatprep.mubr.bf16.mxu0 %v3107
    %3992 = vmatmul.mubr.bf16.gmra.mrb[0].mxu0 %v3106
    %v3993 = vpop.f32.mrb[0].mxu0
    %v3994 = vadd.f32 0.0, %v3993
    %v3995 = vpop.f32.mrb[0].mxu0
    %v3996 = vadd.f32 0.0, %v3995
    %v3997 = vpop.f32.mrb[0].mxu0
    %v3998 = vpop.f32.mrb[0].mxu0
    %3999 = vdwg.mxu0
    %4000 = vmatprep.subr.bf16.mxu0 %v3628
    %4001 = vmatpush1.bf16.msra.mxu0 %v3627
    %4002 = vmatprep.subr.bf16.mxu0 %v3636
    %4003 = vmatpush1.bf16.msra.mxu0 %v3635
    %4004 = vmatprep.subr.bf16.mxu0 %v3644
    %4005 = vmatpush1.bf16.msra.mxu0 %v3643
    %4006 = vmatprep.subr.bf16.mxu0 %v3652
    %4007 = vmatpush1.bf16.msra.mxu0 %v3651
    %4008 = vmatprep.subr.bf16.mxu0 %v3660
    %4009 = vmatpush1.bf16.msra.mxu0 %v3659
    %4010 = vmatprep.subr.bf16.mxu0 %v3668
    %4011 = vmatpush1.bf16.msra.mxu0 %v3667
    %4012 = vmatprep.subr.bf16.mxu0 %v3676
    %4013 = vmatpush1.bf16.msra.mxu0 %v3675
    %4014 = vmatprep.subr.bf16.mxu0 %v3684
    %4015 = vmatpush1.bf16.msra.mxu0 %v3683
    %4016 = vmatprep.subr.bf16.mxu0 %v3692
    %4017 = vmatpush1.bf16.msra.mxu0 %v3691
    %4018 = vmatprep.subr.bf16.mxu0 %v3700
    %4019 = vmatpush1.bf16.msra.mxu0 %v3699
    %4020 = vmatprep.subr.bf16.mxu0 %v3708
    %4021 = vmatpush1.bf16.msra.mxu0 %v3707
    %4022 = vmatprep.subr.bf16.mxu0 %v3716
    %4023 = vmatpush1.bf16.msra.mxu0 %v3715
    %4024 = vmatprep.subr.bf16.mxu0 %v3724
    %4025 = vmatpush1.bf16.msra.mxu0 %v3723
    %4026 = vmatprep.subr.bf16.mxu0 %v3732
    %4027 = vmatpush1.bf16.msra.mxu0 %v3731
    %4028 = vmatprep.subr.bf16.mxu0 %v3740
    %4029 = vmatpush1.bf16.msra.mxu0 %v3739
    %4030 = vmatprep.subr.bf16.mxu0 %v3748
    %4031 = vmatpush1.bf16.msra.mxu0 %v3747
    %4032 = vmatprep.mubr.bf16.mxu0 %v3107
    %4033 = vmatmul.mubr.bf16.gmra.mrb[0].mxu0 %v3106
    %v4034 = vpop.f32.mrb[0].mxu0
    %v4035 = vadd.f32 0.0, %v4034
    %v4036 = vpop.f32.mrb[0].mxu0
    %v4037 = vadd.f32 0.0, %v4036
    %v4038 = vpop.f32.mrb[0].mxu0
    %v4039 = vpop.f32.mrb[0].mxu0
    %4040 = vdwg.mxu0
    %v4041 = vadd.f32 %v2684, %v3912
    %v4042 = vadd.f32 %v2686, %v3914
    %v4043 = vadd.f32 %v2725, %v3953
    %v4044 = vadd.f32 %v2727, %v3955
    %v4045 = vadd.f32 %v2766, %v3994
    %v4046 = vadd.f32 %v2768, %v3996
    %v4047 = vadd.f32 %v2807, %v4035
    %v4048 = vadd.f32 %v2809, %v4037
    %v4049 = vld [vmem:[#allocation8] sm:$0xff]
    %v4051 = vlaneseq
    %v4052 = vshrl.u32 %v4051, 7
    %v4053 = vsub.s32 0, %v4052
    %v4054 = vrot.slane %v4049, %v4053
    %v4055 = vlaneseq
    %v4056 = vshrl.u32 %v4055, 7
    %v4057 = vsub.s32 1, %v4056
    %v4058 = vrot.slane %v4049, %v4057
    %v4059 = vlaneseq
    %v4060 = vshrl.u32 %v4059, 7
    %v4061 = vsub.s32 2, %v4060
    %v4062 = vrot.slane %v4049, %v4061
    %v4063 = vlaneseq
    %v4064 = vshrl.u32 %v4063, 7
    %v4065 = vsub.s32 3, %v4064
    %v4066 = vrot.slane %v4049, %v4065
    %v4067 = vlaneseq
    %v4068 = vshrl.u32 %v4067, 7
    %v4069 = vsub.s32 4, %v4068
    %v4070 = vrot.slane %v4049, %v4069
    %v4071 = vlaneseq
    %v4072 = vshrl.u32 %v4071, 7
    %v4073 = vsub.s32 5, %v4072
    %v4074 = vrot.slane %v4049, %v4073
    %v4075 = vlaneseq
    %v4076 = vshrl.u32 %v4075, 7
    %v4077 = vsub.s32 6, %v4076
    %v4078 = vrot.slane %v4049, %v4077
    %v4079 = vlaneseq
    %v4080 = vshrl.u32 %v4079, 7
    %v4081 = vsub.s32 7, %v4080
    %v4082 = vrot.slane %v4049, %v4081
    %v4091 = vadd.f32 %v4041, %v4054
    %v4092 = vadd.f32 %v4042, %v4058
    %v4093 = vadd.f32 %v4043, %v4062
    %v4094 = vadd.f32 %v4044, %v4066
    %v4095 = vadd.f32 %v4045, %v4070
    %v4096 = vadd.f32 %v4046, %v4074
    %v4097 = vadd.f32 %v4047, %v4078
    %v4098 = vadd.f32 %v4048, %v4082
    %v4099 = vmax.f32 %v4091, 0.0
    %v4100 = vmax.f32 %v4092, 0.0
    %v4101 = vmax.f32 %v4093, 0.0
    %v4102 = vmax.f32 %v4094, 0.0
    %v4103 = vmax.f32 %v4095, 0.0
    %v4104 = vmax.f32 %v4096, 0.0
    %v4105 = vmax.f32 %v4097, 0.0
    %v4106 = vmax.f32 %v4098, 0.0
    %v4107 = vpack.c.bf16 %v4099, %v4099
    %v4108 = vpack.c.bf16 %v4100, %v4100
    %v4109 = vpack.c.bf16 %v4101, %v4101
    %v4110 = vpack.c.bf16 %v4102, %v4102
    %v4111 = vpack.c.bf16 %v4103, %v4103
    %v4112 = vpack.c.bf16 %v4104, %v4104
    %v4113 = vpack.c.bf16 %v4105, %v4105
    %v4114 = vpack.c.bf16 %v4106, %v4106
    %v4115 = vld [vmem:[#allocation10] sm:$0xf]
    %v4116 = vld [vmem:[#allocation10 + $0x4] sm:$0xf]
    %v4117 = vld [vmem:[#allocation10 + $0x8] sm:$0xf]
    %v4118 = vld [vmem:[#allocation10 + $0xc] sm:$0xf]
    %v4119 = vld [vmem:[#allocation10 + $0x10] sm:$0xf]
    %v4120 = vld [vmem:[#allocation10 + $0x14] sm:$0xf]
    %v4121 = vld [vmem:[#allocation10 + $0x18] sm:$0xf]
    %v4122 = vld [vmem:[#allocation10 + $0x1c] sm:$0xf]
    %v4123 = vld [vmem:[#allocation10 + $0x20] sm:$0xf]
    %v4124 = vld [vmem:[#allocation10 + $0x24] sm:$0xf]
    %v4125 = vld [vmem:[#allocation10 + $0x28] sm:$0xf]
    %v4126 = vld [vmem:[#allocation10 + $0x2c] sm:$0xf]
    %v4127 = vld [vmem:[#allocation10 + $0x30] sm:$0xf]
    %v4128 = vld [vmem:[#allocation10 + $0x34] sm:$0xf]
    %v4129 = vld [vmem:[#allocation10 + $0x38] sm:$0xf]
    %v4130 = vld [vmem:[#allocation10 + $0x3c] sm:$0xf]
    %v4131 = vld [vmem:[#allocation10 + $0x40] sm:$0xf]
    %v4132 = vld [vmem:[#allocation10 + $0x44] sm:$0xf]
    %v4133 = vld [vmem:[#allocation10 + $0x48] sm:$0xf]
    %v4134 = vld [vmem:[#allocation10 + $0x4c] sm:$0xf]
    %v4135 = vld [vmem:[#allocation10 + $0x50] sm:$0xf]
    %v4136 = vld [vmem:[#allocation10 + $0x54] sm:$0xf]
    %v4137 = vld [vmem:[#allocation10 + $0x58] sm:$0xf]
    %v4138 = vld [vmem:[#allocation10 + $0x5c] sm:$0xf]
    %v4139 = vld [vmem:[#allocation10 + $0x60] sm:$0xf]
    %v4140 = vld [vmem:[#allocation10 + $0x64] sm:$0xf]
    %v4141 = vld [vmem:[#allocation10 + $0x68] sm:$0xf]
    %v4142 = vld [vmem:[#allocation10 + $0x6c] sm:$0xf]
    %v4143 = vld [vmem:[#allocation10 + $0x70] sm:$0xf]
    %v4144 = vld [vmem:[#allocation10 + $0x74] sm:$0xf]
    %v4145 = vld [vmem:[#allocation10 + $0x78] sm:$0xf]
    %v4146 = vld [vmem:[#allocation10 + $0x7c] sm:$0xf]
    %v4147 = vld [vmem:[#allocation10 + $0x80] sm:$0xf]
    %v4148 = vld [vmem:[#allocation10 + $0x84] sm:$0xf]
    %v4149 = vld [vmem:[#allocation10 + $0x88] sm:$0xf]
    %v4150 = vld [vmem:[#allocation10 + $0x8c] sm:$0xf]
    %v4151 = vld [vmem:[#allocation10 + $0x90] sm:$0xf]
    %v4152 = vld [vmem:[#allocation10 + $0x94] sm:$0xf]
    %v4153 = vld [vmem:[#allocation10 + $0x98] sm:$0xf]
    %v4154 = vld [vmem:[#allocation10 + $0x9c] sm:$0xf]
    %v4155 = vld [vmem:[#allocation10 + $0xa0] sm:$0xf]
    %v4156 = vld [vmem:[#allocation10 + $0xa4] sm:$0xf]
    %v4157 = vld [vmem:[#allocation10 + $0xa8] sm:$0xf]
    %v4158 = vld [vmem:[#allocation10 + $0xac] sm:$0xf]
    %v4159 = vld [vmem:[#allocation10 + $0xb0] sm:$0xf]
    %v4160 = vld [vmem:[#allocation10 + $0xb4] sm:$0xf]
    %v4161 = vld [vmem:[#allocation10 + $0xb8] sm:$0xf]
    %v4162 = vld [vmem:[#allocation10 + $0xbc] sm:$0xf]
    %v4163 = vld [vmem:[#allocation10 + $0xc0] sm:$0xf]
    %v4164 = vld [vmem:[#allocation10 + $0xc4] sm:$0xf]
    %v4165 = vld [vmem:[#allocation10 + $0xc8] sm:$0xf]
    %v4166 = vld [vmem:[#allocation10 + $0xcc] sm:$0xf]
    %v4167 = vld [vmem:[#allocation10 + $0xd0] sm:$0xf]
    %v4168 = vld [vmem:[#allocation10 + $0xd4] sm:$0xf]
    %v4169 = vld [vmem:[#allocation10 + $0xd8] sm:$0xf]
    %v4170 = vld [vmem:[#allocation10 + $0xdc] sm:$0xf]
    %v4171 = vld [vmem:[#allocation10 + $0xe0] sm:$0xf]
    %v4172 = vld [vmem:[#allocation10 + $0xe4] sm:$0xf]
    %v4173 = vld [vmem:[#allocation10 + $0xe8] sm:$0xf]
    %v4174 = vld [vmem:[#allocation10 + $0xec] sm:$0xf]
    %v4175 = vld [vmem:[#allocation10 + $0xf0] sm:$0xf]
    %v4176 = vld [vmem:[#allocation10 + $0xf4] sm:$0xf]
    %v4177 = vld [vmem:[#allocation10 + $0xf8] sm:$0xf]
    %v4178 = vld [vmem:[#allocation10 + $0xfc] sm:$0xf]
    %v4179 = vld [vmem:[#allocation10 + $0x100] sm:$0xf]
    %v4180 = vld [vmem:[#allocation10 + $0x104] sm:$0xf]
    %v4181 = vld [vmem:[#allocation10 + $0x108] sm:$0xf]
    %v4182 = vld [vmem:[#allocation10 + $0x10c] sm:$0xf]
    %v4183 = vld [vmem:[#allocation10 + $0x110] sm:$0xf]
    %v4184 = vld [vmem:[#allocation10 + $0x114] sm:$0xf]
    %v4185 = vld [vmem:[#allocation10 + $0x118] sm:$0xf]
    %v4186 = vld [vmem:[#allocation10 + $0x11c] sm:$0xf]
    %v4187 = vld [vmem:[#allocation10 + $0x120] sm:$0xf]
    %v4188 = vld [vmem:[#allocation10 + $0x124] sm:$0xf]
    %v4189 = vld [vmem:[#allocation10 + $0x128] sm:$0xf]
    %v4190 = vld [vmem:[#allocation10 + $0x12c] sm:$0xf]
    %v4191 = vld [vmem:[#allocation10 + $0x130] sm:$0xf]
    %v4192 = vld [vmem:[#allocation10 + $0x134] sm:$0xf]
    %v4193 = vld [vmem:[#allocation10 + $0x138] sm:$0xf]
    %v4194 = vld [vmem:[#allocation10 + $0x13c] sm:$0xf]
    %v4195 = vld [vmem:[#allocation10 + $0x140] sm:$0xf]
    %v4196 = vld [vmem:[#allocation10 + $0x144] sm:$0xf]
    %v4197 = vld [vmem:[#allocation10 + $0x148] sm:$0xf]
    %v4198 = vld [vmem:[#allocation10 + $0x14c] sm:$0xf]
    %v4199 = vld [vmem:[#allocation10 + $0x150] sm:$0xf]
    %v4200 = vld [vmem:[#allocation10 + $0x154] sm:$0xf]
    %v4201 = vld [vmem:[#allocation10 + $0x158] sm:$0xf]
    %v4202 = vld [vmem:[#allocation10 + $0x15c] sm:$0xf]
    %v4203 = vld [vmem:[#allocation10 + $0x160] sm:$0xf]
    %v4204 = vld [vmem:[#allocation10 + $0x164] sm:$0xf]
    %v4205 = vld [vmem:[#allocation10 + $0x168] sm:$0xf]
    %v4206 = vld [vmem:[#allocation10 + $0x16c] sm:$0xf]
    %v4207 = vld [vmem:[#allocation10 + $0x170] sm:$0xf]
    %v4208 = vld [vmem:[#allocation10 + $0x174] sm:$0xf]
    %v4209 = vld [vmem:[#allocation10 + $0x178] sm:$0xf]
    %v4210 = vld [vmem:[#allocation10 + $0x17c] sm:$0xf]
    %v4211 = vld [vmem:[#allocation10 + $0x180] sm:$0xf]
    %v4212 = vld [vmem:[#allocation10 + $0x184] sm:$0xf]
    %v4213 = vld [vmem:[#allocation10 + $0x188] sm:$0xf]
    %v4214 = vld [vmem:[#allocation10 + $0x18c] sm:$0xf]
    %v4215 = vld [vmem:[#allocation10 + $0x190] sm:$0xf]
    %v4216 = vld [vmem:[#allocation10 + $0x194] sm:$0xf]
    %v4217 = vld [vmem:[#allocation10 + $0x198] sm:$0xf]
    %v4218 = vld [vmem:[#allocation10 + $0x19c] sm:$0xf]
    %v4219 = vld [vmem:[#allocation10 + $0x1a0] sm:$0xf]
    %v4220 = vld [vmem:[#allocation10 + $0x1a4] sm:$0xf]
    %v4221 = vld [vmem:[#allocation10 + $0x1a8] sm:$0xf]
    %v4222 = vld [vmem:[#allocation10 + $0x1ac] sm:$0xf]
    %v4223 = vld [vmem:[#allocation10 + $0x1b0] sm:$0xf]
    %v4224 = vld [vmem:[#allocation10 + $0x1b4] sm:$0xf]
    %v4225 = vld [vmem:[#allocation10 + $0x1b8] sm:$0xf]
    %v4226 = vld [vmem:[#allocation10 + $0x1bc] sm:$0xf]
    %v4227 = vld [vmem:[#allocation10 + $0x1c0] sm:$0xf]
    %v4228 = vld [vmem:[#allocation10 + $0x1c4] sm:$0xf]
    %v4229 = vld [vmem:[#allocation10 + $0x1c8] sm:$0xf]
    %v4230 = vld [vmem:[#allocation10 + $0x1cc] sm:$0xf]
    %v4231 = vld [vmem:[#allocation10 + $0x1d0] sm:$0xf]
    %v4232 = vld [vmem:[#allocation10 + $0x1d4] sm:$0xf]
    %v4233 = vld [vmem:[#allocation10 + $0x1d8] sm:$0xf]
    %v4234 = vld [vmem:[#allocation10 + $0x1dc] sm:$0xf]
    %v4235 = vld [vmem:[#allocation10 + $0x1e0] sm:$0xf]
    %v4236 = vld [vmem:[#allocation10 + $0x1e4] sm:$0xf]
    %v4237 = vld [vmem:[#allocation10 + $0x1e8] sm:$0xf]
    %v4238 = vld [vmem:[#allocation10 + $0x1ec] sm:$0xf]
    %v4239 = vld [vmem:[#allocation10 + $0x1f0] sm:$0xf]
    %v4240 = vld [vmem:[#allocation10 + $0x1f4] sm:$0xf]
    %v4241 = vld [vmem:[#allocation10 + $0x1f8] sm:$0xf]
    %v4242 = vld [vmem:[#allocation10 + $0x1fc] sm:$0xf]
    %v4243 = vld [vmem:[#allocation11] sm:$0x1]
    %v4245 = vlaneseq
    %v4246 = vshrl.u32 %v4245, 7
    %v4247 = vsub.s32 0, %v4246
    %v4248 = vrot.slane %v4243, %v4247
    %v4378 = vunpack.c.l.b16 %v4115
    %v4379 = vunpack.c.l.b16 %v4116
    %v4380 = vunpack.c.l.b16 %v4117
    %v4381 = vunpack.c.l.b16 %v4118
    %v4382 = vunpack.c.l.b16 %v4119
    %v4383 = vunpack.c.l.b16 %v4120
    %v4384 = vunpack.c.l.b16 %v4121
    %v4385 = vunpack.c.l.b16 %v4122
    %v4386 = vunpack.c.l.b16 %v4123
    %v4387 = vunpack.c.l.b16 %v4124
    %v4388 = vunpack.c.l.b16 %v4125
    %v4389 = vunpack.c.l.b16 %v4126
    %v4390 = vunpack.c.l.b16 %v4127
    %v4391 = vunpack.c.l.b16 %v4128
    %v4392 = vunpack.c.l.b16 %v4129
    %v4393 = vunpack.c.l.b16 %v4130
    %v4394 = vunpack.c.l.b16 %v4131
    %v4395 = vunpack.c.l.b16 %v4132
    %v4396 = vunpack.c.l.b16 %v4133
    %v4397 = vunpack.c.l.b16 %v4134
    %v4398 = vunpack.c.l.b16 %v4135
    %v4399 = vunpack.c.l.b16 %v4136
    %v4400 = vunpack.c.l.b16 %v4137
    %v4401 = vunpack.c.l.b16 %v4138
    %v4402 = vunpack.c.l.b16 %v4139
    %v4403 = vunpack.c.l.b16 %v4140
    %v4404 = vunpack.c.l.b16 %v4141
    %v4405 = vunpack.c.l.b16 %v4142
    %v4406 = vunpack.c.l.b16 %v4143
    %v4407 = vunpack.c.l.b16 %v4144
    %v4408 = vunpack.c.l.b16 %v4145
    %v4409 = vunpack.c.l.b16 %v4146
    %v4410 = vunpack.c.l.b16 %v4147
    %v4411 = vunpack.c.l.b16 %v4148
    %v4412 = vunpack.c.l.b16 %v4149
    %v4413 = vunpack.c.l.b16 %v4150
    %v4414 = vunpack.c.l.b16 %v4151
    %v4415 = vunpack.c.l.b16 %v4152
    %v4416 = vunpack.c.l.b16 %v4153
    %v4417 = vunpack.c.l.b16 %v4154
    %v4418 = vunpack.c.l.b16 %v4155
    %v4419 = vunpack.c.l.b16 %v4156
    %v4420 = vunpack.c.l.b16 %v4157
    %v4421 = vunpack.c.l.b16 %v4158
    %v4422 = vunpack.c.l.b16 %v4159
    %v4423 = vunpack.c.l.b16 %v4160
    %v4424 = vunpack.c.l.b16 %v4161
    %v4425 = vunpack.c.l.b16 %v4162
    %v4426 = vunpack.c.l.b16 %v4163
    %v4427 = vunpack.c.l.b16 %v4164
    %v4428 = vunpack.c.l.b16 %v4165
    %v4429 = vunpack.c.l.b16 %v4166
    %v4430 = vunpack.c.l.b16 %v4167
    %v4431 = vunpack.c.l.b16 %v4168
    %v4432 = vunpack.c.l.b16 %v4169
    %v4433 = vunpack.c.l.b16 %v4170
    %v4434 = vunpack.c.l.b16 %v4171
    %v4435 = vunpack.c.l.b16 %v4172
    %v4436 = vunpack.c.l.b16 %v4173
    %v4437 = vunpack.c.l.b16 %v4174
    %v4438 = vunpack.c.l.b16 %v4175
    %v4439 = vunpack.c.l.b16 %v4176
    %v4440 = vunpack.c.l.b16 %v4177
    %v4441 = vunpack.c.l.b16 %v4178
    %v4442 = vunpack.c.l.b16 %v4179
    %v4443 = vunpack.c.l.b16 %v4180
    %v4444 = vunpack.c.l.b16 %v4181
    %v4445 = vunpack.c.l.b16 %v4182
    %v4446 = vunpack.c.l.b16 %v4183
    %v4447 = vunpack.c.l.b16 %v4184
    %v4448 = vunpack.c.l.b16 %v4185
    %v4449 = vunpack.c.l.b16 %v4186
    %v4450 = vunpack.c.l.b16 %v4187
    %v4451 = vunpack.c.l.b16 %v4188
    %v4452 = vunpack.c.l.b16 %v4189
    %v4453 = vunpack.c.l.b16 %v4190
    %v4454 = vunpack.c.l.b16 %v4191
    %v4455 = vunpack.c.l.b16 %v4192
    %v4456 = vunpack.c.l.b16 %v4193
    %v4457 = vunpack.c.l.b16 %v4194
    %v4458 = vunpack.c.l.b16 %v4195
    %v4459 = vunpack.c.l.b16 %v4196
    %v4460 = vunpack.c.l.b16 %v4197
    %v4461 = vunpack.c.l.b16 %v4198
    %v4462 = vunpack.c.l.b16 %v4199
    %v4463 = vunpack.c.l.b16 %v4200
    %v4464 = vunpack.c.l.b16 %v4201
    %v4465 = vunpack.c.l.b16 %v4202
    %v4466 = vunpack.c.l.b16 %v4203
    %v4467 = vunpack.c.l.b16 %v4204
    %v4468 = vunpack.c.l.b16 %v4205
    %v4469 = vunpack.c.l.b16 %v4206
    %v4470 = vunpack.c.l.b16 %v4207
    %v4471 = vunpack.c.l.b16 %v4208
    %v4472 = vunpack.c.l.b16 %v4209
    %v4473 = vunpack.c.l.b16 %v4210
    %v4474 = vunpack.c.l.b16 %v4211
    %v4475 = vunpack.c.l.b16 %v4212
    %v4476 = vunpack.c.l.b16 %v4213
    %v4477 = vunpack.c.l.b16 %v4214
    %v4478 = vunpack.c.l.b16 %v4215
    %v4479 = vunpack.c.l.b16 %v4216
    %v4480 = vunpack.c.l.b16 %v4217
    %v4481 = vunpack.c.l.b16 %v4218
    %v4482 = vunpack.c.l.b16 %v4219
    %v4483 = vunpack.c.l.b16 %v4220
    %v4484 = vunpack.c.l.b16 %v4221
    %v4485 = vunpack.c.l.b16 %v4222
    %v4486 = vunpack.c.l.b16 %v4223
    %v4487 = vunpack.c.l.b16 %v4224
    %v4488 = vunpack.c.l.b16 %v4225
    %v4489 = vunpack.c.l.b16 %v4226
    %v4490 = vunpack.c.l.b16 %v4227
    %v4491 = vunpack.c.l.b16 %v4228
    %v4492 = vunpack.c.l.b16 %v4229
    %v4493 = vunpack.c.l.b16 %v4230
    %v4494 = vunpack.c.l.b16 %v4231
    %v4495 = vunpack.c.l.b16 %v4232
    %v4496 = vunpack.c.l.b16 %v4233
    %v4497 = vunpack.c.l.b16 %v4234
    %v4498 = vunpack.c.l.b16 %v4235
    %v4499 = vunpack.c.l.b16 %v4236
    %v4500 = vunpack.c.l.b16 %v4237
    %v4501 = vunpack.c.l.b16 %v4238
    %v4502 = vunpack.c.l.b16 %v4239
    %v4503 = vunpack.c.l.b16 %v4240
    %v4504 = vunpack.c.l.b16 %v4241
    %v4505 = vunpack.c.l.b16 %v4242
    %v4506 = vpack.c.b16 %v4379, %v4378
    %v4507 = vpack.c.b16 %v4381, %v4380
    %v4508 = vpack.c.b16 %v4383, %v4382
    %v4509 = vpack.c.b16 %v4385, %v4384
    %v4510 = vpack.c.b16 %v4387, %v4386
    %v4511 = vpack.c.b16 %v4389, %v4388
    %v4512 = vpack.c.b16 %v4391, %v4390
    %v4513 = vpack.c.b16 %v4393, %v4392
    %v4514 = vpack.c.b16 %v4395, %v4394
    %v4515 = vpack.c.b16 %v4397, %v4396
    %v4516 = vpack.c.b16 %v4399, %v4398
    %v4517 = vpack.c.b16 %v4401, %v4400
    %v4518 = vpack.c.b16 %v4403, %v4402
    %v4519 = vpack.c.b16 %v4405, %v4404
    %v4520 = vpack.c.b16 %v4407, %v4406
    %v4521 = vpack.c.b16 %v4409, %v4408
    %v4522 = vpack.c.b16 %v4411, %v4410
    %v4523 = vpack.c.b16 %v4413, %v4412
    %v4524 = vpack.c.b16 %v4415, %v4414
    %v4525 = vpack.c.b16 %v4417, %v4416
    %v4526 = vpack.c.b16 %v4419, %v4418
    %v4527 = vpack.c.b16 %v4421, %v4420
    %v4528 = vpack.c.b16 %v4423, %v4422
    %v4529 = vpack.c.b16 %v4425, %v4424
    %v4530 = vpack.c.b16 %v4427, %v4426
    %v4531 = vpack.c.b16 %v4429, %v4428
    %v4532 = vpack.c.b16 %v4431, %v4430
    %v4533 = vpack.c.b16 %v4433, %v4432
    %v4534 = vpack.c.b16 %v4435, %v4434
    %v4535 = vpack.c.b16 %v4437, %v4436
    %v4536 = vpack.c.b16 %v4439, %v4438
    %v4537 = vpack.c.b16 %v4441, %v4440
    %v4538 = vpack.c.b16 %v4443, %v4442
    %v4539 = vpack.c.b16 %v4445, %v4444
    %v4540 = vpack.c.b16 %v4447, %v4446
    %v4541 = vpack.c.b16 %v4449, %v4448
    %v4542 = vpack.c.b16 %v4451, %v4450
    %v4543 = vpack.c.b16 %v4453, %v4452
    %v4544 = vpack.c.b16 %v4455, %v4454
    %v4545 = vpack.c.b16 %v4457, %v4456
    %v4546 = vpack.c.b16 %v4459, %v4458
    %v4547 = vpack.c.b16 %v4461, %v4460
    %v4548 = vpack.c.b16 %v4463, %v4462
    %v4549 = vpack.c.b16 %v4465, %v4464
    %v4550 = vpack.c.b16 %v4467, %v4466
    %v4551 = vpack.c.b16 %v4469, %v4468
    %v4552 = vpack.c.b16 %v4471, %v4470
    %v4553 = vpack.c.b16 %v4473, %v4472
    %v4554 = vpack.c.b16 %v4475, %v4474
    %v4555 = vpack.c.b16 %v4477, %v4476
    %v4556 = vpack.c.b16 %v4479, %v4478
    %v4557 = vpack.c.b16 %v4481, %v4480
    %v4558 = vpack.c.b16 %v4483, %v4482
    %v4559 = vpack.c.b16 %v4485, %v4484
    %v4560 = vpack.c.b16 %v4487, %v4486
    %v4561 = vpack.c.b16 %v4489, %v4488
    %v4562 = vpack.c.b16 %v4491, %v4490
    %v4563 = vpack.c.b16 %v4493, %v4492
    %v4564 = vpack.c.b16 %v4495, %v4494
    %v4565 = vpack.c.b16 %v4497, %v4496
    %v4566 = vpack.c.b16 %v4499, %v4498
    %v4567 = vpack.c.b16 %v4501, %v4500
    %v4568 = vpack.c.b16 %v4503, %v4502
    %v4569 = vpack.c.b16 %v4505, %v4504
    %4634 = vmatprep.subr.bf16.mxu0 0
    %4635 = vmatpush1.bf16.msra.mxu0 %v4506
    %4636 = vmatprep.subr.bf16.mxu0 0
    %4637 = vmatpush1.bf16.msra.mxu0 %v4507
    %4638 = vmatprep.subr.bf16.mxu0 0
    %4639 = vmatpush1.bf16.msra.mxu0 %v4508
    %4640 = vmatprep.subr.bf16.mxu0 0
    %4641 = vmatpush1.bf16.msra.mxu0 %v4509
    %4642 = vmatprep.subr.bf16.mxu0 0
    %4643 = vmatpush1.bf16.msra.mxu0 %v4510
    %4644 = vmatprep.subr.bf16.mxu0 0
    %4645 = vmatpush1.bf16.msra.mxu0 %v4511
    %4646 = vmatprep.subr.bf16.mxu0 0
    %4647 = vmatpush1.bf16.msra.mxu0 %v4512
    %4648 = vmatprep.subr.bf16.mxu0 0
    %4649 = vmatpush1.bf16.msra.mxu0 %v4513
    %4650 = vmatprep.subr.bf16.mxu0 0
    %4651 = vmatpush1.bf16.msra.mxu0 %v4514
    %4652 = vmatprep.subr.bf16.mxu0 0
    %4653 = vmatpush1.bf16.msra.mxu0 %v4515
    %4654 = vmatprep.subr.bf16.mxu0 0
    %4655 = vmatpush1.bf16.msra.mxu0 %v4516
    %4656 = vmatprep.subr.bf16.mxu0 0
    %4657 = vmatpush1.bf16.msra.mxu0 %v4517
    %4658 = vmatprep.subr.bf16.mxu0 0
    %4659 = vmatpush1.bf16.msra.mxu0 %v4518
    %4660 = vmatprep.subr.bf16.mxu0 0
    %4661 = vmatpush1.bf16.msra.mxu0 %v4519
    %4662 = vmatprep.subr.bf16.mxu0 0
    %4663 = vmatpush1.bf16.msra.mxu0 %v4520
    %4664 = vmatprep.subr.bf16.mxu0 0
    %4665 = vmatpush1.bf16.msra.mxu0 %v4521
    %4666 = vmatprep.mubr.bf16.mxu0 %v4108
    %4667 = vmatmul.mubr.bf16.gmra.mrb[0].mxu0 %v4107
    %v4668 = vpop.f32.mrb[0].mxu0
    %v4669 = vadd.f32 %v4248, %v4668
    %v4670 = vpop.f32.mrb[0].mxu0
    %v4671 = vpop.f32.mrb[0].mxu0
    %v4672 = vpop.f32.mrb[0].mxu0
    %4673 = vdwg.mxu0
    %4674 = vmatprep.subr.bf16.mxu0 0
    %4675 = vmatpush1.bf16.msra.mxu0 %v4522
    %4676 = vmatprep.subr.bf16.mxu0 0
    %4677 = vmatpush1.bf16.msra.mxu0 %v4523
    %4678 = vmatprep.subr.bf16.mxu0 0
    %4679 = vmatpush1.bf16.msra.mxu0 %v4524
    %4680 = vmatprep.subr.bf16.mxu0 0
    %4681 = vmatpush1.bf16.msra.mxu0 %v4525
    %4682 = vmatprep.subr.bf16.mxu0 0
    %4683 = vmatpush1.bf16.msra.mxu0 %v4526
    %4684 = vmatprep.subr.bf16.mxu0 0
    %4685 = vmatpush1.bf16.msra.mxu0 %v4527
    %4686 = vmatprep.subr.bf16.mxu0 0
    %4687 = vmatpush1.bf16.msra.mxu0 %v4528
    %4688 = vmatprep.subr.bf16.mxu0 0
    %4689 = vmatpush1.bf16.msra.mxu0 %v4529
    %4690 = vmatprep.subr.bf16.mxu0 0
    %4691 = vmatpush1.bf16.msra.mxu0 %v4530
    %4692 = vmatprep.subr.bf16.mxu0 0
    %4693 = vmatpush1.bf16.msra.mxu0 %v4531
    %4694 = vmatprep.subr.bf16.mxu0 0
    %4695 = vmatpush1.bf16.msra.mxu0 %v4532
    %4696 = vmatprep.subr.bf16.mxu0 0
    %4697 = vmatpush1.bf16.msra.mxu0 %v4533
    %4698 = vmatprep.subr.bf16.mxu0 0
    %4699 = vmatpush1.bf16.msra.mxu0 %v4534
    %4700 = vmatprep.subr.bf16.mxu0 0
    %4701 = vmatpush1.bf16.msra.mxu0 %v4535
    %4702 = vmatprep.subr.bf16.mxu0 0
    %4703 = vmatpush1.bf16.msra.mxu0 %v4536
    %4704 = vmatprep.subr.bf16.mxu0 0
    %4705 = vmatpush1.bf16.msra.mxu0 %v4537
    %4706 = vmatprep.mubr.bf16.mxu0 %v4110
    %4707 = vmatmul.mubr.bf16.gmra.mrb[0].mxu0 %v4109
    %v4708 = vpop.f32.mrb[0].mxu0
    %v4709 = vadd.f32 %v4669, %v4708
    %v4710 = vpop.f32.mrb[0].mxu0
    %v4711 = vpop.f32.mrb[0].mxu0
    %v4712 = vpop.f32.mrb[0].mxu0
    %4713 = vdwg.mxu0
    %4714 = vmatprep.subr.bf16.mxu0 0
    %4715 = vmatpush1.bf16.msra.mxu0 %v4538
    %4716 = vmatprep.subr.bf16.mxu0 0
    %4717 = vmatpush1.bf16.msra.mxu0 %v4539
    %4718 = vmatprep.subr.bf16.mxu0 0
    %4719 = vmatpush1.bf16.msra.mxu0 %v4540
    %4720 = vmatprep.subr.bf16.mxu0 0
    %4721 = vmatpush1.bf16.msra.mxu0 %v4541
    %4722 = vmatprep.subr.bf16.mxu0 0
    %4723 = vmatpush1.bf16.msra.mxu0 %v4542
    %4724 = vmatprep.subr.bf16.mxu0 0
    %4725 = vmatpush1.bf16.msra.mxu0 %v4543
    %4726 = vmatprep.subr.bf16.mxu0 0
    %4727 = vmatpush1.bf16.msra.mxu0 %v4544
    %4728 = vmatprep.subr.bf16.mxu0 0
    %4729 = vmatpush1.bf16.msra.mxu0 %v4545
    %4730 = vmatprep.subr.bf16.mxu0 0
    %4731 = vmatpush1.bf16.msra.mxu0 %v4546
    %4732 = vmatprep.subr.bf16.mxu0 0
    %4733 = vmatpush1.bf16.msra.mxu0 %v4547
    %4734 = vmatprep.subr.bf16.mxu0 0
    %4735 = vmatpush1.bf16.msra.mxu0 %v4548
    %4736 = vmatprep.subr.bf16.mxu0 0
    %4737 = vmatpush1.bf16.msra.mxu0 %v4549
    %4738 = vmatprep.subr.bf16.mxu0 0
    %4739 = vmatpush1.bf16.msra.mxu0 %v4550
    %4740 = vmatprep.subr.bf16.mxu0 0
    %4741 = vmatpush1.bf16.msra.mxu0 %v4551
    %4742 = vmatprep.subr.bf16.mxu0 0
    %4743 = vmatpush1.bf16.msra.mxu0 %v4552
    %4744 = vmatprep.subr.bf16.mxu0 0
    %4745 = vmatpush1.bf16.msra.mxu0 %v4553
    %4746 = vmatprep.mubr.bf16.mxu0 %v4112
    %4747 = vmatmul.mubr.bf16.gmra.mrb[0].mxu0 %v4111
    %v4748 = vpop.f32.mrb[0].mxu0
    %v4749 = vadd.f32 %v4709, %v4748
    %v4750 = vpop.f32.mrb[0].mxu0
    %v4751 = vpop.f32.mrb[0].mxu0
    %v4752 = vpop.f32.mrb[0].mxu0
    %4753 = vdwg.mxu0
    %4754 = vmatprep.subr.bf16.mxu0 0
    %4755 = vmatpush1.bf16.msra.mxu0 %v4554
    %4756 = vmatprep.subr.bf16.mxu0 0
    %4757 = vmatpush1.bf16.msra.mxu0 %v4555
    %4758 = vmatprep.subr.bf16.mxu0 0
    %4759 = vmatpush1.bf16.msra.mxu0 %v4556
    %4760 = vmatprep.subr.bf16.mxu0 0
    %4761 = vmatpush1.bf16.msra.mxu0 %v4557
    %4762 = vmatprep.subr.bf16.mxu0 0
    %4763 = vmatpush1.bf16.msra.mxu0 %v4558
    %4764 = vmatprep.subr.bf16.mxu0 0
    %4765 = vmatpush1.bf16.msra.mxu0 %v4559
    %4766 = vmatprep.subr.bf16.mxu0 0
    %4767 = vmatpush1.bf16.msra.mxu0 %v4560
    %4768 = vmatprep.subr.bf16.mxu0 0
    %4769 = vmatpush1.bf16.msra.mxu0 %v4561
    %4770 = vmatprep.subr.bf16.mxu0 0
    %4771 = vmatpush1.bf16.msra.mxu0 %v4562
    %4772 = vmatprep.subr.bf16.mxu0 0
    %4773 = vmatpush1.bf16.msra.mxu0 %v4563
    %4774 = vmatprep.subr.bf16.mxu0 0
    %4775 = vmatpush1.bf16.msra.mxu0 %v4564
    %4776 = vmatprep.subr.bf16.mxu0 0
    %4777 = vmatpush1.bf16.msra.mxu0 %v4565
    %4778 = vmatprep.subr.bf16.mxu0 0
    %4779 = vmatpush1.bf16.msra.mxu0 %v4566
    %4780 = vmatprep.subr.bf16.mxu0 0
    %4781 = vmatpush1.bf16.msra.mxu0 %v4567
    %4782 = vmatprep.subr.bf16.mxu0 0
    %4783 = vmatpush1.bf16.msra.mxu0 %v4568
    %4784 = vmatprep.subr.bf16.mxu0 0
    %4785 = vmatpush1.bf16.msra.mxu0 %v4569
    %4786 = vmatprep.mubr.bf16.mxu0 %v4114
    %4787 = vmatmul.mubr.bf16.gmra.mrb[0].mxu0 %v4113
    %v4788 = vpop.f32.mrb[0].mxu0
    %v4789 = vadd.f32 %v4749, %v4788
    %v4790 = vpop.f32.mrb[0].mxu0
    %v4791 = vpop.f32.mrb[0].mxu0
    %v4792 = vpop.f32.mrb[0].mxu0
    %4793 = vdwg.mxu0
    %4794 = vst [vmem:[#allocation13] sm:$0xff] %v4789
    // Predicated region
    $region50: #{tpu_custom_call.1} parent=1 // pred_check
      _
    $region51: #{tpu_custom_call.1} parent=1 // pred_check_branch
      %4796 = sbr.rel (0) target = $region53
    $region52: #{tpu_custom_call.1} parent=1 // pred_region
      %s4798 = ssub.s32 128, 128
      %4799 = vsyncadd [#allocation4], %s4798
      %s4801 = sshll.u32 [#allocation13], 4
      %s4802 = int_to_ptr.vmem [resolvable:$true] %s4801
      %4804 = dma.vmem_to_hbm [thread:$0]  %s4802, 128, %s6, [#allocation4]
    $region53: #{tpu_custom_call.1} parent=1 // pred_fallthru
      _
    // Predicated region
    $region54: #{tpu_custom_call.1} parent=1 // pred_check
      _
    $region55: #{tpu_custom_call.1} parent=1 // pred_check_branch
      %4806 = sbr.rel (0) target = $region57
    $region56: #{tpu_custom_call.1} parent=1 // pred_region
      %4807 = dma.done [#allocation4], 128
    $region57: #{tpu_custom_call.1} parent=1 // pred_fallthru
      _
    %4808 = vsyncpa [#allocation3], 1
    %4809 = vsyncpa [#allocation6], 1
    %4810 = vsyncpa [#allocation9], 1
    %4811 = vsyncpa [#allocation12], 1
    %4812 = vsyncpa [#allocation4], 1

</llo_original>
